<compile_context>
chip_gen: v5e
topology: v5e:2x2
jax: 0.10.0
libtpu: 0.0.40
codegen_flags: <defaults>
</compile_context>

<pallas_src>
import functools

import numpy as np
import jax
import jax.numpy as jnp
from jax import lax
from jax.experimental import pallas as pl
from jax.experimental.pallas import tpu as pltpu

NEG_SLOPE = 0.01      # nn.LeakyReLU default
SCALE_MIN = 0.11      # scale lower bound for the conditional
HIDDEN = 640          # hard-coded in the PyTorch module


def _mode_a_mask_and_taps(kernel_size):
    """mode-'A' mask of MaskedConv2d and the list of its non-zero (kh, kw) taps."""
    K = kernel_size
    ch = cw = (K - 1) // 2
    mask = np.zeros((K, K), np.float32)
    mask[:ch, :] = 1.0
    mask[:ch + 1, :cw] = 1.0
    taps = [(kh, kw) for kh in range(K) for kw in range(K) if mask[kh, kw] > 0]
    return mask, taps                       # 5x5 mode A -> 12 taps


def _round_up(a, b):
    return ((a + b - 1) // b) * b


# ------------------------------- Pallas kernel --------------------------------
# Feature-major layout: every ref is (features, pixels); pixels live on lanes.

def context_kernel(feat_ref, outq_ref,
                   wcat_ref, b1_ref,
                   w2_ref, b2_ref,
                   w3_ref, b3_ref,
                   lik_ref):
    C = lik_ref.shape[0]

    # layer 1 (masked 5x5 conv folded into the 1x1): (640, F) @ (F, tm)
    h = jnp.dot(wcat_ref[...], feat_ref[...],
                preferred_element_type=jnp.float32) + b1_ref[...]
    h = jnp.where(h > 0, h, NEG_SLOPE * h)

    # layer 2 — the dominant 640x640 GEMM: (640, 640) @ (640, tm)
    h = jnp.dot(w2_ref[...], h,
                preferred_element_type=jnp.float32) + b2_ref[...]
    h = jnp.where(h > 0, h, NEG_SLOPE * h)

    # fused head [mean ; raw_scale]: (2C, 640) @ (640, tm)
    head = jnp.dot(w3_ref[...], h,
                   preferred_element_type=jnp.float32) + b3_ref[...]
    mean = head[:C, :]
    scale = jnp.maximum(jnp.abs(head[C:, :]), SCALE_MIN)

    # logistic likelihood of the quantized symbols.
    # sigmoid(a) - sigmoid(b) == 0.5 * (tanh(a/2) - tanh(b/2))  (tanh -> EUP slot)
    x = outq_ref[...] - mean
    inv = 1.0 / scale
    up = jnp.tanh(0.5 * (x + 0.5) * inv)
    lo = jnp.tanh(0.5 * (x - 0.5) * inv)
    lik_ref[...] = 0.5 * (up - lo)


# ------------------------------- host wrapper ---------------------------------

@functools.partial(jax.jit, static_argnames=("kernel_size", "tm"))
def context_model_forward(x_nchw, phi_nchw, params, *, kernel_size=5, tm=1024):
    """Returns (output, likelihood), both NCHW float32 (matches the torch forward)."""
    B, C, H, W = x_nchw.shape
    Cphi = phi_nchw.shape[1]
    N = B * H * W
    K = kernel_size
    pad = (K - 1) // 2
    _, taps = _mode_a_mask_and_taps(K)
    T = len(taps)
    F = T * C + Cphi                      # folded streaming-feature width (56 here)

    # ---- eval-mode quantize + im2col glue (pure data movement, fused by XLA) ----
    output = jnp.round(x_nchw)                                   # returned as-is
    outq_nhwc = jnp.transpose(output, (0, 2, 3, 1))              # [B,H,W,C]
    xpad = jnp.pad(outq_nhwc, ((0, 0), (pad, pad), (pad, pad), (0, 0)))
    # only the 12 non-zero mode-A taps are materialized (not all K*K)
    patch_list = [xpad[:, kh:kh + H, kw:kw + W, :] for kh, kw in taps]
    patches = jnp.concatenate(patch_list, axis=-1).reshape(N, T * C)
    phi_flat = jnp.transpose(phi_nchw, (0, 2, 3, 1)).reshape(N, Cphi)

    # feature-major (lane-dense) operands: (features, pixels)
    feat_T = jnp.concatenate([patches, phi_flat], axis=-1).T     # (F, N)
    outq_cn = outq_nhwc.reshape(N, C).T                          # (C, N)

    # ---- fold masked conv + reparam layer 1 (algebraically exact) ----
    w1a = params["w1"][:Cphi, :]                                 # masked half of W1
    w1b = params["w1"][Cphi:, :]                                 # phi half of W1
    w_fold = jnp.dot(params["wm_flat"], w1a)                     # (T*C, HIDDEN)
    wcat_T = jnp.concatenate([w_fold, w1b], axis=0).T            # (HIDDEN, F)
    b1_T = (jnp.dot(params["bm"], w1a) + params["b1"]).T         # (HIDDEN, 1)
    w2_T = params["w2"].T                                        # (HIDDEN, HIDDEN)
    b2_T = params["b2"].T                                        # (HIDDEN, 1)
    w3_T = jnp.concatenate([params["w3m"], params["w3s"]], axis=1).T   # (2C, HIDDEN)
    b3_T = jnp.concatenate([params["b3m"], params["b3s"]], axis=1).T   # (2C, 1)

    # ---- tiling: lane-aligned tm, keep the parallel grid >= 2 steps ----
    tm_eff = min(tm, max(128, _round_up((N + 1) // 2, 128)))
    n_pad = _round_up(N, tm_eff)
    if n_pad != N:
        feat_T = jnp.pad(feat_T, ((0, 0), (0, n_pad - N)))
        outq_cn = jnp.pad(outq_cn, ((0, 0), (0, n_pad - N)))
    grid = (n_pad // tm_eff,)

    def _stream_spec(rows):
        return pl.BlockSpec((rows, tm_eff), lambda i: (0, i))

    def _const_spec(shape):
        return pl.BlockSpec(shape, lambda i: (0, 0))

    lik_cn = pl.pallas_call(
        context_kernel,
        out_shape=jax.ShapeDtypeStruct((C, n_pad), jnp.float32),
        grid=grid,
        in_specs=[
            _stream_spec(F),              # folded features (dominant streaming input)
            _stream_spec(C),              # quantized symbols (likelihood path)
            _const_spec(wcat_T.shape), _const_spec(b1_T.shape),
            _const_spec(w2_T.shape), _const_spec(b2_T.shape),
            _const_spec(w3_T.shape), _const_spec(b3_T.shape),
        ],
        out_specs=_stream_spec(C),
        compiler_params=pltpu.CompilerParams(
            dimension_semantics=("parallel",),
            vmem_limit_bytes=32 * 1024 * 1024,
        ),
    )(feat_T, outq_cn, wcat_T, b1_T, w2_T, b2_T, w3_T, b3_T)

    likelihood = jnp.transpose(lik_cn[:, :N].reshape(C, B, H, W), (1, 0, 2, 3))
    return output, likelihood


# -------------------------- deterministic parameters --------------------------

def make_params(key, num_features, num_phi_features, kernel_size=5):
    C, Cphi, K = num_features, num_phi_features, kernel_size
    ks = jax.random.split(key, 10)

    mask_np, taps = _mode_a_mask_and_taps(K)
    mask = jnp.asarray(mask_np)

    wm = jax.random.normal(ks[0], (K, K, C, Cphi), jnp.float32) * 0.1      # HWIO
    wm_masked = wm * mask[:, :, None, None]
    # keep only the non-zero mode-A taps for the im2col matmul: (T*C, Cphi)
    wm_flat = jnp.concatenate([wm_masked[kh, kw] for kh, kw in taps], axis=0)
    bm = jax.random.normal(ks[1], (1, Cphi), jnp.float32) * 0.1

    w1 = jax.random.normal(ks[2], (2 * Cphi, HIDDEN), jnp.float32) * 0.1
    b1 = jax.random.normal(ks[3], (1, HIDDEN), jnp.float32) * 0.1
    w2 = jax.random.normal(ks[4], (HIDDEN, HIDDEN), jnp.float32) * 0.02
    b2 = jax.random.normal(ks[5], (1, HIDDEN), jnp.float32) * 0.1
    # final 1x1 conv produces [mean(C), scale(C)] (condition_size = 2)
    w3m = jax.random.normal(ks[6], (HIDDEN, C), jnp.float32) * 0.02
    b3m = jax.random.normal(ks[7], (1, C), jnp.float32) * 0.1
    w3s = jax.random.normal(ks[8], (HIDDEN, C), jnp.float32) * 0.02
    b3s = jax.random.normal(ks[9], (1, C), jnp.float32) * 0.1

    return {
        "wm_masked": wm_masked, "wm_flat": wm_flat,
        "bm": bm, "w1": w1, "b1": b1, "w2": w2, "b2": b2,
        "w3m": w3m, "b3m": b3m, "w3s": w3s, "b3s": b3s,
    }


# ------------------------------ pure-JAX reference -----------------------------
# Independent (un-folded, full 5x5 conv) f32 forward for numerical comparison.

def reference_forward(x_nchw, phi_nchw, params, kernel_size=5):
    K = kernel_size
    pad = (K - 1) // 2
    outq = jnp.round(x_nchw)

    w_oihw = jnp.transpose(params["wm_masked"], (3, 2, 0, 1))     # (Cphi, C, K, K)
    xpad = jnp.pad(outq, ((0, 0), (0, 0), (pad, pad), (pad, pad)))
    masked = lax.conv_general_dilated(xpad, w_oihw, (1, 1), "VALID")
    masked = masked + params["bm"].reshape(1, -1, 1, 1)

    def c1x1(x, w, b):
        y = jnp.einsum("bchw,cd->bdhw", x, w)
        return y + b.reshape(1, -1, 1, 1)

    cat = jnp.concatenate([masked, phi_nchw], axis=1)
    h = c1x1(cat, params["w1"], params["b1"])
    h = jnp.where(h > 0, h, NEG_SLOPE * h)
    h = c1x1(h, params["w2"], params["b2"])
    h = jnp.where(h > 0, h, NEG_SLOPE * h)
    mean = c1x1(h, params["w3m"], params["b3m"])
    raw = c1x1(h, params["w3s"], params["b3s"])
    scale = jnp.maximum(jnp.abs(raw), SCALE_MIN)
    xm = outq - mean
    lik = jax.nn.sigmoid((xm + 0.5) / scale) - jax.nn.sigmoid((xm - 0.5) / scale)
    return outq, lik


# ------------------------------------ main -------------------------------------

if __name__ == "__main__":
    B, C, H, W = 2, 4, 16, 16        # num_features = 4
    Cphi = 8                         # num_phi_features = 8
    key = jax.random.PRNGKey(0)
    kx, kp, kw = jax.random.split(key, 3)

    x = jax.random.normal(kx, (B, C, H, W), jnp.float32) * 3.0
    phi = jax.random.normal(kp, (B, Cphi, H, W), jnp.float32)
    params = make_params(kw, C, Cphi)

    output, likelihood = context_model_forward(x, phi, params)
    output, likelihood = jax.block_until_ready((output, likelihood))

    ref_out, ref_lik = reference_forward(x, phi, params)
    np.testing.assert_allclose(np.asarray(output), np.asarray(ref_out),
                               atol=1e-6, rtol=1e-6)
    # tolerance covers MXU-vs-XLA accumulation order and the weight-fold order
    np.testing.assert_allclose(np.asarray(likelihood), np.asarray(ref_lik),
                               atol=2e-3, rtol=2e-3)

    print("KERNEL_OK")
</pallas_src>

<mosaic_0001>
module attributes {stable_mosaic.version = 11 : i64} {
  func.func @context_kernel(%arg0: i32, %arg1: memref<56x256xf32, #tpu.memory_space<vmem>>, %arg2: memref<4x256xf32, #tpu.memory_space<vmem>>, %arg3: memref<640x56xf32, #tpu.memory_space<vmem>>, %arg4: memref<640x1xf32, #tpu.memory_space<vmem>>, %arg5: memref<640x640xf32, #tpu.memory_space<vmem>>, %arg6: memref<640x1xf32, #tpu.memory_space<vmem>>, %arg7: memref<8x640xf32, #tpu.memory_space<vmem>>, %arg8: memref<8x1xf32, #tpu.memory_space<vmem>>, %arg9: memref<4x256xf32, #tpu.memory_space<vmem>>) attributes {dimension_semantics = [#tpu.dimension_semantics<parallel>], iteration_bounds = array<i64: 2>, scalar_prefetch = 0 : i64, scratch_operands = 0 : i64, tpu.core_type = #tpu.core_type<tc>, window_params = [{transform_indices = @transform_0, window_bounds = array<i64: 56, 256>}, {transform_indices = @transform_1, window_bounds = array<i64: 4, 256>}, {pipeline_mode = #tpu.pipeline_mode<synchronous>, transform_indices = @transform_2, window_bounds = array<i64: 640, 56>}, {pipeline_mode = #tpu.pipeline_mode<synchronous>, transform_indices = @transform_3, window_bounds = array<i64: 640, 1>}, {pipeline_mode = #tpu.pipeline_mode<synchronous>, transform_indices = @transform_4, window_bounds = array<i64: 640, 640>}, {pipeline_mode = #tpu.pipeline_mode<synchronous>, transform_indices = @transform_5, window_bounds = array<i64: 640, 1>}, {pipeline_mode = #tpu.pipeline_mode<synchronous>, transform_indices = @transform_6, window_bounds = array<i64: 8, 640>}, {pipeline_mode = #tpu.pipeline_mode<synchronous>, transform_indices = @transform_7, window_bounds = array<i64: 8, 1>}, {transform_indices = @transform_8, window_bounds = array<i64: 4, 256>}]} {
    %c0 = arith.constant 0 : index
    %c0_0 = arith.constant 0 : index
    %0 = vector.load %arg3[%c0, %c0_0] : memref<640x56xf32, #tpu.memory_space<vmem>>, vector<640x56xf32>
    %c0_1 = arith.constant 0 : index
    %c0_2 = arith.constant 0 : index
    %1 = vector.load %arg1[%c0_1, %c0_2] : memref<56x256xf32, #tpu.memory_space<vmem>>, vector<56x256xf32>
    %cst = arith.constant dense<0.000000e+00> : vector<640x256xf32>
    %2 = tpu.matmul %0, %1, %cst {dimension_numbers = #tpu.dot_dimension_numbers<[1], [0], [0], [1], [0, 0, 1, 1], [], []>} : vector<640x56xf32>, vector<56x256xf32>, vector<640x256xf32> -> vector<640x256xf32>
    %c0_3 = arith.constant 0 : index
    %c0_4 = arith.constant 0 : index
    %3 = vector.load %arg4[%c0_3, %c0_4] : memref<640x1xf32, #tpu.memory_space<vmem>>, vector<640x1xf32>
    %4 = vector.broadcast %3 : vector<640x1xf32> to vector<640x256xf32>
    %5 = arith.addf %2, %4 : vector<640x256xf32>
    %cst_5 = arith.constant 0.000000e+00 : f32
    %6 = vector.broadcast %cst_5 : f32 to vector<640x256xf32>
    %7 = arith.cmpf ogt, %5, %6 : vector<640x256xf32>
    %cst_6 = arith.constant 0.00999999977 : f32
    %8 = vector.broadcast %cst_6 : f32 to vector<640x256xf32>
    %9 = arith.mulf %8, %5 : vector<640x256xf32>
    %10 = arith.select %7, %5, %9 : vector<640x256xi1>, vector<640x256xf32>
    %c0_7 = arith.constant 0 : index
    %c0_8 = arith.constant 0 : index
    %11 = vector.load %arg5[%c0_7, %c0_8] : memref<640x640xf32, #tpu.memory_space<vmem>>, vector<640x640xf32>
    %cst_9 = arith.constant dense<0.000000e+00> : vector<640x256xf32>
    %12 = tpu.matmul %11, %10, %cst_9 {dimension_numbers = #tpu.dot_dimension_numbers<[1], [0], [0], [1], [0, 0, 1, 1], [], []>} : vector<640x640xf32>, vector<640x256xf32>, vector<640x256xf32> -> vector<640x256xf32>
    %c0_10 = arith.constant 0 : index
    %c0_11 = arith.constant 0 : index
    %13 = vector.load %arg6[%c0_10, %c0_11] : memref<640x1xf32, #tpu.memory_space<vmem>>, vector<640x1xf32>
    %14 = vector.broadcast %13 : vector<640x1xf32> to vector<640x256xf32>
    %15 = arith.addf %12, %14 : vector<640x256xf32>
    %cst_12 = arith.constant 0.000000e+00 : f32
    %16 = vector.broadcast %cst_12 : f32 to vector<640x256xf32>
    %17 = arith.cmpf ogt, %15, %16 : vector<640x256xf32>
    %cst_13 = arith.constant 0.00999999977 : f32
    %18 = vector.broadcast %cst_13 : f32 to vector<640x256xf32>
    %19 = arith.mulf %18, %15 : vector<640x256xf32>
    %20 = arith.select %17, %15, %19 : vector<640x256xi1>, vector<640x256xf32>
    %c0_14 = arith.constant 0 : index
    %c0_15 = arith.constant 0 : index
    %21 = vector.load %arg7[%c0_14, %c0_15] : memref<8x640xf32, #tpu.memory_space<vmem>>, vector<8x640xf32>
    %cst_16 = arith.constant dense<0.000000e+00> : vector<8x256xf32>
    %22 = tpu.matmul %21, %20, %cst_16 {dimension_numbers = #tpu.dot_dimension_numbers<[1], [0], [0], [1], [0, 0, 1, 1], [], []>} : vector<8x640xf32>, vector<640x256xf32>, vector<8x256xf32> -> vector<8x256xf32>
    %c0_17 = arith.constant 0 : index
    %c0_18 = arith.constant 0 : index
    %23 = vector.load %arg8[%c0_17, %c0_18] : memref<8x1xf32, #tpu.memory_space<vmem>>, vector<8x1xf32>
    %24 = vector.broadcast %23 : vector<8x1xf32> to vector<8x256xf32>
    %25 = arith.addf %22, %24 : vector<8x256xf32>
    %26 = vector.extract_strided_slice %25 {offsets = [0, 0], sizes = [4, 256], strides = [1, 1]} : vector<8x256xf32> to vector<4x256xf32>
    %27 = vector.extract_strided_slice %25 {offsets = [4, 0], sizes = [4, 256], strides = [1, 1]} : vector<8x256xf32> to vector<4x256xf32>
    %28 = math.absf %27 : vector<4x256xf32>
    %cst_19 = arith.constant 1.100000e-01 : f32
    %29 = vector.broadcast %cst_19 : f32 to vector<4x256xf32>
    %30 = arith.maximumf %28, %29 : vector<4x256xf32>
    %c0_20 = arith.constant 0 : index
    %c0_21 = arith.constant 0 : index
    %31 = vector.load %arg2[%c0_20, %c0_21] : memref<4x256xf32, #tpu.memory_space<vmem>>, vector<4x256xf32>
    %32 = arith.subf %31, %26 : vector<4x256xf32>
    %cst_22 = arith.constant 1.000000e+00 : f32
    %33 = vector.broadcast %cst_22 : f32 to vector<4x256xf32>
    %34 = arith.divf %33, %30 : vector<4x256xf32>
    %cst_23 = arith.constant 5.000000e-01 : f32
    %35 = vector.broadcast %cst_23 : f32 to vector<4x256xf32>
    %36 = arith.addf %32, %35 : vector<4x256xf32>
    %cst_24 = arith.constant 5.000000e-01 : f32
    %37 = vector.broadcast %cst_24 : f32 to vector<4x256xf32>
    %38 = arith.mulf %37, %36 : vector<4x256xf32>
    %39 = arith.mulf %38, %34 : vector<4x256xf32>
    %40 = math.tanh %39 : vector<4x256xf32>
    %cst_25 = arith.constant 5.000000e-01 : f32
    %41 = vector.broadcast %cst_25 : f32 to vector<4x256xf32>
    %42 = arith.subf %32, %41 : vector<4x256xf32>
    %cst_26 = arith.constant 5.000000e-01 : f32
    %43 = vector.broadcast %cst_26 : f32 to vector<4x256xf32>
    %44 = arith.mulf %43, %42 : vector<4x256xf32>
    %45 = arith.mulf %44, %34 : vector<4x256xf32>
    %46 = math.tanh %45 : vector<4x256xf32>
    %47 = arith.subf %40, %46 : vector<4x256xf32>
    %cst_27 = arith.constant 5.000000e-01 : f32
    %48 = vector.broadcast %cst_27 : f32 to vector<4x256xf32>
    %49 = arith.mulf %48, %47 : vector<4x256xf32>
    %c0_28 = arith.constant 0 : index
    %c0_29 = arith.constant 0 : index
    %50 = vector.load %arg9[%c0_28, %c0_29] : memref<4x256xf32, #tpu.memory_space<vmem>>, vector<4x256xf32>
    tpu.vector_store %arg9[%c0_28, %c0_29], %49 {strides = array<i32>} : memref<4x256xf32, #tpu.memory_space<vmem>>, vector<4x256xf32>,
    return
  }
  func.func @transform_0(%arg0: i32) -> (i32, i32) {
    %c0_i32 = arith.constant 0 : i32
    %c0_i32_0 = arith.constant 0 : i32
    return %c0_i32, %arg0 : i32, i32
  }
  func.func @transform_1(%arg0: i32) -> (i32, i32) {
    %c0_i32 = arith.constant 0 : i32
    %c0_i32_0 = arith.constant 0 : i32
    return %c0_i32, %arg0 : i32, i32
  }
  func.func @transform_2(%arg0: i32) -> (i32, i32) {
    %c0_i32 = arith.constant 0 : i32
    %c0_i32_0 = arith.constant 0 : i32
    %c0_i32_1 = arith.constant 0 : i32
    return %c0_i32, %c0_i32_0 : i32, i32
  }
  func.func @transform_3(%arg0: i32) -> (i32, i32) {
    %c0_i32 = arith.constant 0 : i32
    %c0_i32_0 = arith.constant 0 : i32
    %c0_i32_1 = arith.constant 0 : i32
    return %c0_i32, %c0_i32_0 : i32, i32
  }
  func.func @transform_4(%arg0: i32) -> (i32, i32) {
    %c0_i32 = arith.constant 0 : i32
    %c0_i32_0 = arith.constant 0 : i32
    %c0_i32_1 = arith.constant 0 : i32
    return %c0_i32, %c0_i32_0 : i32, i32
  }
  func.func @transform_5(%arg0: i32) -> (i32, i32) {
    %c0_i32 = arith.constant 0 : i32
    %c0_i32_0 = arith.constant 0 : i32
    %c0_i32_1 = arith.constant 0 : i32
    return %c0_i32, %c0_i32_0 : i32, i32
  }
  func.func @transform_6(%arg0: i32) -> (i32, i32) {
    %c0_i32 = arith.constant 0 : i32
    %c0_i32_0 = arith.constant 0 : i32
    %c0_i32_1 = arith.constant 0 : i32
    return %c0_i32, %c0_i32_0 : i32, i32
  }
  func.func @transform_7(%arg0: i32) -> (i32, i32) {
    %c0_i32 = arith.constant 0 : i32
    %c0_i32_0 = arith.constant 0 : i32
    %c0_i32_1 = arith.constant 0 : i32
    return %c0_i32, %c0_i32_0 : i32, i32
  }
  func.func @transform_8(%arg0: i32) -> (i32, i32) {
    %c0_i32 = arith.constant 0 : i32
    %c0_i32_0 = arith.constant 0 : i32
    return %c0_i32, %arg0 : i32, i32
  }
}

</mosaic_0001>

<llo_original>
// kernel: context_model_forward.1
$region0: #{context_model_forward.1}
  #allocation0 [shape = 'u32[]', space=smem, size = 0x4, offset = 0x4, fixed_abs, tag = 'smem constant byte address 0x4 - core index']
  #allocation1 [shape = 'u32[72,128]{1,0:T(1,128)}', space=vmem, size = 0x9000, scoped, tag = 'internal scratch']
  %s0 = inlined_call_operand.vmem [shape: f32[56,512], index: 0, kind: input, shape index: {}]
  %s1 = inlined_call_operand.vmem [shape: f32[4,512], index: 1, kind: input, shape index: {}]
  %s2 = inlined_call_operand.vmem [shape: f32[640,56], index: 2, kind: input, shape index: {}]
  %s3 = inlined_call_operand.vmem [shape: f32[640,1], index: 3, kind: input, shape index: {}]
  %s4 = inlined_call_operand.vmem [shape: f32[640,640], index: 4, kind: input, shape index: {}]
  %s5 = inlined_call_operand.vmem [shape: f32[640,1], index: 5, kind: input, shape index: {}]
  %s6 = inlined_call_operand.vmem [shape: f32[8,640], index: 6, kind: input, shape index: {}]
  %s7 = inlined_call_operand.vmem [shape: f32[8,1], index: 7, kind: input, shape index: {}]
  %s8 = inlined_call_operand.vmem [shape: f32[4,512], index: 8, kind: output, shape index: {}]
  %s9 = sld [smem:[#allocation0]]
  $region88: #{context_model_forward.1} parent=0
    _
  %s11 = ssub.s32 1, %s9
  %s12 = scalar_select 0, %s11, %s9
  $region1: #{context_model_forward.1} parent=0
    #allocation2 [shape = 'u8[114688]{0}', space=vmem, size = 0x1c000, scoped, tag = 'input window, operand 0']
    loop: start=0, step=1, limit=4
    $region2: #{context_model_forward.1} parent=1 // loop_pre_header
      _
    $region3: #{context_model_forward.1} parent=1 // loop_header
      %s14 = sphi 0, %s18
      %p15 = scmp.ge.s32.totalorder %s14, 4
      %s24 = sphi 0, %s26
      %s27 = sphi 0, %s24
      %s28 = sphi 0, %s27
      %s44 = sphi 0, %s28
      %s50 = sphi 0, %s52
      %s53 = sphi 0, %s50
      %s54 = sphi 0, %s53
      %s70 = sphi 0, %s54
      %s74 = sphi 0, %s74
      %s76 = sphi 0, %s74
      %s77 = sphi 0, %s76
      %s91 = sphi 0, %s77
      %s95 = sphi 0, %s95
      %s97 = sphi 0, %s95
      %s98 = sphi 0, %s97
      %s112 = sphi 0, %s98
      %s116 = sphi 0, %s116
      %s118 = sphi 0, %s116
      %s119 = sphi 0, %s118
      %s133 = sphi 0, %s119
      %s137 = sphi 0, %s137
      %s139 = sphi 0, %s137
      %s140 = sphi 0, %s139
      %s154 = sphi 0, %s140
      %s158 = sphi 0, %s158
      %s160 = sphi 0, %s158
      %s161 = sphi 0, %s160
      %s175 = sphi 0, %s161
      %s179 = sphi 0, %s179
      %s181 = sphi 0, %s179
      %s182 = sphi 0, %s181
      %s196 = sphi 0, %s182
      %s202 = sphi 0, %s204
      %s205 = sphi 0, %s202
      %s206 = sphi 0, %s205
      %s222 = sphi 0, %s206
    $region4: #{context_model_forward.1} parent=1 // loop_header_branch
      %17 = sbr.rel (%p15) target = $region8
    $region5: #{context_model_forward.1} parent=1 // loop_body
      %s19 = ssub.s32 %s14, 1
      %s20 = ssub.s32 %s14, 2
      %s21 = sadd.s32 %s14, 1
      %s22 = ssub.s32 %s14, %s21
      %p23 = scmp.eq.s32.totalorder %s22, 0
      %s25 = sadd.s32 %s24, 1
      %s26 = scalar_select %p23, %s24, %s25
      %p29 = pneg %p23
      %p30 = scmp.eq.s32.totalorder %s14, 1
      %p31 = por %p29, %p30
      %p32 = scmp.ne.s32.totalorder %s24, %s27
      %p33 = scmp.eq.s32.totalorder %s14, 0
      %p34 = por %p32, %p33
      %p35 = scmp.ne.s32.totalorder %s24, %s27
      %p36 = scmp.eq.s32.totalorder %s19, 1
      %p37 = por %p35, %p36
      %p38 = scmp.ne.s32.totalorder %s27, %s28
      %p39 = scmp.eq.s32.totalorder %s19, 0
      %p40 = por %p38, %p39
      %p41 = scmp.ne.s32.totalorder %s27, %s28
      %p42 = scmp.eq.s32.totalorder %s20, 1
      %p43 = por %p41, %p42
      %p45 = scmp.ne.s32.totalorder %s28, %s44
      %p46 = scmp.eq.s32.totalorder %s20, 0
      %p47 = por %p45, %p46
      %s48 = ssub.s32 %s14, %s21
      %p49 = scmp.eq.s32.totalorder %s48, 0
      %s51 = sadd.s32 %s50, 1
      %s52 = scalar_select %p49, %s50, %s51
      %p55 = pneg %p49
      %p56 = scmp.eq.s32.totalorder %s14, 1
      %p57 = por %p55, %p56
      %p58 = scmp.ne.s32.totalorder %s50, %s53
      %p59 = scmp.eq.s32.totalorder %s14, 0
      %p60 = por %p58, %p59
      %p61 = scmp.ne.s32.totalorder %s50, %s53
      %p62 = scmp.eq.s32.totalorder %s19, 1
      %p63 = por %p61, %p62
      %p64 = scmp.ne.s32.totalorder %s53, %s54
      %p65 = scmp.eq.s32.totalorder %s19, 0
      %p66 = por %p64, %p65
      %p67 = scmp.ne.s32.totalorder %s53, %s54
      %p68 = scmp.eq.s32.totalorder %s20, 1
      %p69 = por %p67, %p68
      %p71 = scmp.ne.s32.totalorder %s54, %s70
      %p72 = scmp.eq.s32.totalorder %s20, 0
      %p73 = por %p71, %p72
      %s75 = sadd.s32 %s74, 1
      %p78 = scmp.eq.s32.totalorder %s14, 1
      %p79 = scmp.ne.s32.totalorder %s74, %s76
      %p80 = scmp.eq.s32.totalorder %s14, 0
      %p81 = por %p79, %p80
      %p82 = scmp.ne.s32.totalorder %s74, %s76
      %p83 = scmp.eq.s32.totalorder %s19, 1
      %p84 = por %p82, %p83
      %p85 = scmp.ne.s32.totalorder %s76, %s77
      %p86 = scmp.eq.s32.totalorder %s19, 0
      %p87 = por %p85, %p86
      %p88 = scmp.ne.s32.totalorder %s76, %s77
      %p89 = scmp.eq.s32.totalorder %s20, 1
      %p90 = por %p88, %p89
      %p92 = scmp.ne.s32.totalorder %s77, %s91
      %p93 = scmp.eq.s32.totalorder %s20, 0
      %p94 = por %p92, %p93
      %s96 = sadd.s32 %s95, 1
      %p99 = scmp.eq.s32.totalorder %s14, 1
      %p100 = scmp.ne.s32.totalorder %s95, %s97
      %p101 = scmp.eq.s32.totalorder %s14, 0
      %p102 = por %p100, %p101
      %p103 = scmp.ne.s32.totalorder %s95, %s97
      %p104 = scmp.eq.s32.totalorder %s19, 1
      %p105 = por %p103, %p104
      %p106 = scmp.ne.s32.totalorder %s97, %s98
      %p107 = scmp.eq.s32.totalorder %s19, 0
      %p108 = por %p106, %p107
      %p109 = scmp.ne.s32.totalorder %s97, %s98
      %p110 = scmp.eq.s32.totalorder %s20, 1
      %p111 = por %p109, %p110
      %p113 = scmp.ne.s32.totalorder %s98, %s112
      %p114 = scmp.eq.s32.totalorder %s20, 0
      %p115 = por %p113, %p114
      %s117 = sadd.s32 %s116, 1
      %p120 = scmp.eq.s32.totalorder %s14, 1
      %p121 = scmp.ne.s32.totalorder %s116, %s118
      %p122 = scmp.eq.s32.totalorder %s14, 0
      %p123 = por %p121, %p122
      %p124 = scmp.ne.s32.totalorder %s116, %s118
      %p125 = scmp.eq.s32.totalorder %s19, 1
      %p126 = por %p124, %p125
      %p127 = scmp.ne.s32.totalorder %s118, %s119
      %p128 = scmp.eq.s32.totalorder %s19, 0
      %p129 = por %p127, %p128
      %p130 = scmp.ne.s32.totalorder %s118, %s119
      %p131 = scmp.eq.s32.totalorder %s20, 1
      %p132 = por %p130, %p131
      %p134 = scmp.ne.s32.totalorder %s119, %s133
      %p135 = scmp.eq.s32.totalorder %s20, 0
      %p136 = por %p134, %p135
      %s138 = sadd.s32 %s137, 1
      %p141 = scmp.eq.s32.totalorder %s14, 1
      %p142 = scmp.ne.s32.totalorder %s137, %s139
      %p143 = scmp.eq.s32.totalorder %s14, 0
      %p144 = por %p142, %p143
      %p145 = scmp.ne.s32.totalorder %s137, %s139
      %p146 = scmp.eq.s32.totalorder %s19, 1
      %p147 = por %p145, %p146
      %p148 = scmp.ne.s32.totalorder %s139, %s140
      %p149 = scmp.eq.s32.totalorder %s19, 0
      %p150 = por %p148, %p149
      %p151 = scmp.ne.s32.totalorder %s139, %s140
      %p152 = scmp.eq.s32.totalorder %s20, 1
      %p153 = por %p151, %p152
      %p155 = scmp.ne.s32.totalorder %s140, %s154
      %p156 = scmp.eq.s32.totalorder %s20, 0
      %p157 = por %p155, %p156
      %s159 = sadd.s32 %s158, 1
      %p162 = scmp.eq.s32.totalorder %s14, 1
      %p163 = scmp.ne.s32.totalorder %s158, %s160
      %p164 = scmp.eq.s32.totalorder %s14, 0
      %p165 = por %p163, %p164
      %p166 = scmp.ne.s32.totalorder %s158, %s160
      %p167 = scmp.eq.s32.totalorder %s19, 1
      %p168 = por %p166, %p167
      %p169 = scmp.ne.s32.totalorder %s160, %s161
      %p170 = scmp.eq.s32.totalorder %s19, 0
      %p171 = por %p169, %p170
      %p172 = scmp.ne.s32.totalorder %s160, %s161
      %p173 = scmp.eq.s32.totalorder %s20, 1
      %p174 = por %p172, %p173
      %p176 = scmp.ne.s32.totalorder %s161, %s175
      %p177 = scmp.eq.s32.totalorder %s20, 0
      %p178 = por %p176, %p177
      %s180 = sadd.s32 %s179, 1
      %p183 = scmp.eq.s32.totalorder %s14, 1
      %p184 = scmp.ne.s32.totalorder %s179, %s181
      %p185 = scmp.eq.s32.totalorder %s14, 0
      %p186 = por %p184, %p185
      %p187 = scmp.ne.s32.totalorder %s179, %s181
      %p188 = scmp.eq.s32.totalorder %s19, 1
      %p189 = por %p187, %p188
      %p190 = scmp.ne.s32.totalorder %s181, %s182
      %p191 = scmp.eq.s32.totalorder %s19, 0
      %p192 = por %p190, %p191
      %p193 = scmp.ne.s32.totalorder %s181, %s182
      %p194 = scmp.eq.s32.totalorder %s20, 1
      %p195 = por %p193, %p194
      %p197 = scmp.ne.s32.totalorder %s182, %s196
      %p198 = scmp.eq.s32.totalorder %s20, 0
      %p199 = por %p197, %p198
      %s200 = ssub.s32 %s14, %s21
      %p201 = scmp.eq.s32.totalorder %s200, 0
      %s203 = sadd.s32 %s202, 1
      %s204 = scalar_select %p201, %s202, %s203
      %p207 = pneg %p201
      %p208 = scmp.eq.s32.totalorder %s14, 1
      %p209 = por %p207, %p208
      %p210 = scmp.ne.s32.totalorder %s202, %s205
      %p211 = scmp.eq.s32.totalorder %s14, 0
      %p212 = por %p210, %p211
      %p213 = scmp.ne.s32.totalorder %s202, %s205
      %p214 = scmp.eq.s32.totalorder %s19, 1
      %p215 = por %p213, %p214
      %p216 = scmp.ne.s32.totalorder %s205, %s206
      %p217 = scmp.eq.s32.totalorder %s19, 0
      %p218 = por %p216, %p217
      %p219 = scmp.ne.s32.totalorder %s205, %s206
      %p220 = scmp.eq.s32.totalorder %s20, 1
      %p221 = por %p219, %p220
      %p223 = scmp.ne.s32.totalorder %s206, %s222
      %p224 = scmp.eq.s32.totalorder %s20, 0
      %p225 = por %p223, %p224
      %p226 = scmp.le.s32.totalorder 1, %s14
      %p227 = scmp.lt.s32.totalorder %s14, 3
      %p228 = pnand %p226, %p227
      %p229 = pneg %p228
      // Predicated region
      $region9: #{context_model_forward.1} parent=5 // pred_check
        _
      $region10: #{context_model_forward.1} parent=5 // pred_check_branch
        %231 = sbr.rel (%p228) target = $region12
      $region11: #{context_model_forward.1} parent=5 // pred_region
        %s232 = ssub.s32 %s14, 1
        // Predicated region
        $region13: #{context_model_forward.1} parent=11 // pred_check
          %p233 = pneg %p87
        $region14: #{context_model_forward.1} parent=11 // pred_check_branch
          %235 = sbr.rel (%p233) target = $region16
        $region15: #{context_model_forward.1} parent=11 // pred_region
          _
        $region16: #{context_model_forward.1} parent=11 // pred_fallthru
          _
        // Predicated region
        $region17: #{context_model_forward.1} parent=11 // pred_check
          %p236 = pneg %p108
        $region18: #{context_model_forward.1} parent=11 // pred_check_branch
          %238 = sbr.rel (%p236) target = $region20
        $region19: #{context_model_forward.1} parent=11 // pred_region
          _
        $region20: #{context_model_forward.1} parent=11 // pred_fallthru
          _
        // Predicated region
        $region21: #{context_model_forward.1} parent=11 // pred_check
          %p239 = pneg %p129
        $region22: #{context_model_forward.1} parent=11 // pred_check_branch
          %241 = sbr.rel (%p239) target = $region24
        $region23: #{context_model_forward.1} parent=11 // pred_region
          _
        $region24: #{context_model_forward.1} parent=11 // pred_fallthru
          _
        // Predicated region
        $region25: #{context_model_forward.1} parent=11 // pred_check
          %p242 = pneg %p150
        $region26: #{context_model_forward.1} parent=11 // pred_check_branch
          %244 = sbr.rel (%p242) target = $region28
        $region27: #{context_model_forward.1} parent=11 // pred_region
          _
        $region28: #{context_model_forward.1} parent=11 // pred_fallthru
          _
        // Predicated region
        $region29: #{context_model_forward.1} parent=11 // pred_check
          %p245 = pneg %p171
        $region30: #{context_model_forward.1} parent=11 // pred_check_branch
          %247 = sbr.rel (%p245) target = $region32
        $region31: #{context_model_forward.1} parent=11 // pred_region
          _
        $region32: #{context_model_forward.1} parent=11 // pred_fallthru
          _
        // Predicated region
        $region33: #{context_model_forward.1} parent=11 // pred_check
          %p248 = pneg %p192
        $region34: #{context_model_forward.1} parent=11 // pred_check_branch
          %250 = sbr.rel (%p248) target = $region36
        $region35: #{context_model_forward.1} parent=11 // pred_region
          _
        $region36: #{context_model_forward.1} parent=11 // pred_fallthru
          _
      $region12: #{context_model_forward.1} parent=5 // pred_fallthru
        _
      %p251 = scmp.lt.s32.totalorder %s14, 2
      // Predicated region
      $region37: #{context_model_forward.1} parent=5 // pred_check
        %p252 = pneg %p251
      $region38: #{context_model_forward.1} parent=5 // pred_check_branch
        %254 = sbr.rel (%p252) target = $region40
      $region39: #{context_model_forward.1} parent=5 // pred_region
        // Predicated region
        $region41: #{context_model_forward.1} parent=39 // pred_check
          %p255 = pneg %p34
        $region42: #{context_model_forward.1} parent=39 // pred_check_branch
          %257 = sbr.rel (%p255) target = $region44
        $region43: #{context_model_forward.1} parent=39 // pred_region
          %s258 = sand.u32 %s24, 1
          %s259 = sand.u32 %s24, 1
          %s260 = smul.addr %s259, 112
          %s261 = scalar_lea.vmem [#allocation2], %s260
          %s262 = smul.u32 2, %s14
          %s263 = smul.addr %s262, 8
          %s264 = scalar_lea.vmem %s0, %s263
          // Predicated region
          $region45: #{context_model_forward.1} parent=43 // pred_check
            _
          $region46: #{context_model_forward.1} parent=43 // pred_check_branch
            %266 = sbr.rel (0) target = $region48
          $region47: #{context_model_forward.1} parent=43 // pred_region
            // Predicated region
            $region49: #{context_model_forward.1} parent=47 // pred_check
              _
            $region50: #{context_model_forward.1} parent=47 // pred_check_branch
              %268 = sbr.rel (0) target = $region52
            $region51: #{context_model_forward.1} parent=47 // pred_region
              loop: start=0, step=1, limit=1
              $region53: #{context_model_forward.1} parent=51 // loop_pre_header
                _
              $region54: #{context_model_forward.1} parent=51 // loop_header
                %s270 = sphi 0, %s274
                %p271 = scmp.ge.s32.totalorder %s270, 1
                %s275 = sphi %s264, %s264
                %s276 = sphi %s261, %s261
              $region55: #{context_model_forward.1} parent=51 // loop_header_branch
                %273 = sbr.rel (%p271) target = $region59
              $region56: #{context_model_forward.1} parent=51 // loop_body
                %v277 = vld [vmem:[%s275] sm:$0xff]
                %278 = vst [vmem:[%s276] sm:$0xff] %v277
                %v279 = vld [vmem:[%s275 + $0x8] sm:$0xff]
                %280 = vst [vmem:[%s276 + $0x8] sm:$0xff] %v279
                %v281 = vld [vmem:[%s275 + $0x20] sm:$0xff]
                %282 = vst [vmem:[%s276 + $0x10] sm:$0xff] %v281
                %v283 = vld [vmem:[%s275 + $0x28] sm:$0xff]
                %284 = vst [vmem:[%s276 + $0x18] sm:$0xff] %v283
                %v285 = vld [vmem:[%s275 + $0x40] sm:$0xff]
                %286 = vst [vmem:[%s276 + $0x20] sm:$0xff] %v285
                %v287 = vld [vmem:[%s275 + $0x48] sm:$0xff]
                %288 = vst [vmem:[%s276 + $0x28] sm:$0xff] %v287
                %v289 = vld [vmem:[%s275 + $0x60] sm:$0xff]
                %290 = vst [vmem:[%s276 + $0x30] sm:$0xff] %v289
                %v291 = vld [vmem:[%s275 + $0x68] sm:$0xff]
                %292 = vst [vmem:[%s276 + $0x38] sm:$0xff] %v291
                %v293 = vld [vmem:[%s275 + $0x80] sm:$0xff]
                %294 = vst [vmem:[%s276 + $0x40] sm:$0xff] %v293
                %v295 = vld [vmem:[%s275 + $0x88] sm:$0xff]
                %296 = vst [vmem:[%s276 + $0x48] sm:$0xff] %v295
                %v297 = vld [vmem:[%s275 + $0xa0] sm:$0xff]
                %298 = vst [vmem:[%s276 + $0x50] sm:$0xff] %v297
                %v299 = vld [vmem:[%s275 + $0xa8] sm:$0xff]
                %300 = vst [vmem:[%s276 + $0x58] sm:$0xff] %v299
                %v301 = vld [vmem:[%s275 + $0xc0] sm:$0xff]
                %302 = vst [vmem:[%s276 + $0x60] sm:$0xff] %v301
                %v303 = vld [vmem:[%s275 + $0xc8] sm:$0xff]
                %304 = vst [vmem:[%s276 + $0x68] sm:$0xff] %v303
              $region57: #{context_model_forward.1} parent=51 // loop_footer
                %s274 = sadd.s32 1, %s270
              $region58: #{context_model_forward.1} parent=51 // loop_footer_branch
                %269 = sbr.rel target = $region54
              $region59: #{context_model_forward.1} parent=51 // loop_exit
                _
            $region52: #{context_model_forward.1} parent=47 // pred_fallthru
              _
            // Predicated region
            $region60: #{context_model_forward.1} parent=47 // pred_check
              _
            $region61: #{context_model_forward.1} parent=47 // pred_check_branch
              %306 = sbr.rel target = $region63
            $region62: #{context_model_forward.1} parent=47 // pred_region
              _
            $region63: #{context_model_forward.1} parent=47 // pred_fallthru
              _
          $region48: #{context_model_forward.1} parent=43 // pred_fallthru
            _
          %307 = vnop
        $region44: #{context_model_forward.1} parent=39 // pred_fallthru
          _
        // Predicated region
        $region64: #{context_model_forward.1} parent=39 // pred_check
          %p308 = pneg %p60
        $region65: #{context_model_forward.1} parent=39 // pred_check_branch
          %310 = sbr.rel (%p308) target = $region67
        $region66: #{context_model_forward.1} parent=39 // pred_region
          %s311 = smul.u32 2, %s14
          %p312 = scmp.lt.s32.totalorder %s311, 3
          %s313 = scalar_select %p312, %s311, 3
          %s314 = smul.addr %s313, 4
          %s315 = scalar_lea.vmem %s1, %s314
          %s316 = smul.u32 2, %s14
        $region67: #{context_model_forward.1} parent=39 // pred_fallthru
          _
      $region40: #{context_model_forward.1} parent=5 // pred_fallthru
        _
      %p317 = scmp.le.s32.totalorder 1, %s14
      %p318 = scmp.lt.s32.totalorder %s14, 3
      %p319 = pnand %p317, %p318
      %p320 = pneg %p319
      // Predicated region
      $region68: #{context_model_forward.1} parent=5 // pred_check
        _
      $region69: #{context_model_forward.1} parent=5 // pred_check_branch
        %322 = sbr.rel (%p319) target = $region71
      $region70: #{context_model_forward.1} parent=5 // pred_region
        %s323 = ssub.s32 %s14, 1
        %s324 = sand.u32 %s27, 1
        %s325 = sand.u32 %s27, 1
        %s326 = smul.addr %s325, 112
        %s327 = scalar_lea.vmem [#allocation2], %s326
        // Predicated region
        $region72: #{context_model_forward.1} parent=70 // pred_check
          %p328 = pneg %p40
        $region73: #{context_model_forward.1} parent=70 // pred_check_branch
          %330 = sbr.rel (%p328) target = $region75
        $region74: #{context_model_forward.1} parent=70 // pred_region
          _
        $region75: #{context_model_forward.1} parent=70 // pred_fallthru
          _
        %s331 = sand.u32 %s27, 1
        %s332 = sand.u32 %s27, 1
        %s333 = smul.addr %s332, 112
        %s334 = scalar_lea.vmem [#allocation2], %s333
        %p335 = pneg %p40
        %p336 = pneg %p37
        %s337 = smul.u32 2, %s19
        %p338 = scmp.lt.s32.totalorder %s337, 3
        %s339 = scalar_select %p338, %s337, 3
        %s340 = smul.addr %s339, 4
        %s341 = scalar_lea.vmem %s1, %s340
        %p342 = pneg %p66
        %p343 = pneg %p63
        %p344 = pneg %p87
        %p345 = pneg %p84
        %p346 = pneg %p108
        %p347 = pneg %p105
        %p348 = pneg %p129
        %p349 = pneg %p126
        %p350 = pneg %p150
        %p351 = pneg %p147
        %p352 = pneg %p171
        %p353 = pneg %p168
        %p354 = pneg %p192
        %p355 = pneg %p189
        %p356 = pneg %p218
        %p357 = pneg %p215
        %s358 = smul.u32 2, %s19
        %p359 = scmp.lt.s32.totalorder %s358, 3
        %s360 = scalar_select %p359, %s358, 3
        %s361 = smul.addr %s360, 4
        %s362 = scalar_lea.vmem %s8, %s361
        %s363 = smul.u32 2, %s19
        %s364 = smul.u32 2, %s19
        %p365 = scmp.lt.s32.totalorder %s364, 3
        %s366 = scalar_select %p365, %s364, 3
        %s367 = smul.addr %s366, 4
        %s368 = scalar_lea.vmem %s1, %s367
        %s369 = smul.u32 2, %s19
        %s370 = smul.u32 2, %s19
        %p371 = scmp.lt.s32.totalorder %s370, 3
        %s372 = scalar_select %p371, %s370, 3
        %s373 = smul.addr %s372, 4
        %s374 = scalar_lea.vmem %s8, %s373
        %s375 = smul.u32 2, %s19
        %v376 = vld [vmem:[%s2] sm:$0xff]
        %v377 = vld [vmem:[%s2 + $0x8] sm:$0xff]
        %v378 = vld [vmem:[%s2 + $0x10] sm:$0xff]
        %v379 = vld [vmem:[%s2 + $0x18] sm:$0xff]
        %v380 = vld [vmem:[%s2 + $0x20] sm:$0xff]
        %v381 = vld [vmem:[%s2 + $0x28] sm:$0xff]
        %v382 = vld [vmem:[%s2 + $0x30] sm:$0xff]
        %v383 = vld [vmem:[%s2 + $0x38] sm:$0xff]
        %v384 = vld [vmem:[%s2 + $0x40] sm:$0xff]
        %v385 = vld [vmem:[%s2 + $0x48] sm:$0xff]
        %v386 = vld [vmem:[%s2 + $0x50] sm:$0xff]
        %v387 = vld [vmem:[%s2 + $0x58] sm:$0xff]
        %v388 = vld [vmem:[%s2 + $0x60] sm:$0xff]
        %v389 = vld [vmem:[%s2 + $0x68] sm:$0xff]
        %v390 = vld [vmem:[%s2 + $0x70] sm:$0xff]
        %v391 = vld [vmem:[%s2 + $0x78] sm:$0xff]
        %v392 = vld [vmem:[%s2 + $0x80] sm:$0xff]
        %v393 = vld [vmem:[%s2 + $0x88] sm:$0xff]
        %v394 = vld [vmem:[%s2 + $0x90] sm:$0xff]
        %v395 = vld [vmem:[%s2 + $0x98] sm:$0xff]
        %v396 = vld [vmem:[%s2 + $0xa0] sm:$0xff]
        %v397 = vld [vmem:[%s2 + $0xa8] sm:$0xff]
        %v398 = vld [vmem:[%s2 + $0xb0] sm:$0xff]
        %v399 = vld [vmem:[%s2 + $0xb8] sm:$0xff]
        %v400 = vld [vmem:[%s2 + $0xc0] sm:$0xff]
        %v401 = vld [vmem:[%s2 + $0xc8] sm:$0xff]
        %v402 = vld [vmem:[%s2 + $0xd0] sm:$0xff]
        %v403 = vld [vmem:[%s2 + $0xd8] sm:$0xff]
        %v404 = vld [vmem:[%s2 + $0xe0] sm:$0xff]
        %v405 = vld [vmem:[%s2 + $0xe8] sm:$0xff]
        %v406 = vld [vmem:[%s2 + $0xf0] sm:$0xff]
        %v407 = vld [vmem:[%s2 + $0xf8] sm:$0xff]
        %v408 = vld [vmem:[%s2 + $0x100] sm:$0xff]
        %v409 = vld [vmem:[%s2 + $0x108] sm:$0xff]
        %v410 = vld [vmem:[%s2 + $0x110] sm:$0xff]
        %v411 = vld [vmem:[%s2 + $0x118] sm:$0xff]
        %v412 = vld [vmem:[%s2 + $0x120] sm:$0xff]
        %v413 = vld [vmem:[%s2 + $0x128] sm:$0xff]
        %v414 = vld [vmem:[%s2 + $0x130] sm:$0xff]
        %v415 = vld [vmem:[%s2 + $0x138] sm:$0xff]
        %v416 = vld [vmem:[%s2 + $0x140] sm:$0xff]
        %v417 = vld [vmem:[%s2 + $0x148] sm:$0xff]
        %v418 = vld [vmem:[%s2 + $0x150] sm:$0xff]
        %v419 = vld [vmem:[%s2 + $0x158] sm:$0xff]
        %v420 = vld [vmem:[%s2 + $0x160] sm:$0xff]
        %v421 = vld [vmem:[%s2 + $0x168] sm:$0xff]
        %v422 = vld [vmem:[%s2 + $0x170] sm:$0xff]
        %v423 = vld [vmem:[%s2 + $0x178] sm:$0xff]
        %v424 = vld [vmem:[%s2 + $0x180] sm:$0xff]
        %v425 = vld [vmem:[%s2 + $0x188] sm:$0xff]
        %v426 = vld [vmem:[%s2 + $0x190] sm:$0xff]
        %v427 = vld [vmem:[%s2 + $0x198] sm:$0xff]
        %v428 = vld [vmem:[%s2 + $0x1a0] sm:$0xff]
        %v429 = vld [vmem:[%s2 + $0x1a8] sm:$0xff]
        %v430 = vld [vmem:[%s2 + $0x1b0] sm:$0xff]
        %v431 = vld [vmem:[%s2 + $0x1b8] sm:$0xff]
        %v432 = vld [vmem:[%s2 + $0x1c0] sm:$0xff]
        %v433 = vld [vmem:[%s2 + $0x1c8] sm:$0xff]
        %v434 = vld [vmem:[%s2 + $0x1d0] sm:$0xff]
        %v435 = vld [vmem:[%s2 + $0x1d8] sm:$0xff]
        %v436 = vld [vmem:[%s2 + $0x1e0] sm:$0xff]
        %v437 = vld [vmem:[%s2 + $0x1e8] sm:$0xff]
        %v438 = vld [vmem:[%s2 + $0x1f0] sm:$0xff]
        %v439 = vld [vmem:[%s2 + $0x1f8] sm:$0xff]
        %v440 = vld [vmem:[%s2 + $0x200] sm:$0xff]
        %v441 = vld [vmem:[%s2 + $0x208] sm:$0xff]
        %v442 = vld [vmem:[%s2 + $0x210] sm:$0xff]
        %v443 = vld [vmem:[%s2 + $0x218] sm:$0xff]
        %v444 = vld [vmem:[%s2 + $0x220] sm:$0xff]
        %v445 = vld [vmem:[%s2 + $0x228] sm:$0xff]
        %v446 = vld [vmem:[%s2 + $0x230] sm:$0xff]
        %v447 = vld [vmem:[%s2 + $0x238] sm:$0xff]
        %v448 = vld [vmem:[%s2 + $0x240] sm:$0xff]
        %v449 = vld [vmem:[%s2 + $0x248] sm:$0xff]
        %v450 = vld [vmem:[%s2 + $0x250] sm:$0xff]
        %v451 = vld [vmem:[%s2 + $0x258] sm:$0xff]
        %v452 = vld [vmem:[%s2 + $0x260] sm:$0xff]
        %v453 = vld [vmem:[%s2 + $0x268] sm:$0xff]
        %v454 = vld [vmem:[%s2 + $0x270] sm:$0xff]
        %v455 = vld [vmem:[%s2 + $0x278] sm:$0xff]
        %v456 = vld [vmem:[%s327] sm:$0xff]
        %v457 = vld [vmem:[%s327 + $0x8] sm:$0xff]
        %v458 = vld [vmem:[%s327 + $0x10] sm:$0xff]
        %v459 = vld [vmem:[%s327 + $0x18] sm:$0xff]
        %v460 = vld [vmem:[%s327 + $0x20] sm:$0xff]
        %v461 = vld [vmem:[%s327 + $0x28] sm:$0xff]
        %v462 = vld [vmem:[%s327 + $0x30] sm:$0xff]
        %v463 = vld [vmem:[%s327 + $0x38] sm:$0xff]
        %v464 = vld [vmem:[%s327 + $0x40] sm:$0xff]
        %v465 = vld [vmem:[%s327 + $0x48] sm:$0xff]
        %v466 = vld [vmem:[%s327 + $0x50] sm:$0xff]
        %v467 = vld [vmem:[%s327 + $0x58] sm:$0xff]
        %v468 = vld [vmem:[%s327 + $0x60] sm:$0xff]
        %v469 = vld [vmem:[%s327 + $0x68] sm:$0xff]
        %v470 = vld [vmem:[%s3] sm:$0xff]
        %v471 = vld [vmem:[%s3 + $0x8] sm:$0xff]
        %v472 = vld [vmem:[%s3 + $0x10] sm:$0xff]
        %v473 = vld [vmem:[%s3 + $0x18] sm:$0xff]
        %v474 = vld [vmem:[%s3 + $0x20] sm:$0xff]
        %v475 = vld [vmem:[%s3 + $0x28] sm:$0xff]
        %v476 = vld [vmem:[%s3 + $0x30] sm:$0xff]
        %v477 = vld [vmem:[%s3 + $0x38] sm:$0xff]
        %v478 = vld [vmem:[%s3 + $0x40] sm:$0xff]
        %v479 = vld [vmem:[%s3 + $0x48] sm:$0xff]
        %v480 = vld [vmem:[%s3 + $0x50] sm:$0xff]
        %v481 = vld [vmem:[%s3 + $0x58] sm:$0xff]
        %v482 = vld [vmem:[%s3 + $0x60] sm:$0xff]
        %v483 = vld [vmem:[%s3 + $0x68] sm:$0xff]
        %v484 = vld [vmem:[%s3 + $0x70] sm:$0xff]
        %v485 = vld [vmem:[%s3 + $0x78] sm:$0xff]
        %v486 = vld [vmem:[%s3 + $0x80] sm:$0xff]
        %v487 = vld [vmem:[%s3 + $0x88] sm:$0xff]
        %v488 = vld [vmem:[%s3 + $0x90] sm:$0xff]
        %v489 = vld [vmem:[%s3 + $0x98] sm:$0xff]
        %v490 = vld [vmem:[%s3 + $0xa0] sm:$0xff]
        %v491 = vld [vmem:[%s3 + $0xa8] sm:$0xff]
        %v492 = vld [vmem:[%s3 + $0xb0] sm:$0xff]
        %v493 = vld [vmem:[%s3 + $0xb8] sm:$0xff]
        %v494 = vld [vmem:[%s3 + $0xc0] sm:$0xff]
        %v495 = vld [vmem:[%s3 + $0xc8] sm:$0xff]
        %v496 = vld [vmem:[%s3 + $0xd0] sm:$0xff]
        %v497 = vld [vmem:[%s3 + $0xd8] sm:$0xff]
        %v498 = vld [vmem:[%s3 + $0xe0] sm:$0xff]
        %v499 = vld [vmem:[%s3 + $0xe8] sm:$0xff]
        %v500 = vld [vmem:[%s3 + $0xf0] sm:$0xff]
        %v501 = vld [vmem:[%s3 + $0xf8] sm:$0xff]
        %v502 = vld [vmem:[%s3 + $0x100] sm:$0xff]
        %v503 = vld [vmem:[%s3 + $0x108] sm:$0xff]
        %v504 = vld [vmem:[%s3 + $0x110] sm:$0xff]
        %v505 = vld [vmem:[%s3 + $0x118] sm:$0xff]
        %v506 = vld [vmem:[%s3 + $0x120] sm:$0xff]
        %v507 = vld [vmem:[%s3 + $0x128] sm:$0xff]
        %v508 = vld [vmem:[%s3 + $0x130] sm:$0xff]
        %v509 = vld [vmem:[%s3 + $0x138] sm:$0xff]
        %v510 = vld [vmem:[%s3 + $0x140] sm:$0xff]
        %v511 = vld [vmem:[%s3 + $0x148] sm:$0xff]
        %v512 = vld [vmem:[%s3 + $0x150] sm:$0xff]
        %v513 = vld [vmem:[%s3 + $0x158] sm:$0xff]
        %v514 = vld [vmem:[%s3 + $0x160] sm:$0xff]
        %v515 = vld [vmem:[%s3 + $0x168] sm:$0xff]
        %v516 = vld [vmem:[%s3 + $0x170] sm:$0xff]
        %v517 = vld [vmem:[%s3 + $0x178] sm:$0xff]
        %v518 = vld [vmem:[%s3 + $0x180] sm:$0xff]
        %v519 = vld [vmem:[%s3 + $0x188] sm:$0xff]
        %v520 = vld [vmem:[%s3 + $0x190] sm:$0xff]
        %v521 = vld [vmem:[%s3 + $0x198] sm:$0xff]
        %v522 = vld [vmem:[%s3 + $0x1a0] sm:$0xff]
        %v523 = vld [vmem:[%s3 + $0x1a8] sm:$0xff]
        %v524 = vld [vmem:[%s3 + $0x1b0] sm:$0xff]
        %v525 = vld [vmem:[%s3 + $0x1b8] sm:$0xff]
        %v526 = vld [vmem:[%s3 + $0x1c0] sm:$0xff]
        %v527 = vld [vmem:[%s3 + $0x1c8] sm:$0xff]
        %v528 = vld [vmem:[%s3 + $0x1d0] sm:$0xff]
        %v529 = vld [vmem:[%s3 + $0x1d8] sm:$0xff]
        %v530 = vld [vmem:[%s3 + $0x1e0] sm:$0xff]
        %v531 = vld [vmem:[%s3 + $0x1e8] sm:$0xff]
        %v532 = vld [vmem:[%s3 + $0x1f0] sm:$0xff]
        %v533 = vld [vmem:[%s3 + $0x1f8] sm:$0xff]
        %v534 = vld [vmem:[%s3 + $0x200] sm:$0xff]
        %v535 = vld [vmem:[%s3 + $0x208] sm:$0xff]
        %v536 = vld [vmem:[%s3 + $0x210] sm:$0xff]
        %v537 = vld [vmem:[%s3 + $0x218] sm:$0xff]
        %v538 = vld [vmem:[%s3 + $0x220] sm:$0xff]
        %v539 = vld [vmem:[%s3 + $0x228] sm:$0xff]
        %v540 = vld [vmem:[%s3 + $0x230] sm:$0xff]
        %v541 = vld [vmem:[%s3 + $0x238] sm:$0xff]
        %v542 = vld [vmem:[%s3 + $0x240] sm:$0xff]
        %v543 = vld [vmem:[%s3 + $0x248] sm:$0xff]
        %v544 = vld [vmem:[%s3 + $0x250] sm:$0xff]
        %v545 = vld [vmem:[%s3 + $0x258] sm:$0xff]
        %v546 = vld [vmem:[%s3 + $0x260] sm:$0xff]
        %v547 = vld [vmem:[%s3 + $0x268] sm:$0xff]
        %v548 = vld [vmem:[%s3 + $0x270] sm:$0xff]
        %v549 = vld [vmem:[%s3 + $0x278] sm:$0xff]
        %551 = vset.pattern.permute.xlu0 0
        %552 = vperm.xlu0 %551, %v470
        %v553 = vpop.permute.xlu0 %552
        %556 = vset.pattern.permute.xlu0 0
        %557 = vperm.xlu0 %556, %v471
        %v558 = vpop.permute.xlu0 %557
        %561 = vset.pattern.permute.xlu0 0
        %562 = vperm.xlu0 %561, %v472
        %v563 = vpop.permute.xlu0 %562
        %566 = vset.pattern.permute.xlu0 0
        %567 = vperm.xlu0 %566, %v473
        %v568 = vpop.permute.xlu0 %567
        %571 = vset.pattern.permute.xlu0 0
        %572 = vperm.xlu0 %571, %v474
        %v573 = vpop.permute.xlu0 %572
        %576 = vset.pattern.permute.xlu0 0
        %577 = vperm.xlu0 %576, %v475
        %v578 = vpop.permute.xlu0 %577
        %581 = vset.pattern.permute.xlu0 0
        %582 = vperm.xlu0 %581, %v476
        %v583 = vpop.permute.xlu0 %582
        %586 = vset.pattern.permute.xlu0 0
        %587 = vperm.xlu0 %586, %v477
        %v588 = vpop.permute.xlu0 %587
        %591 = vset.pattern.permute.xlu0 0
        %592 = vperm.xlu0 %591, %v478
        %v593 = vpop.permute.xlu0 %592
        %596 = vset.pattern.permute.xlu0 0
        %597 = vperm.xlu0 %596, %v479
        %v598 = vpop.permute.xlu0 %597
        %601 = vset.pattern.permute.xlu0 0
        %602 = vperm.xlu0 %601, %v480
        %v603 = vpop.permute.xlu0 %602
        %606 = vset.pattern.permute.xlu0 0
        %607 = vperm.xlu0 %606, %v481
        %v608 = vpop.permute.xlu0 %607
        %611 = vset.pattern.permute.xlu0 0
        %612 = vperm.xlu0 %611, %v482
        %v613 = vpop.permute.xlu0 %612
        %616 = vset.pattern.permute.xlu0 0
        %617 = vperm.xlu0 %616, %v483
        %v618 = vpop.permute.xlu0 %617
        %621 = vset.pattern.permute.xlu0 0
        %622 = vperm.xlu0 %621, %v484
        %v623 = vpop.permute.xlu0 %622
        %626 = vset.pattern.permute.xlu0 0
        %627 = vperm.xlu0 %626, %v485
        %v628 = vpop.permute.xlu0 %627
        %631 = vset.pattern.permute.xlu0 0
        %632 = vperm.xlu0 %631, %v486
        %v633 = vpop.permute.xlu0 %632
        %636 = vset.pattern.permute.xlu0 0
        %637 = vperm.xlu0 %636, %v487
        %v638 = vpop.permute.xlu0 %637
        %641 = vset.pattern.permute.xlu0 0
        %642 = vperm.xlu0 %641, %v488
        %v643 = vpop.permute.xlu0 %642
        %646 = vset.pattern.permute.xlu0 0
        %647 = vperm.xlu0 %646, %v489
        %v648 = vpop.permute.xlu0 %647
        %651 = vset.pattern.permute.xlu0 0
        %652 = vperm.xlu0 %651, %v490
        %v653 = vpop.permute.xlu0 %652
        %656 = vset.pattern.permute.xlu0 0
        %657 = vperm.xlu0 %656, %v491
        %v658 = vpop.permute.xlu0 %657
        %661 = vset.pattern.permute.xlu0 0
        %662 = vperm.xlu0 %661, %v492
        %v663 = vpop.permute.xlu0 %662
        %666 = vset.pattern.permute.xlu0 0
        %667 = vperm.xlu0 %666, %v493
        %v668 = vpop.permute.xlu0 %667
        %671 = vset.pattern.permute.xlu0 0
        %672 = vperm.xlu0 %671, %v494
        %v673 = vpop.permute.xlu0 %672
        %676 = vset.pattern.permute.xlu0 0
        %677 = vperm.xlu0 %676, %v495
        %v678 = vpop.permute.xlu0 %677
        %681 = vset.pattern.permute.xlu0 0
        %682 = vperm.xlu0 %681, %v496
        %v683 = vpop.permute.xlu0 %682
        %686 = vset.pattern.permute.xlu0 0
        %687 = vperm.xlu0 %686, %v497
        %v688 = vpop.permute.xlu0 %687
        %691 = vset.pattern.permute.xlu0 0
        %692 = vperm.xlu0 %691, %v498
        %v693 = vpop.permute.xlu0 %692
        %696 = vset.pattern.permute.xlu0 0
        %697 = vperm.xlu0 %696, %v499
        %v698 = vpop.permute.xlu0 %697
        %701 = vset.pattern.permute.xlu0 0
        %702 = vperm.xlu0 %701, %v500
        %v703 = vpop.permute.xlu0 %702
        %706 = vset.pattern.permute.xlu0 0
        %707 = vperm.xlu0 %706, %v501
        %v708 = vpop.permute.xlu0 %707
        %711 = vset.pattern.permute.xlu0 0
        %712 = vperm.xlu0 %711, %v502
        %v713 = vpop.permute.xlu0 %712
        %716 = vset.pattern.permute.xlu0 0
        %717 = vperm.xlu0 %716, %v503
        %v718 = vpop.permute.xlu0 %717
        %721 = vset.pattern.permute.xlu0 0
        %722 = vperm.xlu0 %721, %v504
        %v723 = vpop.permute.xlu0 %722
        %726 = vset.pattern.permute.xlu0 0
        %727 = vperm.xlu0 %726, %v505
        %v728 = vpop.permute.xlu0 %727
        %731 = vset.pattern.permute.xlu0 0
        %732 = vperm.xlu0 %731, %v506
        %v733 = vpop.permute.xlu0 %732
        %736 = vset.pattern.permute.xlu0 0
        %737 = vperm.xlu0 %736, %v507
        %v738 = vpop.permute.xlu0 %737
        %741 = vset.pattern.permute.xlu0 0
        %742 = vperm.xlu0 %741, %v508
        %v743 = vpop.permute.xlu0 %742
        %746 = vset.pattern.permute.xlu0 0
        %747 = vperm.xlu0 %746, %v509
        %v748 = vpop.permute.xlu0 %747
        %751 = vset.pattern.permute.xlu0 0
        %752 = vperm.xlu0 %751, %v510
        %v753 = vpop.permute.xlu0 %752
        %756 = vset.pattern.permute.xlu0 0
        %757 = vperm.xlu0 %756, %v511
        %v758 = vpop.permute.xlu0 %757
        %761 = vset.pattern.permute.xlu0 0
        %762 = vperm.xlu0 %761, %v512
        %v763 = vpop.permute.xlu0 %762
        %766 = vset.pattern.permute.xlu0 0
        %767 = vperm.xlu0 %766, %v513
        %v768 = vpop.permute.xlu0 %767
        %771 = vset.pattern.permute.xlu0 0
        %772 = vperm.xlu0 %771, %v514
        %v773 = vpop.permute.xlu0 %772
        %776 = vset.pattern.permute.xlu0 0
        %777 = vperm.xlu0 %776, %v515
        %v778 = vpop.permute.xlu0 %777
        %781 = vset.pattern.permute.xlu0 0
        %782 = vperm.xlu0 %781, %v516
        %v783 = vpop.permute.xlu0 %782
        %786 = vset.pattern.permute.xlu0 0
        %787 = vperm.xlu0 %786, %v517
        %v788 = vpop.permute.xlu0 %787
        %791 = vset.pattern.permute.xlu0 0
        %792 = vperm.xlu0 %791, %v518
        %v793 = vpop.permute.xlu0 %792
        %796 = vset.pattern.permute.xlu0 0
        %797 = vperm.xlu0 %796, %v519
        %v798 = vpop.permute.xlu0 %797
        %801 = vset.pattern.permute.xlu0 0
        %802 = vperm.xlu0 %801, %v520
        %v803 = vpop.permute.xlu0 %802
        %806 = vset.pattern.permute.xlu0 0
        %807 = vperm.xlu0 %806, %v521
        %v808 = vpop.permute.xlu0 %807
        %811 = vset.pattern.permute.xlu0 0
        %812 = vperm.xlu0 %811, %v522
        %v813 = vpop.permute.xlu0 %812
        %816 = vset.pattern.permute.xlu0 0
        %817 = vperm.xlu0 %816, %v523
        %v818 = vpop.permute.xlu0 %817
        %821 = vset.pattern.permute.xlu0 0
        %822 = vperm.xlu0 %821, %v524
        %v823 = vpop.permute.xlu0 %822
        %826 = vset.pattern.permute.xlu0 0
        %827 = vperm.xlu0 %826, %v525
        %v828 = vpop.permute.xlu0 %827
        %831 = vset.pattern.permute.xlu0 0
        %832 = vperm.xlu0 %831, %v526
        %v833 = vpop.permute.xlu0 %832
        %836 = vset.pattern.permute.xlu0 0
        %837 = vperm.xlu0 %836, %v527
        %v838 = vpop.permute.xlu0 %837
        %841 = vset.pattern.permute.xlu0 0
        %842 = vperm.xlu0 %841, %v528
        %v843 = vpop.permute.xlu0 %842
        %846 = vset.pattern.permute.xlu0 0
        %847 = vperm.xlu0 %846, %v529
        %v848 = vpop.permute.xlu0 %847
        %851 = vset.pattern.permute.xlu0 0
        %852 = vperm.xlu0 %851, %v530
        %v853 = vpop.permute.xlu0 %852
        %856 = vset.pattern.permute.xlu0 0
        %857 = vperm.xlu0 %856, %v531
        %v858 = vpop.permute.xlu0 %857
        %861 = vset.pattern.permute.xlu0 0
        %862 = vperm.xlu0 %861, %v532
        %v863 = vpop.permute.xlu0 %862
        %866 = vset.pattern.permute.xlu0 0
        %867 = vperm.xlu0 %866, %v533
        %v868 = vpop.permute.xlu0 %867
        %871 = vset.pattern.permute.xlu0 0
        %872 = vperm.xlu0 %871, %v534
        %v873 = vpop.permute.xlu0 %872
        %876 = vset.pattern.permute.xlu0 0
        %877 = vperm.xlu0 %876, %v535
        %v878 = vpop.permute.xlu0 %877
        %881 = vset.pattern.permute.xlu0 0
        %882 = vperm.xlu0 %881, %v536
        %v883 = vpop.permute.xlu0 %882
        %886 = vset.pattern.permute.xlu0 0
        %887 = vperm.xlu0 %886, %v537
        %v888 = vpop.permute.xlu0 %887
        %891 = vset.pattern.permute.xlu0 0
        %892 = vperm.xlu0 %891, %v538
        %v893 = vpop.permute.xlu0 %892
        %896 = vset.pattern.permute.xlu0 0
        %897 = vperm.xlu0 %896, %v539
        %v898 = vpop.permute.xlu0 %897
        %901 = vset.pattern.permute.xlu0 0
        %902 = vperm.xlu0 %901, %v540
        %v903 = vpop.permute.xlu0 %902
        %906 = vset.pattern.permute.xlu0 0
        %907 = vperm.xlu0 %906, %v541
        %v908 = vpop.permute.xlu0 %907
        %911 = vset.pattern.permute.xlu0 0
        %912 = vperm.xlu0 %911, %v542
        %v913 = vpop.permute.xlu0 %912
        %916 = vset.pattern.permute.xlu0 0
        %917 = vperm.xlu0 %916, %v543
        %v918 = vpop.permute.xlu0 %917
        %921 = vset.pattern.permute.xlu0 0
        %922 = vperm.xlu0 %921, %v544
        %v923 = vpop.permute.xlu0 %922
        %926 = vset.pattern.permute.xlu0 0
        %927 = vperm.xlu0 %926, %v545
        %v928 = vpop.permute.xlu0 %927
        %931 = vset.pattern.permute.xlu0 0
        %932 = vperm.xlu0 %931, %v546
        %v933 = vpop.permute.xlu0 %932
        %936 = vset.pattern.permute.xlu0 0
        %937 = vperm.xlu0 %936, %v547
        %v938 = vpop.permute.xlu0 %937
        %941 = vset.pattern.permute.xlu0 0
        %942 = vperm.xlu0 %941, %v548
        %v943 = vpop.permute.xlu0 %942
        %946 = vset.pattern.permute.xlu0 0
        %947 = vperm.xlu0 %946, %v549
        %v948 = vpop.permute.xlu0 %947
        %vm950 = vcmask 457728
        %v952 = vsel %vm950, %v376, 0
        %v955 = vsel %vm950, %v377, 0
        %v958 = vsel %vm950, %v378, 0
        %v961 = vsel %vm950, %v379, 0
        %v964 = vsel %vm950, %v380, 0
        %v967 = vsel %vm950, %v381, 0
        %v970 = vsel %vm950, %v382, 0
        %v973 = vsel %vm950, %v383, 0
        %v976 = vsel %vm950, %v384, 0
        %v979 = vsel %vm950, %v385, 0
        %v982 = vsel %vm950, %v386, 0
        %v985 = vsel %vm950, %v387, 0
        %v988 = vsel %vm950, %v388, 0
        %v991 = vsel %vm950, %v389, 0
        %v994 = vsel %vm950, %v390, 0
        %v997 = vsel %vm950, %v391, 0
        %v1000 = vsel %vm950, %v392, 0
        %v1003 = vsel %vm950, %v393, 0
        %v1006 = vsel %vm950, %v394, 0
        %v1009 = vsel %vm950, %v395, 0
        %v1012 = vsel %vm950, %v396, 0
        %v1015 = vsel %vm950, %v397, 0
        %v1018 = vsel %vm950, %v398, 0
        %v1021 = vsel %vm950, %v399, 0
        %v1024 = vsel %vm950, %v400, 0
        %v1027 = vsel %vm950, %v401, 0
        %v1030 = vsel %vm950, %v402, 0
        %v1033 = vsel %vm950, %v403, 0
        %v1036 = vsel %vm950, %v404, 0
        %v1039 = vsel %vm950, %v405, 0
        %v1042 = vsel %vm950, %v406, 0
        %v1045 = vsel %vm950, %v407, 0
        %v1048 = vsel %vm950, %v408, 0
        %v1051 = vsel %vm950, %v409, 0
        %v1054 = vsel %vm950, %v410, 0
        %v1057 = vsel %vm950, %v411, 0
        %v1060 = vsel %vm950, %v412, 0
        %v1063 = vsel %vm950, %v413, 0
        %v1066 = vsel %vm950, %v414, 0
        %v1069 = vsel %vm950, %v415, 0
        %v1072 = vsel %vm950, %v416, 0
        %v1075 = vsel %vm950, %v417, 0
        %v1078 = vsel %vm950, %v418, 0
        %v1081 = vsel %vm950, %v419, 0
        %v1084 = vsel %vm950, %v420, 0
        %v1087 = vsel %vm950, %v421, 0
        %v1090 = vsel %vm950, %v422, 0
        %v1093 = vsel %vm950, %v423, 0
        %v1096 = vsel %vm950, %v424, 0
        %v1099 = vsel %vm950, %v425, 0
        %v1102 = vsel %vm950, %v426, 0
        %v1105 = vsel %vm950, %v427, 0
        %v1108 = vsel %vm950, %v428, 0
        %v1111 = vsel %vm950, %v429, 0
        %v1114 = vsel %vm950, %v430, 0
        %v1117 = vsel %vm950, %v431, 0
        %v1120 = vsel %vm950, %v432, 0
        %v1123 = vsel %vm950, %v433, 0
        %v1126 = vsel %vm950, %v434, 0
        %v1129 = vsel %vm950, %v435, 0
        %v1132 = vsel %vm950, %v436, 0
        %v1135 = vsel %vm950, %v437, 0
        %v1138 = vsel %vm950, %v438, 0
        %v1141 = vsel %vm950, %v439, 0
        %v1144 = vsel %vm950, %v440, 0
        %v1147 = vsel %vm950, %v441, 0
        %v1150 = vsel %vm950, %v442, 0
        %v1153 = vsel %vm950, %v443, 0
        %v1156 = vsel %vm950, %v444, 0
        %v1159 = vsel %vm950, %v445, 0
        %v1162 = vsel %vm950, %v446, 0
        %v1165 = vsel %vm950, %v447, 0
        %v1168 = vsel %vm950, %v448, 0
        %v1171 = vsel %vm950, %v449, 0
        %v1174 = vsel %vm950, %v450, 0
        %v1177 = vsel %vm950, %v451, 0
        %v1180 = vsel %vm950, %v452, 0
        %v1183 = vsel %vm950, %v453, 0
        %v1186 = vsel %vm950, %v454, 0
        %v1189 = vsel %vm950, %v455, 0
        %1191 = vmatpush.msra.mxu0 0.0
        %1192 = vmatpush.msra.mxu0 0.0
        %1193 = vmatpush.msra.mxu0 0.0
        %1194 = vmatpush.msra.mxu0 0.0
        %1195 = vmatpush.msra.mxu0 0.0
        %1196 = vmatpush.msra.mxu0 0.0
        %1197 = vmatpush.msra.mxu0 0.0
        %1198 = vmatpush.msra.mxu0 0.0
        %1199 = vmatpush.msra.mxu0 0.0
        %1200 = vmatpush.msra.mxu0 %v468
        %1201 = vmatpush.msra.mxu0 %v466
        %1202 = vmatpush.msra.mxu0 %v464
        %1203 = vmatpush.msra.mxu0 %v462
        %1204 = vmatpush.msra.mxu0 %v460
        %1205 = vmatpush.msra.mxu0 %v458
        %1206 = vmatpush.msra.mxu0 %v456
        %1207 = vmatmul.f32.gmra.mxu0 %v952
        %v1208 = vpop.f32.mrf.mxu0
        %v1209 = vadd.f32 %v553, %v1208
        %1210 = vmatmul.f32.gmra.mxu0 %v955
        %v1211 = vpop.f32.mrf.mxu0
        %v1212 = vadd.f32 %v558, %v1211
        %1213 = vmatmul.f32.gmra.mxu0 %v958
        %v1214 = vpop.f32.mrf.mxu0
        %v1215 = vadd.f32 %v563, %v1214
        %1216 = vmatmul.f32.gmra.mxu0 %v961
        %v1217 = vpop.f32.mrf.mxu0
        %v1218 = vadd.f32 %v568, %v1217
        %1219 = vmatmul.f32.gmra.mxu0 %v964
        %v1220 = vpop.f32.mrf.mxu0
        %v1221 = vadd.f32 %v573, %v1220
        %1222 = vmatmul.f32.gmra.mxu0 %v967
        %v1223 = vpop.f32.mrf.mxu0
        %v1224 = vadd.f32 %v578, %v1223
        %1225 = vmatmul.f32.gmra.mxu0 %v970
        %v1226 = vpop.f32.mrf.mxu0
        %v1227 = vadd.f32 %v583, %v1226
        %1228 = vmatmul.f32.gmra.mxu0 %v973
        %v1229 = vpop.f32.mrf.mxu0
        %v1230 = vadd.f32 %v588, %v1229
        %1231 = vmatmul.f32.gmra.mxu0 %v976
        %v1232 = vpop.f32.mrf.mxu0
        %v1233 = vadd.f32 %v593, %v1232
        %1234 = vmatmul.f32.gmra.mxu0 %v979
        %v1235 = vpop.f32.mrf.mxu0
        %v1236 = vadd.f32 %v598, %v1235
        %1237 = vmatmul.f32.gmra.mxu0 %v982
        %v1238 = vpop.f32.mrf.mxu0
        %v1239 = vadd.f32 %v603, %v1238
        %1240 = vmatmul.f32.gmra.mxu0 %v985
        %v1241 = vpop.f32.mrf.mxu0
        %v1242 = vadd.f32 %v608, %v1241
        %1243 = vmatmul.f32.gmra.mxu0 %v988
        %v1244 = vpop.f32.mrf.mxu0
        %v1245 = vadd.f32 %v613, %v1244
        %1246 = vmatmul.f32.gmra.mxu0 %v991
        %v1247 = vpop.f32.mrf.mxu0
        %v1248 = vadd.f32 %v618, %v1247
        %1249 = vmatmul.f32.gmra.mxu0 %v994
        %v1250 = vpop.f32.mrf.mxu0
        %v1251 = vadd.f32 %v623, %v1250
        %1252 = vmatmul.f32.gmra.mxu0 %v997
        %v1253 = vpop.f32.mrf.mxu0
        %v1254 = vadd.f32 %v628, %v1253
        %1255 = vmatmul.f32.gmra.mxu0 %v1000
        %v1256 = vpop.f32.mrf.mxu0
        %v1257 = vadd.f32 %v633, %v1256
        %1258 = vmatmul.f32.gmra.mxu0 %v1003
        %v1259 = vpop.f32.mrf.mxu0
        %v1260 = vadd.f32 %v638, %v1259
        %1261 = vmatmul.f32.gmra.mxu0 %v1006
        %v1262 = vpop.f32.mrf.mxu0
        %v1263 = vadd.f32 %v643, %v1262
        %1264 = vmatmul.f32.gmra.mxu0 %v1009
        %v1265 = vpop.f32.mrf.mxu0
        %v1266 = vadd.f32 %v648, %v1265
        %1267 = vmatmul.f32.gmra.mxu0 %v1012
        %v1268 = vpop.f32.mrf.mxu0
        %v1269 = vadd.f32 %v653, %v1268
        %1270 = vmatmul.f32.gmra.mxu0 %v1015
        %v1271 = vpop.f32.mrf.mxu0
        %v1272 = vadd.f32 %v658, %v1271
        %1273 = vmatmul.f32.gmra.mxu0 %v1018
        %v1274 = vpop.f32.mrf.mxu0
        %v1275 = vadd.f32 %v663, %v1274
        %1276 = vmatmul.f32.gmra.mxu0 %v1021
        %v1277 = vpop.f32.mrf.mxu0
        %v1278 = vadd.f32 %v668, %v1277
        %1279 = vmatmul.f32.gmra.mxu0 %v1024
        %v1280 = vpop.f32.mrf.mxu0
        %v1281 = vadd.f32 %v673, %v1280
        %1282 = vmatmul.f32.gmra.mxu0 %v1027
        %v1283 = vpop.f32.mrf.mxu0
        %v1284 = vadd.f32 %v678, %v1283
        %1285 = vmatmul.f32.gmra.mxu0 %v1030
        %v1286 = vpop.f32.mrf.mxu0
        %v1287 = vadd.f32 %v683, %v1286
        %1288 = vmatmul.f32.gmra.mxu0 %v1033
        %v1289 = vpop.f32.mrf.mxu0
        %v1290 = vadd.f32 %v688, %v1289
        %1291 = vmatmul.f32.gmra.mxu0 %v1036
        %v1292 = vpop.f32.mrf.mxu0
        %v1293 = vadd.f32 %v693, %v1292
        %1294 = vmatmul.f32.gmra.mxu0 %v1039
        %v1295 = vpop.f32.mrf.mxu0
        %v1296 = vadd.f32 %v698, %v1295
        %1297 = vmatmul.f32.gmra.mxu0 %v1042
        %v1298 = vpop.f32.mrf.mxu0
        %v1299 = vadd.f32 %v703, %v1298
        %1300 = vmatmul.f32.gmra.mxu0 %v1045
        %v1301 = vpop.f32.mrf.mxu0
        %v1302 = vadd.f32 %v708, %v1301
        %1303 = vmatmul.f32.gmra.mxu0 %v1048
        %v1304 = vpop.f32.mrf.mxu0
        %v1305 = vadd.f32 %v713, %v1304
        %1306 = vmatmul.f32.gmra.mxu0 %v1051
        %v1307 = vpop.f32.mrf.mxu0
        %v1308 = vadd.f32 %v718, %v1307
        %1309 = vmatmul.f32.gmra.mxu0 %v1054
        %v1310 = vpop.f32.mrf.mxu0
        %v1311 = vadd.f32 %v723, %v1310
        %1312 = vmatmul.f32.gmra.mxu0 %v1057
        %v1313 = vpop.f32.mrf.mxu0
        %v1314 = vadd.f32 %v728, %v1313
        %1315 = vmatmul.f32.gmra.mxu0 %v1060
        %v1316 = vpop.f32.mrf.mxu0
        %v1317 = vadd.f32 %v733, %v1316
        %1318 = vmatmul.f32.gmra.mxu0 %v1063
        %v1319 = vpop.f32.mrf.mxu0
        %v1320 = vadd.f32 %v738, %v1319
        %1321 = vmatmul.f32.gmra.mxu0 %v1066
        %v1322 = vpop.f32.mrf.mxu0
        %v1323 = vadd.f32 %v743, %v1322
        %1324 = vmatmul.f32.gmra.mxu0 %v1069
        %v1325 = vpop.f32.mrf.mxu0
        %v1326 = vadd.f32 %v748, %v1325
        %1327 = vmatmul.f32.gmra.mxu0 %v1072
        %v1328 = vpop.f32.mrf.mxu0
        %v1329 = vadd.f32 %v753, %v1328
        %1330 = vmatmul.f32.gmra.mxu0 %v1075
        %v1331 = vpop.f32.mrf.mxu0
        %v1332 = vadd.f32 %v758, %v1331
        %1333 = vmatmul.f32.gmra.mxu0 %v1078
        %v1334 = vpop.f32.mrf.mxu0
        %v1335 = vadd.f32 %v763, %v1334
        %1336 = vmatmul.f32.gmra.mxu0 %v1081
        %v1337 = vpop.f32.mrf.mxu0
        %v1338 = vadd.f32 %v768, %v1337
        %1339 = vmatmul.f32.gmra.mxu0 %v1084
        %v1340 = vpop.f32.mrf.mxu0
        %v1341 = vadd.f32 %v773, %v1340
        %1342 = vmatmul.f32.gmra.mxu0 %v1087
        %v1343 = vpop.f32.mrf.mxu0
        %v1344 = vadd.f32 %v778, %v1343
        %1345 = vmatmul.f32.gmra.mxu0 %v1090
        %v1346 = vpop.f32.mrf.mxu0
        %v1347 = vadd.f32 %v783, %v1346
        %1348 = vmatmul.f32.gmra.mxu0 %v1093
        %v1349 = vpop.f32.mrf.mxu0
        %v1350 = vadd.f32 %v788, %v1349
        %1351 = vmatmul.f32.gmra.mxu0 %v1096
        %v1352 = vpop.f32.mrf.mxu0
        %v1353 = vadd.f32 %v793, %v1352
        %1354 = vmatmul.f32.gmra.mxu0 %v1099
        %v1355 = vpop.f32.mrf.mxu0
        %v1356 = vadd.f32 %v798, %v1355
        %1357 = vmatmul.f32.gmra.mxu0 %v1102
        %v1358 = vpop.f32.mrf.mxu0
        %v1359 = vadd.f32 %v803, %v1358
        %1360 = vmatmul.f32.gmra.mxu0 %v1105
        %v1361 = vpop.f32.mrf.mxu0
        %v1362 = vadd.f32 %v808, %v1361
        %1363 = vmatmul.f32.gmra.mxu0 %v1108
        %v1364 = vpop.f32.mrf.mxu0
        %v1365 = vadd.f32 %v813, %v1364
        %1366 = vmatmul.f32.gmra.mxu0 %v1111
        %v1367 = vpop.f32.mrf.mxu0
        %v1368 = vadd.f32 %v818, %v1367
        %1369 = vmatmul.f32.gmra.mxu0 %v1114
        %v1370 = vpop.f32.mrf.mxu0
        %v1371 = vadd.f32 %v823, %v1370
        %1372 = vmatmul.f32.gmra.mxu0 %v1117
        %v1373 = vpop.f32.mrf.mxu0
        %v1374 = vadd.f32 %v828, %v1373
        %1375 = vmatmul.f32.gmra.mxu0 %v1120
        %v1376 = vpop.f32.mrf.mxu0
        %v1377 = vadd.f32 %v833, %v1376
        %1378 = vmatmul.f32.gmra.mxu0 %v1123
        %v1379 = vpop.f32.mrf.mxu0
        %v1380 = vadd.f32 %v838, %v1379
        %1381 = vmatmul.f32.gmra.mxu0 %v1126
        %v1382 = vpop.f32.mrf.mxu0
        %v1383 = vadd.f32 %v843, %v1382
        %1384 = vmatmul.f32.gmra.mxu0 %v1129
        %v1385 = vpop.f32.mrf.mxu0
        %v1386 = vadd.f32 %v848, %v1385
        %1387 = vmatmul.f32.gmra.mxu0 %v1132
        %v1388 = vpop.f32.mrf.mxu0
        %v1389 = vadd.f32 %v853, %v1388
        %1390 = vmatmul.f32.gmra.mxu0 %v1135
        %v1391 = vpop.f32.mrf.mxu0
        %v1392 = vadd.f32 %v858, %v1391
        %1393 = vmatmul.f32.gmra.mxu0 %v1138
        %v1394 = vpop.f32.mrf.mxu0
        %v1395 = vadd.f32 %v863, %v1394
        %1396 = vmatmul.f32.gmra.mxu0 %v1141
        %v1397 = vpop.f32.mrf.mxu0
        %v1398 = vadd.f32 %v868, %v1397
        %1399 = vmatmul.f32.gmra.mxu0 %v1144
        %v1400 = vpop.f32.mrf.mxu0
        %v1401 = vadd.f32 %v873, %v1400
        %1402 = vmatmul.f32.gmra.mxu0 %v1147
        %v1403 = vpop.f32.mrf.mxu0
        %v1404 = vadd.f32 %v878, %v1403
        %1405 = vmatmul.f32.gmra.mxu0 %v1150
        %v1406 = vpop.f32.mrf.mxu0
        %v1407 = vadd.f32 %v883, %v1406
        %1408 = vmatmul.f32.gmra.mxu0 %v1153
        %v1409 = vpop.f32.mrf.mxu0
        %v1410 = vadd.f32 %v888, %v1409
        %1411 = vmatmul.f32.gmra.mxu0 %v1156
        %v1412 = vpop.f32.mrf.mxu0
        %v1413 = vadd.f32 %v893, %v1412
        %1414 = vmatmul.f32.gmra.mxu0 %v1159
        %v1415 = vpop.f32.mrf.mxu0
        %v1416 = vadd.f32 %v898, %v1415
        %1417 = vmatmul.f32.gmra.mxu0 %v1162
        %v1418 = vpop.f32.mrf.mxu0
        %v1419 = vadd.f32 %v903, %v1418
        %1420 = vmatmul.f32.gmra.mxu0 %v1165
        %v1421 = vpop.f32.mrf.mxu0
        %v1422 = vadd.f32 %v908, %v1421
        %1423 = vmatmul.f32.gmra.mxu0 %v1168
        %v1424 = vpop.f32.mrf.mxu0
        %v1425 = vadd.f32 %v913, %v1424
        %1426 = vmatmul.f32.gmra.mxu0 %v1171
        %v1427 = vpop.f32.mrf.mxu0
        %v1428 = vadd.f32 %v918, %v1427
        %1429 = vmatmul.f32.gmra.mxu0 %v1174
        %v1430 = vpop.f32.mrf.mxu0
        %v1431 = vadd.f32 %v923, %v1430
        %1432 = vmatmul.f32.gmra.mxu0 %v1177
        %v1433 = vpop.f32.mrf.mxu0
        %v1434 = vadd.f32 %v928, %v1433
        %1435 = vmatmul.f32.gmra.mxu0 %v1180
        %v1436 = vpop.f32.mrf.mxu0
        %v1437 = vadd.f32 %v933, %v1436
        %1438 = vmatmul.f32.gmra.mxu0 %v1183
        %v1439 = vpop.f32.mrf.mxu0
        %v1440 = vadd.f32 %v938, %v1439
        %1441 = vmatmul.f32.gmra.mxu0 %v1186
        %v1442 = vpop.f32.mrf.mxu0
        %v1443 = vadd.f32 %v943, %v1442
        %1444 = vmatmul.f32.gmra.mxu0 %v1189
        %v1445 = vpop.f32.mrf.mxu0
        %v1446 = vadd.f32 %v948, %v1445
        %1447 = vdwg.mxu0
        %1448 = vmatpush.msra.mxu0 0.0
        %1449 = vmatpush.msra.mxu0 0.0
        %1450 = vmatpush.msra.mxu0 0.0
        %1451 = vmatpush.msra.mxu0 0.0
        %1452 = vmatpush.msra.mxu0 0.0
        %1453 = vmatpush.msra.mxu0 0.0
        %1454 = vmatpush.msra.mxu0 0.0
        %1455 = vmatpush.msra.mxu0 0.0
        %1456 = vmatpush.msra.mxu0 0.0
        %1457 = vmatpush.msra.mxu0 %v469
        %1458 = vmatpush.msra.mxu0 %v467
        %1459 = vmatpush.msra.mxu0 %v465
        %1460 = vmatpush.msra.mxu0 %v463
        %1461 = vmatpush.msra.mxu0 %v461
        %1462 = vmatpush.msra.mxu0 %v459
        %1463 = vmatpush.msra.mxu0 %v457
        %1464 = vmatmul.f32.gmra.mxu0 %v952
        %v1465 = vpop.f32.mrf.mxu0
        %v1466 = vadd.f32 %v553, %v1465
        %1467 = vmatmul.f32.gmra.mxu0 %v955
        %v1468 = vpop.f32.mrf.mxu0
        %v1469 = vadd.f32 %v558, %v1468
        %1470 = vmatmul.f32.gmra.mxu0 %v958
        %v1471 = vpop.f32.mrf.mxu0
        %v1472 = vadd.f32 %v563, %v1471
        %1473 = vmatmul.f32.gmra.mxu0 %v961
        %v1474 = vpop.f32.mrf.mxu0
        %v1475 = vadd.f32 %v568, %v1474
        %1476 = vmatmul.f32.gmra.mxu0 %v964
        %v1477 = vpop.f32.mrf.mxu0
        %v1478 = vadd.f32 %v573, %v1477
        %1479 = vmatmul.f32.gmra.mxu0 %v967
        %v1480 = vpop.f32.mrf.mxu0
        %v1481 = vadd.f32 %v578, %v1480
        %1482 = vmatmul.f32.gmra.mxu0 %v970
        %v1483 = vpop.f32.mrf.mxu0
        %v1484 = vadd.f32 %v583, %v1483
        %1485 = vmatmul.f32.gmra.mxu0 %v973
        %v1486 = vpop.f32.mrf.mxu0
        %v1487 = vadd.f32 %v588, %v1486
        %1488 = vmatmul.f32.gmra.mxu0 %v976
        %v1489 = vpop.f32.mrf.mxu0
        %v1490 = vadd.f32 %v593, %v1489
        %1491 = vmatmul.f32.gmra.mxu0 %v979
        %v1492 = vpop.f32.mrf.mxu0
        %v1493 = vadd.f32 %v598, %v1492
        %1494 = vmatmul.f32.gmra.mxu0 %v982
        %v1495 = vpop.f32.mrf.mxu0
        %v1496 = vadd.f32 %v603, %v1495
        %1497 = vmatmul.f32.gmra.mxu0 %v985
        %v1498 = vpop.f32.mrf.mxu0
        %v1499 = vadd.f32 %v608, %v1498
        %1500 = vmatmul.f32.gmra.mxu0 %v988
        %v1501 = vpop.f32.mrf.mxu0
        %v1502 = vadd.f32 %v613, %v1501
        %1503 = vmatmul.f32.gmra.mxu0 %v991
        %v1504 = vpop.f32.mrf.mxu0
        %v1505 = vadd.f32 %v618, %v1504
        %1506 = vmatmul.f32.gmra.mxu0 %v994
        %v1507 = vpop.f32.mrf.mxu0
        %v1508 = vadd.f32 %v623, %v1507
        %1509 = vmatmul.f32.gmra.mxu0 %v997
        %v1510 = vpop.f32.mrf.mxu0
        %v1511 = vadd.f32 %v628, %v1510
        %1512 = vmatmul.f32.gmra.mxu0 %v1000
        %v1513 = vpop.f32.mrf.mxu0
        %v1514 = vadd.f32 %v633, %v1513
        %1515 = vmatmul.f32.gmra.mxu0 %v1003
        %v1516 = vpop.f32.mrf.mxu0
        %v1517 = vadd.f32 %v638, %v1516
        %1518 = vmatmul.f32.gmra.mxu0 %v1006
        %v1519 = vpop.f32.mrf.mxu0
        %v1520 = vadd.f32 %v643, %v1519
        %1521 = vmatmul.f32.gmra.mxu0 %v1009
        %v1522 = vpop.f32.mrf.mxu0
        %v1523 = vadd.f32 %v648, %v1522
        %1524 = vmatmul.f32.gmra.mxu0 %v1012
        %v1525 = vpop.f32.mrf.mxu0
        %v1526 = vadd.f32 %v653, %v1525
        %1527 = vmatmul.f32.gmra.mxu0 %v1015
        %v1528 = vpop.f32.mrf.mxu0
        %v1529 = vadd.f32 %v658, %v1528
        %1530 = vmatmul.f32.gmra.mxu0 %v1018
        %v1531 = vpop.f32.mrf.mxu0
        %v1532 = vadd.f32 %v663, %v1531
        %1533 = vmatmul.f32.gmra.mxu0 %v1021
        %v1534 = vpop.f32.mrf.mxu0
        %v1535 = vadd.f32 %v668, %v1534
        %1536 = vmatmul.f32.gmra.mxu0 %v1024
        %v1537 = vpop.f32.mrf.mxu0
        %v1538 = vadd.f32 %v673, %v1537
        %1539 = vmatmul.f32.gmra.mxu0 %v1027
        %v1540 = vpop.f32.mrf.mxu0
        %v1541 = vadd.f32 %v678, %v1540
        %1542 = vmatmul.f32.gmra.mxu0 %v1030
        %v1543 = vpop.f32.mrf.mxu0
        %v1544 = vadd.f32 %v683, %v1543
        %1545 = vmatmul.f32.gmra.mxu0 %v1033
        %v1546 = vpop.f32.mrf.mxu0
        %v1547 = vadd.f32 %v688, %v1546
        %1548 = vmatmul.f32.gmra.mxu0 %v1036
        %v1549 = vpop.f32.mrf.mxu0
        %v1550 = vadd.f32 %v693, %v1549
        %1551 = vmatmul.f32.gmra.mxu0 %v1039
        %v1552 = vpop.f32.mrf.mxu0
        %v1553 = vadd.f32 %v698, %v1552
        %1554 = vmatmul.f32.gmra.mxu0 %v1042
        %v1555 = vpop.f32.mrf.mxu0
        %v1556 = vadd.f32 %v703, %v1555
        %1557 = vmatmul.f32.gmra.mxu0 %v1045
        %v1558 = vpop.f32.mrf.mxu0
        %v1559 = vadd.f32 %v708, %v1558
        %1560 = vmatmul.f32.gmra.mxu0 %v1048
        %v1561 = vpop.f32.mrf.mxu0
        %v1562 = vadd.f32 %v713, %v1561
        %1563 = vmatmul.f32.gmra.mxu0 %v1051
        %v1564 = vpop.f32.mrf.mxu0
        %v1565 = vadd.f32 %v718, %v1564
        %1566 = vmatmul.f32.gmra.mxu0 %v1054
        %v1567 = vpop.f32.mrf.mxu0
        %v1568 = vadd.f32 %v723, %v1567
        %1569 = vmatmul.f32.gmra.mxu0 %v1057
        %v1570 = vpop.f32.mrf.mxu0
        %v1571 = vadd.f32 %v728, %v1570
        %1572 = vmatmul.f32.gmra.mxu0 %v1060
        %v1573 = vpop.f32.mrf.mxu0
        %v1574 = vadd.f32 %v733, %v1573
        %1575 = vmatmul.f32.gmra.mxu0 %v1063
        %v1576 = vpop.f32.mrf.mxu0
        %v1577 = vadd.f32 %v738, %v1576
        %1578 = vmatmul.f32.gmra.mxu0 %v1066
        %v1579 = vpop.f32.mrf.mxu0
        %v1580 = vadd.f32 %v743, %v1579
        %1581 = vmatmul.f32.gmra.mxu0 %v1069
        %v1582 = vpop.f32.mrf.mxu0
        %v1583 = vadd.f32 %v748, %v1582
        %1584 = vmatmul.f32.gmra.mxu0 %v1072
        %v1585 = vpop.f32.mrf.mxu0
        %v1586 = vadd.f32 %v753, %v1585
        %1587 = vmatmul.f32.gmra.mxu0 %v1075
        %v1588 = vpop.f32.mrf.mxu0
        %v1589 = vadd.f32 %v758, %v1588
        %1590 = vmatmul.f32.gmra.mxu0 %v1078
        %v1591 = vpop.f32.mrf.mxu0
        %v1592 = vadd.f32 %v763, %v1591
        %1593 = vmatmul.f32.gmra.mxu0 %v1081
        %v1594 = vpop.f32.mrf.mxu0
        %v1595 = vadd.f32 %v768, %v1594
        %1596 = vmatmul.f32.gmra.mxu0 %v1084
        %v1597 = vpop.f32.mrf.mxu0
        %v1598 = vadd.f32 %v773, %v1597
        %1599 = vmatmul.f32.gmra.mxu0 %v1087
        %v1600 = vpop.f32.mrf.mxu0
        %v1601 = vadd.f32 %v778, %v1600
        %1602 = vmatmul.f32.gmra.mxu0 %v1090
        %v1603 = vpop.f32.mrf.mxu0
        %v1604 = vadd.f32 %v783, %v1603
        %1605 = vmatmul.f32.gmra.mxu0 %v1093
        %v1606 = vpop.f32.mrf.mxu0
        %v1607 = vadd.f32 %v788, %v1606
        %1608 = vmatmul.f32.gmra.mxu0 %v1096
        %v1609 = vpop.f32.mrf.mxu0
        %v1610 = vadd.f32 %v793, %v1609
        %1611 = vmatmul.f32.gmra.mxu0 %v1099
        %v1612 = vpop.f32.mrf.mxu0
        %v1613 = vadd.f32 %v798, %v1612
        %1614 = vmatmul.f32.gmra.mxu0 %v1102
        %v1615 = vpop.f32.mrf.mxu0
        %v1616 = vadd.f32 %v803, %v1615
        %1617 = vmatmul.f32.gmra.mxu0 %v1105
        %v1618 = vpop.f32.mrf.mxu0
        %v1619 = vadd.f32 %v808, %v1618
        %1620 = vmatmul.f32.gmra.mxu0 %v1108
        %v1621 = vpop.f32.mrf.mxu0
        %v1622 = vadd.f32 %v813, %v1621
        %1623 = vmatmul.f32.gmra.mxu0 %v1111
        %v1624 = vpop.f32.mrf.mxu0
        %v1625 = vadd.f32 %v818, %v1624
        %1626 = vmatmul.f32.gmra.mxu0 %v1114
        %v1627 = vpop.f32.mrf.mxu0
        %v1628 = vadd.f32 %v823, %v1627
        %1629 = vmatmul.f32.gmra.mxu0 %v1117
        %v1630 = vpop.f32.mrf.mxu0
        %v1631 = vadd.f32 %v828, %v1630
        %1632 = vmatmul.f32.gmra.mxu0 %v1120
        %v1633 = vpop.f32.mrf.mxu0
        %v1634 = vadd.f32 %v833, %v1633
        %1635 = vmatmul.f32.gmra.mxu0 %v1123
        %v1636 = vpop.f32.mrf.mxu0
        %v1637 = vadd.f32 %v838, %v1636
        %1638 = vmatmul.f32.gmra.mxu0 %v1126
        %v1639 = vpop.f32.mrf.mxu0
        %v1640 = vadd.f32 %v843, %v1639
        %1641 = vmatmul.f32.gmra.mxu0 %v1129
        %v1642 = vpop.f32.mrf.mxu0
        %v1643 = vadd.f32 %v848, %v1642
        %1644 = vmatmul.f32.gmra.mxu0 %v1132
        %v1645 = vpop.f32.mrf.mxu0
        %v1646 = vadd.f32 %v853, %v1645
        %1647 = vmatmul.f32.gmra.mxu0 %v1135
        %v1648 = vpop.f32.mrf.mxu0
        %v1649 = vadd.f32 %v858, %v1648
        %1650 = vmatmul.f32.gmra.mxu0 %v1138
        %v1651 = vpop.f32.mrf.mxu0
        %v1652 = vadd.f32 %v863, %v1651
        %1653 = vmatmul.f32.gmra.mxu0 %v1141
        %v1654 = vpop.f32.mrf.mxu0
        %v1655 = vadd.f32 %v868, %v1654
        %1656 = vmatmul.f32.gmra.mxu0 %v1144
        %v1657 = vpop.f32.mrf.mxu0
        %v1658 = vadd.f32 %v873, %v1657
        %1659 = vmatmul.f32.gmra.mxu0 %v1147
        %v1660 = vpop.f32.mrf.mxu0
        %v1661 = vadd.f32 %v878, %v1660
        %1662 = vmatmul.f32.gmra.mxu0 %v1150
        %v1663 = vpop.f32.mrf.mxu0
        %v1664 = vadd.f32 %v883, %v1663
        %1665 = vmatmul.f32.gmra.mxu0 %v1153
        %v1666 = vpop.f32.mrf.mxu0
        %v1667 = vadd.f32 %v888, %v1666
        %1668 = vmatmul.f32.gmra.mxu0 %v1156
        %v1669 = vpop.f32.mrf.mxu0
        %v1670 = vadd.f32 %v893, %v1669
        %1671 = vmatmul.f32.gmra.mxu0 %v1159
        %v1672 = vpop.f32.mrf.mxu0
        %v1673 = vadd.f32 %v898, %v1672
        %1674 = vmatmul.f32.gmra.mxu0 %v1162
        %v1675 = vpop.f32.mrf.mxu0
        %v1676 = vadd.f32 %v903, %v1675
        %1677 = vmatmul.f32.gmra.mxu0 %v1165
        %v1678 = vpop.f32.mrf.mxu0
        %v1679 = vadd.f32 %v908, %v1678
        %1680 = vmatmul.f32.gmra.mxu0 %v1168
        %v1681 = vpop.f32.mrf.mxu0
        %v1682 = vadd.f32 %v913, %v1681
        %1683 = vmatmul.f32.gmra.mxu0 %v1171
        %v1684 = vpop.f32.mrf.mxu0
        %v1685 = vadd.f32 %v918, %v1684
        %1686 = vmatmul.f32.gmra.mxu0 %v1174
        %v1687 = vpop.f32.mrf.mxu0
        %v1688 = vadd.f32 %v923, %v1687
        %1689 = vmatmul.f32.gmra.mxu0 %v1177
        %v1690 = vpop.f32.mrf.mxu0
        %v1691 = vadd.f32 %v928, %v1690
        %1692 = vmatmul.f32.gmra.mxu0 %v1180
        %v1693 = vpop.f32.mrf.mxu0
        %v1694 = vadd.f32 %v933, %v1693
        %1695 = vmatmul.f32.gmra.mxu0 %v1183
        %v1696 = vpop.f32.mrf.mxu0
        %v1697 = vadd.f32 %v938, %v1696
        %1698 = vmatmul.f32.gmra.mxu0 %v1186
        %v1699 = vpop.f32.mrf.mxu0
        %v1700 = vadd.f32 %v943, %v1699
        %1701 = vmatmul.f32.gmra.mxu0 %v1189
        %v1702 = vpop.f32.mrf.mxu0
        %v1703 = vadd.f32 %v948, %v1702
        %1704 = vdwg.mxu0
        %vm1705 = vcmp.gt.f32.partialorder %v1209, 0.0
        %vm1706 = vcmp.gt.f32.partialorder %v1466, 0.0
        %vm1707 = vcmp.gt.f32.partialorder %v1212, 0.0
        %vm1708 = vcmp.gt.f32.partialorder %v1469, 0.0
        %vm1709 = vcmp.gt.f32.partialorder %v1215, 0.0
        %vm1710 = vcmp.gt.f32.partialorder %v1472, 0.0
        %vm1711 = vcmp.gt.f32.partialorder %v1218, 0.0
        %vm1712 = vcmp.gt.f32.partialorder %v1475, 0.0
        %vm1713 = vcmp.gt.f32.partialorder %v1221, 0.0
        %vm1714 = vcmp.gt.f32.partialorder %v1478, 0.0
        %vm1715 = vcmp.gt.f32.partialorder %v1224, 0.0
        %vm1716 = vcmp.gt.f32.partialorder %v1481, 0.0
        %vm1717 = vcmp.gt.f32.partialorder %v1227, 0.0
        %vm1718 = vcmp.gt.f32.partialorder %v1484, 0.0
        %vm1719 = vcmp.gt.f32.partialorder %v1230, 0.0
        %vm1720 = vcmp.gt.f32.partialorder %v1487, 0.0
        %vm1721 = vcmp.gt.f32.partialorder %v1233, 0.0
        %vm1722 = vcmp.gt.f32.partialorder %v1490, 0.0
        %vm1723 = vcmp.gt.f32.partialorder %v1236, 0.0
        %vm1724 = vcmp.gt.f32.partialorder %v1493, 0.0
        %vm1725 = vcmp.gt.f32.partialorder %v1239, 0.0
        %vm1726 = vcmp.gt.f32.partialorder %v1496, 0.0
        %vm1727 = vcmp.gt.f32.partialorder %v1242, 0.0
        %vm1728 = vcmp.gt.f32.partialorder %v1499, 0.0
        %vm1729 = vcmp.gt.f32.partialorder %v1245, 0.0
        %vm1730 = vcmp.gt.f32.partialorder %v1502, 0.0
        %vm1731 = vcmp.gt.f32.partialorder %v1248, 0.0
        %vm1732 = vcmp.gt.f32.partialorder %v1505, 0.0
        %vm1733 = vcmp.gt.f32.partialorder %v1251, 0.0
        %vm1734 = vcmp.gt.f32.partialorder %v1508, 0.0
        %vm1735 = vcmp.gt.f32.partialorder %v1254, 0.0
        %vm1736 = vcmp.gt.f32.partialorder %v1511, 0.0
        %vm1737 = vcmp.gt.f32.partialorder %v1257, 0.0
        %vm1738 = vcmp.gt.f32.partialorder %v1514, 0.0
        %vm1739 = vcmp.gt.f32.partialorder %v1260, 0.0
        %vm1740 = vcmp.gt.f32.partialorder %v1517, 0.0
        %vm1741 = vcmp.gt.f32.partialorder %v1263, 0.0
        %vm1742 = vcmp.gt.f32.partialorder %v1520, 0.0
        %vm1743 = vcmp.gt.f32.partialorder %v1266, 0.0
        %vm1744 = vcmp.gt.f32.partialorder %v1523, 0.0
        %vm1745 = vcmp.gt.f32.partialorder %v1269, 0.0
        %vm1746 = vcmp.gt.f32.partialorder %v1526, 0.0
        %vm1747 = vcmp.gt.f32.partialorder %v1272, 0.0
        %vm1748 = vcmp.gt.f32.partialorder %v1529, 0.0
        %vm1749 = vcmp.gt.f32.partialorder %v1275, 0.0
        %vm1750 = vcmp.gt.f32.partialorder %v1532, 0.0
        %vm1751 = vcmp.gt.f32.partialorder %v1278, 0.0
        %vm1752 = vcmp.gt.f32.partialorder %v1535, 0.0
        %vm1753 = vcmp.gt.f32.partialorder %v1281, 0.0
        %vm1754 = vcmp.gt.f32.partialorder %v1538, 0.0
        %vm1755 = vcmp.gt.f32.partialorder %v1284, 0.0
        %vm1756 = vcmp.gt.f32.partialorder %v1541, 0.0
        %vm1757 = vcmp.gt.f32.partialorder %v1287, 0.0
        %vm1758 = vcmp.gt.f32.partialorder %v1544, 0.0
        %vm1759 = vcmp.gt.f32.partialorder %v1290, 0.0
        %vm1760 = vcmp.gt.f32.partialorder %v1547, 0.0
        %vm1761 = vcmp.gt.f32.partialorder %v1293, 0.0
        %vm1762 = vcmp.gt.f32.partialorder %v1550, 0.0
        %vm1763 = vcmp.gt.f32.partialorder %v1296, 0.0
        %vm1764 = vcmp.gt.f32.partialorder %v1553, 0.0
        %vm1765 = vcmp.gt.f32.partialorder %v1299, 0.0
        %vm1766 = vcmp.gt.f32.partialorder %v1556, 0.0
        %vm1767 = vcmp.gt.f32.partialorder %v1302, 0.0
        %vm1768 = vcmp.gt.f32.partialorder %v1559, 0.0
        %vm1769 = vcmp.gt.f32.partialorder %v1305, 0.0
        %vm1770 = vcmp.gt.f32.partialorder %v1562, 0.0
        %vm1771 = vcmp.gt.f32.partialorder %v1308, 0.0
        %vm1772 = vcmp.gt.f32.partialorder %v1565, 0.0
        %vm1773 = vcmp.gt.f32.partialorder %v1311, 0.0
        %vm1774 = vcmp.gt.f32.partialorder %v1568, 0.0
        %vm1775 = vcmp.gt.f32.partialorder %v1314, 0.0
        %vm1776 = vcmp.gt.f32.partialorder %v1571, 0.0
        %vm1777 = vcmp.gt.f32.partialorder %v1317, 0.0
        %vm1778 = vcmp.gt.f32.partialorder %v1574, 0.0
        %vm1779 = vcmp.gt.f32.partialorder %v1320, 0.0
        %vm1780 = vcmp.gt.f32.partialorder %v1577, 0.0
        %vm1781 = vcmp.gt.f32.partialorder %v1323, 0.0
        %vm1782 = vcmp.gt.f32.partialorder %v1580, 0.0
        %vm1783 = vcmp.gt.f32.partialorder %v1326, 0.0
        %vm1784 = vcmp.gt.f32.partialorder %v1583, 0.0
        %vm1785 = vcmp.gt.f32.partialorder %v1329, 0.0
        %vm1786 = vcmp.gt.f32.partialorder %v1586, 0.0
        %vm1787 = vcmp.gt.f32.partialorder %v1332, 0.0
        %vm1788 = vcmp.gt.f32.partialorder %v1589, 0.0
        %vm1789 = vcmp.gt.f32.partialorder %v1335, 0.0
        %vm1790 = vcmp.gt.f32.partialorder %v1592, 0.0
        %vm1791 = vcmp.gt.f32.partialorder %v1338, 0.0
        %vm1792 = vcmp.gt.f32.partialorder %v1595, 0.0
        %vm1793 = vcmp.gt.f32.partialorder %v1341, 0.0
        %vm1794 = vcmp.gt.f32.partialorder %v1598, 0.0
        %vm1795 = vcmp.gt.f32.partialorder %v1344, 0.0
        %vm1796 = vcmp.gt.f32.partialorder %v1601, 0.0
        %vm1797 = vcmp.gt.f32.partialorder %v1347, 0.0
        %vm1798 = vcmp.gt.f32.partialorder %v1604, 0.0
        %vm1799 = vcmp.gt.f32.partialorder %v1350, 0.0
        %vm1800 = vcmp.gt.f32.partialorder %v1607, 0.0
        %vm1801 = vcmp.gt.f32.partialorder %v1353, 0.0
        %vm1802 = vcmp.gt.f32.partialorder %v1610, 0.0
        %vm1803 = vcmp.gt.f32.partialorder %v1356, 0.0
        %vm1804 = vcmp.gt.f32.partialorder %v1613, 0.0
        %vm1805 = vcmp.gt.f32.partialorder %v1359, 0.0
        %vm1806 = vcmp.gt.f32.partialorder %v1616, 0.0
        %vm1807 = vcmp.gt.f32.partialorder %v1362, 0.0
        %vm1808 = vcmp.gt.f32.partialorder %v1619, 0.0
        %vm1809 = vcmp.gt.f32.partialorder %v1365, 0.0
        %vm1810 = vcmp.gt.f32.partialorder %v1622, 0.0
        %vm1811 = vcmp.gt.f32.partialorder %v1368, 0.0
        %vm1812 = vcmp.gt.f32.partialorder %v1625, 0.0
        %vm1813 = vcmp.gt.f32.partialorder %v1371, 0.0
        %vm1814 = vcmp.gt.f32.partialorder %v1628, 0.0
        %vm1815 = vcmp.gt.f32.partialorder %v1374, 0.0
        %vm1816 = vcmp.gt.f32.partialorder %v1631, 0.0
        %vm1817 = vcmp.gt.f32.partialorder %v1377, 0.0
        %vm1818 = vcmp.gt.f32.partialorder %v1634, 0.0
        %vm1819 = vcmp.gt.f32.partialorder %v1380, 0.0
        %vm1820 = vcmp.gt.f32.partialorder %v1637, 0.0
        %vm1821 = vcmp.gt.f32.partialorder %v1383, 0.0
        %vm1822 = vcmp.gt.f32.partialorder %v1640, 0.0
        %vm1823 = vcmp.gt.f32.partialorder %v1386, 0.0
        %vm1824 = vcmp.gt.f32.partialorder %v1643, 0.0
        %vm1825 = vcmp.gt.f32.partialorder %v1389, 0.0
        %vm1826 = vcmp.gt.f32.partialorder %v1646, 0.0
        %vm1827 = vcmp.gt.f32.partialorder %v1392, 0.0
        %vm1828 = vcmp.gt.f32.partialorder %v1649, 0.0
        %vm1829 = vcmp.gt.f32.partialorder %v1395, 0.0
        %vm1830 = vcmp.gt.f32.partialorder %v1652, 0.0
        %vm1831 = vcmp.gt.f32.partialorder %v1398, 0.0
        %vm1832 = vcmp.gt.f32.partialorder %v1655, 0.0
        %vm1833 = vcmp.gt.f32.partialorder %v1401, 0.0
        %vm1834 = vcmp.gt.f32.partialorder %v1658, 0.0
        %vm1835 = vcmp.gt.f32.partialorder %v1404, 0.0
        %vm1836 = vcmp.gt.f32.partialorder %v1661, 0.0
        %vm1837 = vcmp.gt.f32.partialorder %v1407, 0.0
        %vm1838 = vcmp.gt.f32.partialorder %v1664, 0.0
        %vm1839 = vcmp.gt.f32.partialorder %v1410, 0.0
        %vm1840 = vcmp.gt.f32.partialorder %v1667, 0.0
        %vm1841 = vcmp.gt.f32.partialorder %v1413, 0.0
        %vm1842 = vcmp.gt.f32.partialorder %v1670, 0.0
        %vm1843 = vcmp.gt.f32.partialorder %v1416, 0.0
        %vm1844 = vcmp.gt.f32.partialorder %v1673, 0.0
        %vm1845 = vcmp.gt.f32.partialorder %v1419, 0.0
        %vm1846 = vcmp.gt.f32.partialorder %v1676, 0.0
        %vm1847 = vcmp.gt.f32.partialorder %v1422, 0.0
        %vm1848 = vcmp.gt.f32.partialorder %v1679, 0.0
        %vm1849 = vcmp.gt.f32.partialorder %v1425, 0.0
        %vm1850 = vcmp.gt.f32.partialorder %v1682, 0.0
        %vm1851 = vcmp.gt.f32.partialorder %v1428, 0.0
        %vm1852 = vcmp.gt.f32.partialorder %v1685, 0.0
        %vm1853 = vcmp.gt.f32.partialorder %v1431, 0.0
        %vm1854 = vcmp.gt.f32.partialorder %v1688, 0.0
        %vm1855 = vcmp.gt.f32.partialorder %v1434, 0.0
        %vm1856 = vcmp.gt.f32.partialorder %v1691, 0.0
        %vm1857 = vcmp.gt.f32.partialorder %v1437, 0.0
        %vm1858 = vcmp.gt.f32.partialorder %v1694, 0.0
        %vm1859 = vcmp.gt.f32.partialorder %v1440, 0.0
        %vm1860 = vcmp.gt.f32.partialorder %v1697, 0.0
        %vm1861 = vcmp.gt.f32.partialorder %v1443, 0.0
        %vm1862 = vcmp.gt.f32.partialorder %v1700, 0.0
        %vm1863 = vcmp.gt.f32.partialorder %v1446, 0.0
        %vm1864 = vcmp.gt.f32.partialorder %v1703, 0.0
        %v1865 = vmul.f32 %v1209, 0.01
        %v1866 = vmul.f32 %v1466, 0.01
        %v1867 = vmul.f32 %v1212, 0.01
        %v1868 = vmul.f32 %v1469, 0.01
        %v1869 = vmul.f32 %v1215, 0.01
        %v1870 = vmul.f32 %v1472, 0.01
        %v1871 = vmul.f32 %v1218, 0.01
        %v1872 = vmul.f32 %v1475, 0.01
        %v1873 = vmul.f32 %v1221, 0.01
        %v1874 = vmul.f32 %v1478, 0.01
        %v1875 = vmul.f32 %v1224, 0.01
        %v1876 = vmul.f32 %v1481, 0.01
        %v1877 = vmul.f32 %v1227, 0.01
        %v1878 = vmul.f32 %v1484, 0.01
        %v1879 = vmul.f32 %v1230, 0.01
        %v1880 = vmul.f32 %v1487, 0.01
        %v1881 = vmul.f32 %v1233, 0.01
        %v1882 = vmul.f32 %v1490, 0.01
        %v1883 = vmul.f32 %v1236, 0.01
        %v1884 = vmul.f32 %v1493, 0.01
        %v1885 = vmul.f32 %v1239, 0.01
        %v1886 = vmul.f32 %v1496, 0.01
        %v1887 = vmul.f32 %v1242, 0.01
        %v1888 = vmul.f32 %v1499, 0.01
        %v1889 = vmul.f32 %v1245, 0.01
        %v1890 = vmul.f32 %v1502, 0.01
        %v1891 = vmul.f32 %v1248, 0.01
        %v1892 = vmul.f32 %v1505, 0.01
        %v1893 = vmul.f32 %v1251, 0.01
        %v1894 = vmul.f32 %v1508, 0.01
        %v1895 = vmul.f32 %v1254, 0.01
        %v1896 = vmul.f32 %v1511, 0.01
        %v1897 = vmul.f32 %v1257, 0.01
        %v1898 = vmul.f32 %v1514, 0.01
        %v1899 = vmul.f32 %v1260, 0.01
        %v1900 = vmul.f32 %v1517, 0.01
        %v1901 = vmul.f32 %v1263, 0.01
        %v1902 = vmul.f32 %v1520, 0.01
        %v1903 = vmul.f32 %v1266, 0.01
        %v1904 = vmul.f32 %v1523, 0.01
        %v1905 = vmul.f32 %v1269, 0.01
        %v1906 = vmul.f32 %v1526, 0.01
        %v1907 = vmul.f32 %v1272, 0.01
        %v1908 = vmul.f32 %v1529, 0.01
        %v1909 = vmul.f32 %v1275, 0.01
        %v1910 = vmul.f32 %v1532, 0.01
        %v1911 = vmul.f32 %v1278, 0.01
        %v1912 = vmul.f32 %v1535, 0.01
        %v1913 = vmul.f32 %v1281, 0.01
        %v1914 = vmul.f32 %v1538, 0.01
        %v1915 = vmul.f32 %v1284, 0.01
        %v1916 = vmul.f32 %v1541, 0.01
        %v1917 = vmul.f32 %v1287, 0.01
        %v1918 = vmul.f32 %v1544, 0.01
        %v1919 = vmul.f32 %v1290, 0.01
        %v1920 = vmul.f32 %v1547, 0.01
        %v1921 = vmul.f32 %v1293, 0.01
        %v1922 = vmul.f32 %v1550, 0.01
        %v1923 = vmul.f32 %v1296, 0.01
        %v1924 = vmul.f32 %v1553, 0.01
        %v1925 = vmul.f32 %v1299, 0.01
        %v1926 = vmul.f32 %v1556, 0.01
        %v1927 = vmul.f32 %v1302, 0.01
        %v1928 = vmul.f32 %v1559, 0.01
        %v1929 = vmul.f32 %v1305, 0.01
        %v1930 = vmul.f32 %v1562, 0.01
        %v1931 = vmul.f32 %v1308, 0.01
        %v1932 = vmul.f32 %v1565, 0.01
        %v1933 = vmul.f32 %v1311, 0.01
        %v1934 = vmul.f32 %v1568, 0.01
        %v1935 = vmul.f32 %v1314, 0.01
        %v1936 = vmul.f32 %v1571, 0.01
        %v1937 = vmul.f32 %v1317, 0.01
        %v1938 = vmul.f32 %v1574, 0.01
        %v1939 = vmul.f32 %v1320, 0.01
        %v1940 = vmul.f32 %v1577, 0.01
        %v1941 = vmul.f32 %v1323, 0.01
        %v1942 = vmul.f32 %v1580, 0.01
        %v1943 = vmul.f32 %v1326, 0.01
        %v1944 = vmul.f32 %v1583, 0.01
        %v1945 = vmul.f32 %v1329, 0.01
        %v1946 = vmul.f32 %v1586, 0.01
        %v1947 = vmul.f32 %v1332, 0.01
        %v1948 = vmul.f32 %v1589, 0.01
        %v1949 = vmul.f32 %v1335, 0.01
        %v1950 = vmul.f32 %v1592, 0.01
        %v1951 = vmul.f32 %v1338, 0.01
        %v1952 = vmul.f32 %v1595, 0.01
        %v1953 = vmul.f32 %v1341, 0.01
        %v1954 = vmul.f32 %v1598, 0.01
        %v1955 = vmul.f32 %v1344, 0.01
        %v1956 = vmul.f32 %v1601, 0.01
        %v1957 = vmul.f32 %v1347, 0.01
        %v1958 = vmul.f32 %v1604, 0.01
        %v1959 = vmul.f32 %v1350, 0.01
        %v1960 = vmul.f32 %v1607, 0.01
        %v1961 = vmul.f32 %v1353, 0.01
        %v1962 = vmul.f32 %v1610, 0.01
        %v1963 = vmul.f32 %v1356, 0.01
        %v1964 = vmul.f32 %v1613, 0.01
        %v1965 = vmul.f32 %v1359, 0.01
        %v1966 = vmul.f32 %v1616, 0.01
        %v1967 = vmul.f32 %v1362, 0.01
        %v1968 = vmul.f32 %v1619, 0.01
        %v1969 = vmul.f32 %v1365, 0.01
        %v1970 = vmul.f32 %v1622, 0.01
        %v1971 = vmul.f32 %v1368, 0.01
        %v1972 = vmul.f32 %v1625, 0.01
        %v1973 = vmul.f32 %v1371, 0.01
        %v1974 = vmul.f32 %v1628, 0.01
        %v1975 = vmul.f32 %v1374, 0.01
        %v1976 = vmul.f32 %v1631, 0.01
        %v1977 = vmul.f32 %v1377, 0.01
        %v1978 = vmul.f32 %v1634, 0.01
        %v1979 = vmul.f32 %v1380, 0.01
        %v1980 = vmul.f32 %v1637, 0.01
        %v1981 = vmul.f32 %v1383, 0.01
        %v1982 = vmul.f32 %v1640, 0.01
        %v1983 = vmul.f32 %v1386, 0.01
        %v1984 = vmul.f32 %v1643, 0.01
        %v1985 = vmul.f32 %v1389, 0.01
        %v1986 = vmul.f32 %v1646, 0.01
        %v1987 = vmul.f32 %v1392, 0.01
        %v1988 = vmul.f32 %v1649, 0.01
        %v1989 = vmul.f32 %v1395, 0.01
        %v1990 = vmul.f32 %v1652, 0.01
        %v1991 = vmul.f32 %v1398, 0.01
        %v1992 = vmul.f32 %v1655, 0.01
        %v1993 = vmul.f32 %v1401, 0.01
        %v1994 = vmul.f32 %v1658, 0.01
        %v1995 = vmul.f32 %v1404, 0.01
        %v1996 = vmul.f32 %v1661, 0.01
        %v1997 = vmul.f32 %v1407, 0.01
        %v1998 = vmul.f32 %v1664, 0.01
        %v1999 = vmul.f32 %v1410, 0.01
        %v2000 = vmul.f32 %v1667, 0.01
        %v2001 = vmul.f32 %v1413, 0.01
        %v2002 = vmul.f32 %v1670, 0.01
        %v2003 = vmul.f32 %v1416, 0.01
        %v2004 = vmul.f32 %v1673, 0.01
        %v2005 = vmul.f32 %v1419, 0.01
        %v2006 = vmul.f32 %v1676, 0.01
        %v2007 = vmul.f32 %v1422, 0.01
        %v2008 = vmul.f32 %v1679, 0.01
        %v2009 = vmul.f32 %v1425, 0.01
        %v2010 = vmul.f32 %v1682, 0.01
        %v2011 = vmul.f32 %v1428, 0.01
        %v2012 = vmul.f32 %v1685, 0.01
        %v2013 = vmul.f32 %v1431, 0.01
        %v2014 = vmul.f32 %v1688, 0.01
        %v2015 = vmul.f32 %v1434, 0.01
        %v2016 = vmul.f32 %v1691, 0.01
        %v2017 = vmul.f32 %v1437, 0.01
        %v2018 = vmul.f32 %v1694, 0.01
        %v2019 = vmul.f32 %v1440, 0.01
        %v2020 = vmul.f32 %v1697, 0.01
        %v2021 = vmul.f32 %v1443, 0.01
        %v2022 = vmul.f32 %v1700, 0.01
        %v2023 = vmul.f32 %v1446, 0.01
        %v2024 = vmul.f32 %v1703, 0.01
        %v2025 = vsel %vm1705, %v1209, %v1865
        %v2026 = vsel %vm1706, %v1466, %v1866
        %v2027 = vsel %vm1707, %v1212, %v1867
        %v2028 = vsel %vm1708, %v1469, %v1868
        %v2029 = vsel %vm1709, %v1215, %v1869
        %v2030 = vsel %vm1710, %v1472, %v1870
        %v2031 = vsel %vm1711, %v1218, %v1871
        %v2032 = vsel %vm1712, %v1475, %v1872
        %v2033 = vsel %vm1713, %v1221, %v1873
        %v2034 = vsel %vm1714, %v1478, %v1874
        %v2035 = vsel %vm1715, %v1224, %v1875
        %v2036 = vsel %vm1716, %v1481, %v1876
        %v2037 = vsel %vm1717, %v1227, %v1877
        %v2038 = vsel %vm1718, %v1484, %v1878
        %v2039 = vsel %vm1719, %v1230, %v1879
        %v2040 = vsel %vm1720, %v1487, %v1880
        %v2041 = vsel %vm1721, %v1233, %v1881
        %v2042 = vsel %vm1722, %v1490, %v1882
        %v2043 = vsel %vm1723, %v1236, %v1883
        %v2044 = vsel %vm1724, %v1493, %v1884
        %v2045 = vsel %vm1725, %v1239, %v1885
        %v2046 = vsel %vm1726, %v1496, %v1886
        %v2047 = vsel %vm1727, %v1242, %v1887
        %v2048 = vsel %vm1728, %v1499, %v1888
        %v2049 = vsel %vm1729, %v1245, %v1889
        %v2050 = vsel %vm1730, %v1502, %v1890
        %v2051 = vsel %vm1731, %v1248, %v1891
        %v2052 = vsel %vm1732, %v1505, %v1892
        %v2053 = vsel %vm1733, %v1251, %v1893
        %v2054 = vsel %vm1734, %v1508, %v1894
        %v2055 = vsel %vm1735, %v1254, %v1895
        %v2056 = vsel %vm1736, %v1511, %v1896
        %v2057 = vsel %vm1737, %v1257, %v1897
        %v2058 = vsel %vm1738, %v1514, %v1898
        %v2059 = vsel %vm1739, %v1260, %v1899
        %v2060 = vsel %vm1740, %v1517, %v1900
        %v2061 = vsel %vm1741, %v1263, %v1901
        %v2062 = vsel %vm1742, %v1520, %v1902
        %v2063 = vsel %vm1743, %v1266, %v1903
        %v2064 = vsel %vm1744, %v1523, %v1904
        %v2065 = vsel %vm1745, %v1269, %v1905
        %v2066 = vsel %vm1746, %v1526, %v1906
        %v2067 = vsel %vm1747, %v1272, %v1907
        %v2068 = vsel %vm1748, %v1529, %v1908
        %v2069 = vsel %vm1749, %v1275, %v1909
        %v2070 = vsel %vm1750, %v1532, %v1910
        %v2071 = vsel %vm1751, %v1278, %v1911
        %v2072 = vsel %vm1752, %v1535, %v1912
        %v2073 = vsel %vm1753, %v1281, %v1913
        %v2074 = vsel %vm1754, %v1538, %v1914
        %v2075 = vsel %vm1755, %v1284, %v1915
        %v2076 = vsel %vm1756, %v1541, %v1916
        %v2077 = vsel %vm1757, %v1287, %v1917
        %v2078 = vsel %vm1758, %v1544, %v1918
        %v2079 = vsel %vm1759, %v1290, %v1919
        %v2080 = vsel %vm1760, %v1547, %v1920
        %v2081 = vsel %vm1761, %v1293, %v1921
        %v2082 = vsel %vm1762, %v1550, %v1922
        %v2083 = vsel %vm1763, %v1296, %v1923
        %v2084 = vsel %vm1764, %v1553, %v1924
        %v2085 = vsel %vm1765, %v1299, %v1925
        %v2086 = vsel %vm1766, %v1556, %v1926
        %v2087 = vsel %vm1767, %v1302, %v1927
        %v2088 = vsel %vm1768, %v1559, %v1928
        %v2089 = vsel %vm1769, %v1305, %v1929
        %v2090 = vsel %vm1770, %v1562, %v1930
        %v2091 = vsel %vm1771, %v1308, %v1931
        %v2092 = vsel %vm1772, %v1565, %v1932
        %v2093 = vsel %vm1773, %v1311, %v1933
        %v2094 = vsel %vm1774, %v1568, %v1934
        %v2095 = vsel %vm1775, %v1314, %v1935
        %v2096 = vsel %vm1776, %v1571, %v1936
        %v2097 = vsel %vm1777, %v1317, %v1937
        %v2098 = vsel %vm1778, %v1574, %v1938
        %v2099 = vsel %vm1779, %v1320, %v1939
        %v2100 = vsel %vm1780, %v1577, %v1940
        %v2101 = vsel %vm1781, %v1323, %v1941
        %v2102 = vsel %vm1782, %v1580, %v1942
        %v2103 = vsel %vm1783, %v1326, %v1943
        %v2104 = vsel %vm1784, %v1583, %v1944
        %v2105 = vsel %vm1785, %v1329, %v1945
        %v2106 = vsel %vm1786, %v1586, %v1946
        %v2107 = vsel %vm1787, %v1332, %v1947
        %v2108 = vsel %vm1788, %v1589, %v1948
        %v2109 = vsel %vm1789, %v1335, %v1949
        %v2110 = vsel %vm1790, %v1592, %v1950
        %v2111 = vsel %vm1791, %v1338, %v1951
        %v2112 = vsel %vm1792, %v1595, %v1952
        %v2113 = vsel %vm1793, %v1341, %v1953
        %v2114 = vsel %vm1794, %v1598, %v1954
        %v2115 = vsel %vm1795, %v1344, %v1955
        %v2116 = vsel %vm1796, %v1601, %v1956
        %v2117 = vsel %vm1797, %v1347, %v1957
        %v2118 = vsel %vm1798, %v1604, %v1958
        %v2119 = vsel %vm1799, %v1350, %v1959
        %v2120 = vsel %vm1800, %v1607, %v1960
        %v2121 = vsel %vm1801, %v1353, %v1961
        %v2122 = vsel %vm1802, %v1610, %v1962
        %v2123 = vsel %vm1803, %v1356, %v1963
        %v2124 = vsel %vm1804, %v1613, %v1964
        %v2125 = vsel %vm1805, %v1359, %v1965
        %v2126 = vsel %vm1806, %v1616, %v1966
        %v2127 = vsel %vm1807, %v1362, %v1967
        %v2128 = vsel %vm1808, %v1619, %v1968
        %v2129 = vsel %vm1809, %v1365, %v1969
        %v2130 = vsel %vm1810, %v1622, %v1970
        %v2131 = vsel %vm1811, %v1368, %v1971
        %v2132 = vsel %vm1812, %v1625, %v1972
        %v2133 = vsel %vm1813, %v1371, %v1973
        %v2134 = vsel %vm1814, %v1628, %v1974
        %v2135 = vsel %vm1815, %v1374, %v1975
        %v2136 = vsel %vm1816, %v1631, %v1976
        %v2137 = vsel %vm1817, %v1377, %v1977
        %v2138 = vsel %vm1818, %v1634, %v1978
        %v2139 = vsel %vm1819, %v1380, %v1979
        %v2140 = vsel %vm1820, %v1637, %v1980
        %v2141 = vsel %vm1821, %v1383, %v1981
        %v2142 = vsel %vm1822, %v1640, %v1982
        %v2143 = vsel %vm1823, %v1386, %v1983
        %v2144 = vsel %vm1824, %v1643, %v1984
        %v2145 = vsel %vm1825, %v1389, %v1985
        %v2146 = vsel %vm1826, %v1646, %v1986
        %v2147 = vsel %vm1827, %v1392, %v1987
        %v2148 = vsel %vm1828, %v1649, %v1988
        %v2149 = vsel %vm1829, %v1395, %v1989
        %v2150 = vsel %vm1830, %v1652, %v1990
        %v2151 = vsel %vm1831, %v1398, %v1991
        %v2152 = vsel %vm1832, %v1655, %v1992
        %v2153 = vsel %vm1833, %v1401, %v1993
        %v2154 = vsel %vm1834, %v1658, %v1994
        %v2155 = vsel %vm1835, %v1404, %v1995
        %v2156 = vsel %vm1836, %v1661, %v1996
        %v2157 = vsel %vm1837, %v1407, %v1997
        %v2158 = vsel %vm1838, %v1664, %v1998
        %v2159 = vsel %vm1839, %v1410, %v1999
        %v2160 = vsel %vm1840, %v1667, %v2000
        %v2161 = vsel %vm1841, %v1413, %v2001
        %v2162 = vsel %vm1842, %v1670, %v2002
        %v2163 = vsel %vm1843, %v1416, %v2003
        %v2164 = vsel %vm1844, %v1673, %v2004
        %v2165 = vsel %vm1845, %v1419, %v2005
        %v2166 = vsel %vm1846, %v1676, %v2006
        %v2167 = vsel %vm1847, %v1422, %v2007
        %v2168 = vsel %vm1848, %v1679, %v2008
        %v2169 = vsel %vm1849, %v1425, %v2009
        %v2170 = vsel %vm1850, %v1682, %v2010
        %v2171 = vsel %vm1851, %v1428, %v2011
        %v2172 = vsel %vm1852, %v1685, %v2012
        %v2173 = vsel %vm1853, %v1431, %v2013
        %v2174 = vsel %vm1854, %v1688, %v2014
        %v2175 = vsel %vm1855, %v1434, %v2015
        %v2176 = vsel %vm1856, %v1691, %v2016
        %v2177 = vsel %vm1857, %v1437, %v2017
        %v2178 = vsel %vm1858, %v1694, %v2018
        %v2179 = vsel %vm1859, %v1440, %v2019
        %v2180 = vsel %vm1860, %v1697, %v2020
        %v2181 = vsel %vm1861, %v1443, %v2021
        %v2182 = vsel %vm1862, %v1700, %v2022
        %v2183 = vsel %vm1863, %v1446, %v2023
        %v2184 = vsel %vm1864, %v1703, %v2024
        %v2185 = vld [vmem:[%s4] sm:$0xff]
        %v2186 = vld [vmem:[%s4 + $0x8] sm:$0xff]
        %v2187 = vld [vmem:[%s4 + $0x10] sm:$0xff]
        %v2188 = vld [vmem:[%s4 + $0x18] sm:$0xff]
        %v2189 = vld [vmem:[%s4 + $0x20] sm:$0xff]
        %v2190 = vld [vmem:[%s4 + $0x28] sm:$0xff]
        %v2191 = vld [vmem:[%s4 + $0x30] sm:$0xff]
        %v2192 = vld [vmem:[%s4 + $0x38] sm:$0xff]
        %v2193 = vld [vmem:[%s4 + $0x40] sm:$0xff]
        %v2194 = vld [vmem:[%s4 + $0x48] sm:$0xff]
        %v2195 = vld [vmem:[%s4 + $0x50] sm:$0xff]
        %v2196 = vld [vmem:[%s4 + $0x58] sm:$0xff]
        %v2197 = vld [vmem:[%s4 + $0x60] sm:$0xff]
        %v2198 = vld [vmem:[%s4 + $0x68] sm:$0xff]
        %v2199 = vld [vmem:[%s4 + $0x70] sm:$0xff]
        %v2200 = vld [vmem:[%s4 + $0x78] sm:$0xff]
        %v2201 = vld [vmem:[%s4 + $0x80] sm:$0xff]
        %v2202 = vld [vmem:[%s4 + $0x88] sm:$0xff]
        %v2203 = vld [vmem:[%s4 + $0x90] sm:$0xff]
        %v2204 = vld [vmem:[%s4 + $0x98] sm:$0xff]
        %v2205 = vld [vmem:[%s4 + $0xa0] sm:$0xff]
        %v2206 = vld [vmem:[%s4 + $0xa8] sm:$0xff]
        %v2207 = vld [vmem:[%s4 + $0xb0] sm:$0xff]
        %v2208 = vld [vmem:[%s4 + $0xb8] sm:$0xff]
        %v2209 = vld [vmem:[%s4 + $0xc0] sm:$0xff]
        %v2210 = vld [vmem:[%s4 + $0xc8] sm:$0xff]
        %v2211 = vld [vmem:[%s4 + $0xd0] sm:$0xff]
        %v2212 = vld [vmem:[%s4 + $0xd8] sm:$0xff]
        %v2213 = vld [vmem:[%s4 + $0xe0] sm:$0xff]
        %v2214 = vld [vmem:[%s4 + $0xe8] sm:$0xff]
        %v2215 = vld [vmem:[%s4 + $0xf0] sm:$0xff]
        %v2216 = vld [vmem:[%s4 + $0xf8] sm:$0xff]
        %v2217 = vld [vmem:[%s4 + $0x100] sm:$0xff]
        %v2218 = vld [vmem:[%s4 + $0x108] sm:$0xff]
        %v2219 = vld [vmem:[%s4 + $0x110] sm:$0xff]
        %v2220 = vld [vmem:[%s4 + $0x118] sm:$0xff]
        %v2221 = vld [vmem:[%s4 + $0x120] sm:$0xff]
        %v2222 = vld [vmem:[%s4 + $0x128] sm:$0xff]
        %v2223 = vld [vmem:[%s4 + $0x130] sm:$0xff]
        %v2224 = vld [vmem:[%s4 + $0x138] sm:$0xff]
        %v2225 = vld [vmem:[%s4 + $0x140] sm:$0xff]
        %v2226 = vld [vmem:[%s4 + $0x148] sm:$0xff]
        %v2227 = vld [vmem:[%s4 + $0x150] sm:$0xff]
        %v2228 = vld [vmem:[%s4 + $0x158] sm:$0xff]
        %v2229 = vld [vmem:[%s4 + $0x160] sm:$0xff]
        %v2230 = vld [vmem:[%s4 + $0x168] sm:$0xff]
        %v2231 = vld [vmem:[%s4 + $0x170] sm:$0xff]
        %v2232 = vld [vmem:[%s4 + $0x178] sm:$0xff]
        %v2233 = vld [vmem:[%s4 + $0x180] sm:$0xff]
        %v2234 = vld [vmem:[%s4 + $0x188] sm:$0xff]
        %v2235 = vld [vmem:[%s4 + $0x190] sm:$0xff]
        %v2236 = vld [vmem:[%s4 + $0x198] sm:$0xff]
        %v2237 = vld [vmem:[%s4 + $0x1a0] sm:$0xff]
        %v2238 = vld [vmem:[%s4 + $0x1a8] sm:$0xff]
        %v2239 = vld [vmem:[%s4 + $0x1b0] sm:$0xff]
        %v2240 = vld [vmem:[%s4 + $0x1b8] sm:$0xff]
        %v2241 = vld [vmem:[%s4 + $0x1c0] sm:$0xff]
        %v2242 = vld [vmem:[%s4 + $0x1c8] sm:$0xff]
        %v2243 = vld [vmem:[%s4 + $0x1d0] sm:$0xff]
        %v2244 = vld [vmem:[%s4 + $0x1d8] sm:$0xff]
        %v2245 = vld [vmem:[%s4 + $0x1e0] sm:$0xff]
        %v2246 = vld [vmem:[%s4 + $0x1e8] sm:$0xff]
        %v2247 = vld [vmem:[%s4 + $0x1f0] sm:$0xff]
        %v2248 = vld [vmem:[%s4 + $0x1f8] sm:$0xff]
        %v2249 = vld [vmem:[%s4 + $0x200] sm:$0xff]
        %v2250 = vld [vmem:[%s4 + $0x208] sm:$0xff]
        %v2251 = vld [vmem:[%s4 + $0x210] sm:$0xff]
        %v2252 = vld [vmem:[%s4 + $0x218] sm:$0xff]
        %v2253 = vld [vmem:[%s4 + $0x220] sm:$0xff]
        %v2254 = vld [vmem:[%s4 + $0x228] sm:$0xff]
        %v2255 = vld [vmem:[%s4 + $0x230] sm:$0xff]
        %v2256 = vld [vmem:[%s4 + $0x238] sm:$0xff]
        %v2257 = vld [vmem:[%s4 + $0x240] sm:$0xff]
        %v2258 = vld [vmem:[%s4 + $0x248] sm:$0xff]
        %v2259 = vld [vmem:[%s4 + $0x250] sm:$0xff]
        %v2260 = vld [vmem:[%s4 + $0x258] sm:$0xff]
        %v2261 = vld [vmem:[%s4 + $0x260] sm:$0xff]
        %v2262 = vld [vmem:[%s4 + $0x268] sm:$0xff]
        %v2263 = vld [vmem:[%s4 + $0x270] sm:$0xff]
        %v2264 = vld [vmem:[%s4 + $0x278] sm:$0xff]
        %v2265 = vld [vmem:[%s4 + $0x280] sm:$0xff]
        %v2266 = vld [vmem:[%s4 + $0x288] sm:$0xff]
        %v2267 = vld [vmem:[%s4 + $0x290] sm:$0xff]
        %v2268 = vld [vmem:[%s4 + $0x298] sm:$0xff]
        %v2269 = vld [vmem:[%s4 + $0x2a0] sm:$0xff]
        %v2270 = vld [vmem:[%s4 + $0x2a8] sm:$0xff]
        %v2271 = vld [vmem:[%s4 + $0x2b0] sm:$0xff]
        %v2272 = vld [vmem:[%s4 + $0x2b8] sm:$0xff]
        %v2273 = vld [vmem:[%s4 + $0x2c0] sm:$0xff]
        %v2274 = vld [vmem:[%s4 + $0x2c8] sm:$0xff]
        %v2275 = vld [vmem:[%s4 + $0x2d0] sm:$0xff]
        %v2276 = vld [vmem:[%s4 + $0x2d8] sm:$0xff]
        %v2277 = vld [vmem:[%s4 + $0x2e0] sm:$0xff]
        %v2278 = vld [vmem:[%s4 + $0x2e8] sm:$0xff]
        %v2279 = vld [vmem:[%s4 + $0x2f0] sm:$0xff]
        %v2280 = vld [vmem:[%s4 + $0x2f8] sm:$0xff]
        %v2281 = vld [vmem:[%s4 + $0x300] sm:$0xff]
        %v2282 = vld [vmem:[%s4 + $0x308] sm:$0xff]
        %v2283 = vld [vmem:[%s4 + $0x310] sm:$0xff]
        %v2284 = vld [vmem:[%s4 + $0x318] sm:$0xff]
        %v2285 = vld [vmem:[%s4 + $0x320] sm:$0xff]
        %v2286 = vld [vmem:[%s4 + $0x328] sm:$0xff]
        %v2287 = vld [vmem:[%s4 + $0x330] sm:$0xff]
        %v2288 = vld [vmem:[%s4 + $0x338] sm:$0xff]
        %v2289 = vld [vmem:[%s4 + $0x340] sm:$0xff]
        %v2290 = vld [vmem:[%s4 + $0x348] sm:$0xff]
        %v2291 = vld [vmem:[%s4 + $0x350] sm:$0xff]
        %v2292 = vld [vmem:[%s4 + $0x358] sm:$0xff]
        %v2293 = vld [vmem:[%s4 + $0x360] sm:$0xff]
        %v2294 = vld [vmem:[%s4 + $0x368] sm:$0xff]
        %v2295 = vld [vmem:[%s4 + $0x370] sm:$0xff]
        %v2296 = vld [vmem:[%s4 + $0x378] sm:$0xff]
        %v2297 = vld [vmem:[%s4 + $0x380] sm:$0xff]
        %v2298 = vld [vmem:[%s4 + $0x388] sm:$0xff]
        %v2299 = vld [vmem:[%s4 + $0x390] sm:$0xff]
        %v2300 = vld [vmem:[%s4 + $0x398] sm:$0xff]
        %v2301 = vld [vmem:[%s4 + $0x3a0] sm:$0xff]
        %v2302 = vld [vmem:[%s4 + $0x3a8] sm:$0xff]
        %v2303 = vld [vmem:[%s4 + $0x3b0] sm:$0xff]
        %v2304 = vld [vmem:[%s4 + $0x3b8] sm:$0xff]
        %v2305 = vld [vmem:[%s4 + $0x3c0] sm:$0xff]
        %v2306 = vld [vmem:[%s4 + $0x3c8] sm:$0xff]
        %v2307 = vld [vmem:[%s4 + $0x3d0] sm:$0xff]
        %v2308 = vld [vmem:[%s4 + $0x3d8] sm:$0xff]
        %v2309 = vld [vmem:[%s4 + $0x3e0] sm:$0xff]
        %v2310 = vld [vmem:[%s4 + $0x3e8] sm:$0xff]
        %v2311 = vld [vmem:[%s4 + $0x3f0] sm:$0xff]
        %v2312 = vld [vmem:[%s4 + $0x3f8] sm:$0xff]
        %v2313 = vld [vmem:[%s4 + $0x400] sm:$0xff]
        %v2314 = vld [vmem:[%s4 + $0x408] sm:$0xff]
        %v2315 = vld [vmem:[%s4 + $0x410] sm:$0xff]
        %v2316 = vld [vmem:[%s4 + $0x418] sm:$0xff]
        %v2317 = vld [vmem:[%s4 + $0x420] sm:$0xff]
        %v2318 = vld [vmem:[%s4 + $0x428] sm:$0xff]
        %v2319 = vld [vmem:[%s4 + $0x430] sm:$0xff]
        %v2320 = vld [vmem:[%s4 + $0x438] sm:$0xff]
        %v2321 = vld [vmem:[%s4 + $0x440] sm:$0xff]
        %v2322 = vld [vmem:[%s4 + $0x448] sm:$0xff]
        %v2323 = vld [vmem:[%s4 + $0x450] sm:$0xff]
        %v2324 = vld [vmem:[%s4 + $0x458] sm:$0xff]
        %v2325 = vld [vmem:[%s4 + $0x460] sm:$0xff]
        %v2326 = vld [vmem:[%s4 + $0x468] sm:$0xff]
        %v2327 = vld [vmem:[%s4 + $0x470] sm:$0xff]
        %v2328 = vld [vmem:[%s4 + $0x478] sm:$0xff]
        %v2329 = vld [vmem:[%s4 + $0x480] sm:$0xff]
        %v2330 = vld [vmem:[%s4 + $0x488] sm:$0xff]
        %v2331 = vld [vmem:[%s4 + $0x490] sm:$0xff]
        %v2332 = vld [vmem:[%s4 + $0x498] sm:$0xff]
        %v2333 = vld [vmem:[%s4 + $0x4a0] sm:$0xff]
        %v2334 = vld [vmem:[%s4 + $0x4a8] sm:$0xff]
        %v2335 = vld [vmem:[%s4 + $0x4b0] sm:$0xff]
        %v2336 = vld [vmem:[%s4 + $0x4b8] sm:$0xff]
        %v2337 = vld [vmem:[%s4 + $0x4c0] sm:$0xff]
        %v2338 = vld [vmem:[%s4 + $0x4c8] sm:$0xff]
        %v2339 = vld [vmem:[%s4 + $0x4d0] sm:$0xff]
        %v2340 = vld [vmem:[%s4 + $0x4d8] sm:$0xff]
        %v2341 = vld [vmem:[%s4 + $0x4e0] sm:$0xff]
        %v2342 = vld [vmem:[%s4 + $0x4e8] sm:$0xff]
        %v2343 = vld [vmem:[%s4 + $0x4f0] sm:$0xff]
        %v2344 = vld [vmem:[%s4 + $0x4f8] sm:$0xff]
        %v2345 = vld [vmem:[%s4 + $0x500] sm:$0xff]
        %v2346 = vld [vmem:[%s4 + $0x508] sm:$0xff]
        %v2347 = vld [vmem:[%s4 + $0x510] sm:$0xff]
        %v2348 = vld [vmem:[%s4 + $0x518] sm:$0xff]
        %v2349 = vld [vmem:[%s4 + $0x520] sm:$0xff]
        %v2350 = vld [vmem:[%s4 + $0x528] sm:$0xff]
        %v2351 = vld [vmem:[%s4 + $0x530] sm:$0xff]
        %v2352 = vld [vmem:[%s4 + $0x538] sm:$0xff]
        %v2353 = vld [vmem:[%s4 + $0x540] sm:$0xff]
        %v2354 = vld [vmem:[%s4 + $0x548] sm:$0xff]
        %v2355 = vld [vmem:[%s4 + $0x550] sm:$0xff]
        %v2356 = vld [vmem:[%s4 + $0x558] sm:$0xff]
        %v2357 = vld [vmem:[%s4 + $0x560] sm:$0xff]
        %v2358 = vld [vmem:[%s4 + $0x568] sm:$0xff]
        %v2359 = vld [vmem:[%s4 + $0x570] sm:$0xff]
        %v2360 = vld [vmem:[%s4 + $0x578] sm:$0xff]
        %v2361 = vld [vmem:[%s4 + $0x580] sm:$0xff]
        %v2362 = vld [vmem:[%s4 + $0x588] sm:$0xff]
        %v2363 = vld [vmem:[%s4 + $0x590] sm:$0xff]
        %v2364 = vld [vmem:[%s4 + $0x598] sm:$0xff]
        %v2365 = vld [vmem:[%s4 + $0x5a0] sm:$0xff]
        %v2366 = vld [vmem:[%s4 + $0x5a8] sm:$0xff]
        %v2367 = vld [vmem:[%s4 + $0x5b0] sm:$0xff]
        %v2368 = vld [vmem:[%s4 + $0x5b8] sm:$0xff]
        %v2369 = vld [vmem:[%s4 + $0x5c0] sm:$0xff]
        %v2370 = vld [vmem:[%s4 + $0x5c8] sm:$0xff]
        %v2371 = vld [vmem:[%s4 + $0x5d0] sm:$0xff]
        %v2372 = vld [vmem:[%s4 + $0x5d8] sm:$0xff]
        %v2373 = vld [vmem:[%s4 + $0x5e0] sm:$0xff]
        %v2374 = vld [vmem:[%s4 + $0x5e8] sm:$0xff]
        %v2375 = vld [vmem:[%s4 + $0x5f0] sm:$0xff]
        %v2376 = vld [vmem:[%s4 + $0x5f8] sm:$0xff]
        %v2377 = vld [vmem:[%s4 + $0x600] sm:$0xff]
        %v2378 = vld [vmem:[%s4 + $0x608] sm:$0xff]
        %v2379 = vld [vmem:[%s4 + $0x610] sm:$0xff]
        %v2380 = vld [vmem:[%s4 + $0x618] sm:$0xff]
        %v2381 = vld [vmem:[%s4 + $0x620] sm:$0xff]
        %v2382 = vld [vmem:[%s4 + $0x628] sm:$0xff]
        %v2383 = vld [vmem:[%s4 + $0x630] sm:$0xff]
        %v2384 = vld [vmem:[%s4 + $0x638] sm:$0xff]
        %v2385 = vld [vmem:[%s4 + $0x640] sm:$0xff]
        %v2386 = vld [vmem:[%s4 + $0x648] sm:$0xff]
        %v2387 = vld [vmem:[%s4 + $0x650] sm:$0xff]
        %v2388 = vld [vmem:[%s4 + $0x658] sm:$0xff]
        %v2389 = vld [vmem:[%s4 + $0x660] sm:$0xff]
        %v2390 = vld [vmem:[%s4 + $0x668] sm:$0xff]
        %v2391 = vld [vmem:[%s4 + $0x670] sm:$0xff]
        %v2392 = vld [vmem:[%s4 + $0x678] sm:$0xff]
        %v2393 = vld [vmem:[%s4 + $0x680] sm:$0xff]
        %v2394 = vld [vmem:[%s4 + $0x688] sm:$0xff]
        %v2395 = vld [vmem:[%s4 + $0x690] sm:$0xff]
        %v2396 = vld [vmem:[%s4 + $0x698] sm:$0xff]
        %v2397 = vld [vmem:[%s4 + $0x6a0] sm:$0xff]
        %v2398 = vld [vmem:[%s4 + $0x6a8] sm:$0xff]
        %v2399 = vld [vmem:[%s4 + $0x6b0] sm:$0xff]
        %v2400 = vld [vmem:[%s4 + $0x6b8] sm:$0xff]
        %v2401 = vld [vmem:[%s4 + $0x6c0] sm:$0xff]
        %v2402 = vld [vmem:[%s4 + $0x6c8] sm:$0xff]
        %v2403 = vld [vmem:[%s4 + $0x6d0] sm:$0xff]
        %v2404 = vld [vmem:[%s4 + $0x6d8] sm:$0xff]
        %v2405 = vld [vmem:[%s4 + $0x6e0] sm:$0xff]
        %v2406 = vld [vmem:[%s4 + $0x6e8] sm:$0xff]
        %v2407 = vld [vmem:[%s4 + $0x6f0] sm:$0xff]
        %v2408 = vld [vmem:[%s4 + $0x6f8] sm:$0xff]
        %v2409 = vld [vmem:[%s4 + $0x700] sm:$0xff]
        %v2410 = vld [vmem:[%s4 + $0x708] sm:$0xff]
        %v2411 = vld [vmem:[%s4 + $0x710] sm:$0xff]
        %v2412 = vld [vmem:[%s4 + $0x718] sm:$0xff]
        %v2413 = vld [vmem:[%s4 + $0x720] sm:$0xff]
        %v2414 = vld [vmem:[%s4 + $0x728] sm:$0xff]
        %v2415 = vld [vmem:[%s4 + $0x730] sm:$0xff]
        %v2416 = vld [vmem:[%s4 + $0x738] sm:$0xff]
        %v2417 = vld [vmem:[%s4 + $0x740] sm:$0xff]
        %v2418 = vld [vmem:[%s4 + $0x748] sm:$0xff]
        %v2419 = vld [vmem:[%s4 + $0x750] sm:$0xff]
        %v2420 = vld [vmem:[%s4 + $0x758] sm:$0xff]
        %v2421 = vld [vmem:[%s4 + $0x760] sm:$0xff]
        %v2422 = vld [vmem:[%s4 + $0x768] sm:$0xff]
        %v2423 = vld [vmem:[%s4 + $0x770] sm:$0xff]
        %v2424 = vld [vmem:[%s4 + $0x778] sm:$0xff]
        %v2425 = vld [vmem:[%s4 + $0x780] sm:$0xff]
        %v2426 = vld [vmem:[%s4 + $0x788] sm:$0xff]
        %v2427 = vld [vmem:[%s4 + $0x790] sm:$0xff]
        %v2428 = vld [vmem:[%s4 + $0x798] sm:$0xff]
        %v2429 = vld [vmem:[%s4 + $0x7a0] sm:$0xff]
        %v2430 = vld [vmem:[%s4 + $0x7a8] sm:$0xff]
        %v2431 = vld [vmem:[%s4 + $0x7b0] sm:$0xff]
        %v2432 = vld [vmem:[%s4 + $0x7b8] sm:$0xff]
        %v2433 = vld [vmem:[%s4 + $0x7c0] sm:$0xff]
        %v2434 = vld [vmem:[%s4 + $0x7c8] sm:$0xff]
        %v2435 = vld [vmem:[%s4 + $0x7d0] sm:$0xff]
        %v2436 = vld [vmem:[%s4 + $0x7d8] sm:$0xff]
        %v2437 = vld [vmem:[%s4 + $0x7e0] sm:$0xff]
        %v2438 = vld [vmem:[%s4 + $0x7e8] sm:$0xff]
        %v2439 = vld [vmem:[%s4 + $0x7f0] sm:$0xff]
        %v2440 = vld [vmem:[%s4 + $0x7f8] sm:$0xff]
        %v2441 = vld [vmem:[%s4 + $0x800] sm:$0xff]
        %v2442 = vld [vmem:[%s4 + $0x808] sm:$0xff]
        %v2443 = vld [vmem:[%s4 + $0x810] sm:$0xff]
        %v2444 = vld [vmem:[%s4 + $0x818] sm:$0xff]
        %v2445 = vld [vmem:[%s4 + $0x820] sm:$0xff]
        %v2446 = vld [vmem:[%s4 + $0x828] sm:$0xff]
        %v2447 = vld [vmem:[%s4 + $0x830] sm:$0xff]
        %v2448 = vld [vmem:[%s4 + $0x838] sm:$0xff]
        %v2449 = vld [vmem:[%s4 + $0x840] sm:$0xff]
        %v2450 = vld [vmem:[%s4 + $0x848] sm:$0xff]
        %v2451 = vld [vmem:[%s4 + $0x850] sm:$0xff]
        %v2452 = vld [vmem:[%s4 + $0x858] sm:$0xff]
        %v2453 = vld [vmem:[%s4 + $0x860] sm:$0xff]
        %v2454 = vld [vmem:[%s4 + $0x868] sm:$0xff]
        %v2455 = vld [vmem:[%s4 + $0x870] sm:$0xff]
        %v2456 = vld [vmem:[%s4 + $0x878] sm:$0xff]
        %v2457 = vld [vmem:[%s4 + $0x880] sm:$0xff]
        %v2458 = vld [vmem:[%s4 + $0x888] sm:$0xff]
        %v2459 = vld [vmem:[%s4 + $0x890] sm:$0xff]
        %v2460 = vld [vmem:[%s4 + $0x898] sm:$0xff]
        %v2461 = vld [vmem:[%s4 + $0x8a0] sm:$0xff]
        %v2462 = vld [vmem:[%s4 + $0x8a8] sm:$0xff]
        %v2463 = vld [vmem:[%s4 + $0x8b0] sm:$0xff]
        %v2464 = vld [vmem:[%s4 + $0x8b8] sm:$0xff]
        %v2465 = vld [vmem:[%s4 + $0x8c0] sm:$0xff]
        %v2466 = vld [vmem:[%s4 + $0x8c8] sm:$0xff]
        %v2467 = vld [vmem:[%s4 + $0x8d0] sm:$0xff]
        %v2468 = vld [vmem:[%s4 + $0x8d8] sm:$0xff]
        %v2469 = vld [vmem:[%s4 + $0x8e0] sm:$0xff]
        %v2470 = vld [vmem:[%s4 + $0x8e8] sm:$0xff]
        %v2471 = vld [vmem:[%s4 + $0x8f0] sm:$0xff]
        %v2472 = vld [vmem:[%s4 + $0x8f8] sm:$0xff]
        %v2473 = vld [vmem:[%s4 + $0x900] sm:$0xff]
        %v2474 = vld [vmem:[%s4 + $0x908] sm:$0xff]
        %v2475 = vld [vmem:[%s4 + $0x910] sm:$0xff]
        %v2476 = vld [vmem:[%s4 + $0x918] sm:$0xff]
        %v2477 = vld [vmem:[%s4 + $0x920] sm:$0xff]
        %v2478 = vld [vmem:[%s4 + $0x928] sm:$0xff]
        %v2479 = vld [vmem:[%s4 + $0x930] sm:$0xff]
        %v2480 = vld [vmem:[%s4 + $0x938] sm:$0xff]
        %v2481 = vld [vmem:[%s4 + $0x940] sm:$0xff]
        %v2482 = vld [vmem:[%s4 + $0x948] sm:$0xff]
        %v2483 = vld [vmem:[%s4 + $0x950] sm:$0xff]
        %v2484 = vld [vmem:[%s4 + $0x958] sm:$0xff]
        %v2485 = vld [vmem:[%s4 + $0x960] sm:$0xff]
        %v2486 = vld [vmem:[%s4 + $0x968] sm:$0xff]
        %v2487 = vld [vmem:[%s4 + $0x970] sm:$0xff]
        %v2488 = vld [vmem:[%s4 + $0x978] sm:$0xff]
        %v2489 = vld [vmem:[%s4 + $0x980] sm:$0xff]
        %v2490 = vld [vmem:[%s4 + $0x988] sm:$0xff]
        %v2491 = vld [vmem:[%s4 + $0x990] sm:$0xff]
        %v2492 = vld [vmem:[%s4 + $0x998] sm:$0xff]
        %v2493 = vld [vmem:[%s4 + $0x9a0] sm:$0xff]
        %v2494 = vld [vmem:[%s4 + $0x9a8] sm:$0xff]
        %v2495 = vld [vmem:[%s4 + $0x9b0] sm:$0xff]
        %v2496 = vld [vmem:[%s4 + $0x9b8] sm:$0xff]
        %v2497 = vld [vmem:[%s4 + $0x9c0] sm:$0xff]
        %v2498 = vld [vmem:[%s4 + $0x9c8] sm:$0xff]
        %v2499 = vld [vmem:[%s4 + $0x9d0] sm:$0xff]
        %v2500 = vld [vmem:[%s4 + $0x9d8] sm:$0xff]
        %v2501 = vld [vmem:[%s4 + $0x9e0] sm:$0xff]
        %v2502 = vld [vmem:[%s4 + $0x9e8] sm:$0xff]
        %v2503 = vld [vmem:[%s4 + $0x9f0] sm:$0xff]
        %v2504 = vld [vmem:[%s4 + $0x9f8] sm:$0xff]
        %v2505 = vld [vmem:[%s4 + $0xa00] sm:$0xff]
        %v2506 = vld [vmem:[%s4 + $0xa08] sm:$0xff]
        %v2507 = vld [vmem:[%s4 + $0xa10] sm:$0xff]
        %v2508 = vld [vmem:[%s4 + $0xa18] sm:$0xff]
        %v2509 = vld [vmem:[%s4 + $0xa20] sm:$0xff]
        %v2510 = vld [vmem:[%s4 + $0xa28] sm:$0xff]
        %v2511 = vld [vmem:[%s4 + $0xa30] sm:$0xff]
        %v2512 = vld [vmem:[%s4 + $0xa38] sm:$0xff]
        %v2513 = vld [vmem:[%s4 + $0xa40] sm:$0xff]
        %v2514 = vld [vmem:[%s4 + $0xa48] sm:$0xff]
        %v2515 = vld [vmem:[%s4 + $0xa50] sm:$0xff]
        %v2516 = vld [vmem:[%s4 + $0xa58] sm:$0xff]
        %v2517 = vld [vmem:[%s4 + $0xa60] sm:$0xff]
        %v2518 = vld [vmem:[%s4 + $0xa68] sm:$0xff]
        %v2519 = vld [vmem:[%s4 + $0xa70] sm:$0xff]
        %v2520 = vld [vmem:[%s4 + $0xa78] sm:$0xff]
        %v2521 = vld [vmem:[%s4 + $0xa80] sm:$0xff]
        %v2522 = vld [vmem:[%s4 + $0xa88] sm:$0xff]
        %v2523 = vld [vmem:[%s4 + $0xa90] sm:$0xff]
        %v2524 = vld [vmem:[%s4 + $0xa98] sm:$0xff]
        %v2525 = vld [vmem:[%s4 + $0xaa0] sm:$0xff]
        %v2526 = vld [vmem:[%s4 + $0xaa8] sm:$0xff]
        %v2527 = vld [vmem:[%s4 + $0xab0] sm:$0xff]
        %v2528 = vld [vmem:[%s4 + $0xab8] sm:$0xff]
        %v2529 = vld [vmem:[%s4 + $0xac0] sm:$0xff]
        %v2530 = vld [vmem:[%s4 + $0xac8] sm:$0xff]
        %v2531 = vld [vmem:[%s4 + $0xad0] sm:$0xff]
        %v2532 = vld [vmem:[%s4 + $0xad8] sm:$0xff]
        %v2533 = vld [vmem:[%s4 + $0xae0] sm:$0xff]
        %v2534 = vld [vmem:[%s4 + $0xae8] sm:$0xff]
        %v2535 = vld [vmem:[%s4 + $0xaf0] sm:$0xff]
        %v2536 = vld [vmem:[%s4 + $0xaf8] sm:$0xff]
        %v2537 = vld [vmem:[%s4 + $0xb00] sm:$0xff]
        %v2538 = vld [vmem:[%s4 + $0xb08] sm:$0xff]
        %v2539 = vld [vmem:[%s4 + $0xb10] sm:$0xff]
        %v2540 = vld [vmem:[%s4 + $0xb18] sm:$0xff]
        %v2541 = vld [vmem:[%s4 + $0xb20] sm:$0xff]
        %v2542 = vld [vmem:[%s4 + $0xb28] sm:$0xff]
        %v2543 = vld [vmem:[%s4 + $0xb30] sm:$0xff]
        %v2544 = vld [vmem:[%s4 + $0xb38] sm:$0xff]
        %v2545 = vld [vmem:[%s4 + $0xb40] sm:$0xff]
        %v2546 = vld [vmem:[%s4 + $0xb48] sm:$0xff]
        %v2547 = vld [vmem:[%s4 + $0xb50] sm:$0xff]
        %v2548 = vld [vmem:[%s4 + $0xb58] sm:$0xff]
        %v2549 = vld [vmem:[%s4 + $0xb60] sm:$0xff]
        %v2550 = vld [vmem:[%s4 + $0xb68] sm:$0xff]
        %v2551 = vld [vmem:[%s4 + $0xb70] sm:$0xff]
        %v2552 = vld [vmem:[%s4 + $0xb78] sm:$0xff]
        %v2553 = vld [vmem:[%s4 + $0xb80] sm:$0xff]
        %v2554 = vld [vmem:[%s4 + $0xb88] sm:$0xff]
        %v2555 = vld [vmem:[%s4 + $0xb90] sm:$0xff]
        %v2556 = vld [vmem:[%s4 + $0xb98] sm:$0xff]
        %v2557 = vld [vmem:[%s4 + $0xba0] sm:$0xff]
        %v2558 = vld [vmem:[%s4 + $0xba8] sm:$0xff]
        %v2559 = vld [vmem:[%s4 + $0xbb0] sm:$0xff]
        %v2560 = vld [vmem:[%s4 + $0xbb8] sm:$0xff]
        %v2561 = vld [vmem:[%s4 + $0xbc0] sm:$0xff]
        %v2562 = vld [vmem:[%s4 + $0xbc8] sm:$0xff]
        %v2563 = vld [vmem:[%s4 + $0xbd0] sm:$0xff]
        %v2564 = vld [vmem:[%s4 + $0xbd8] sm:$0xff]
        %v2565 = vld [vmem:[%s4 + $0xbe0] sm:$0xff]
        %v2566 = vld [vmem:[%s4 + $0xbe8] sm:$0xff]
        %v2567 = vld [vmem:[%s4 + $0xbf0] sm:$0xff]
        %v2568 = vld [vmem:[%s4 + $0xbf8] sm:$0xff]
        %v2569 = vld [vmem:[%s4 + $0xc00] sm:$0xff]
        %v2570 = vld [vmem:[%s4 + $0xc08] sm:$0xff]
        %v2571 = vld [vmem:[%s4 + $0xc10] sm:$0xff]
        %v2572 = vld [vmem:[%s4 + $0xc18] sm:$0xff]
        %v2573 = vld [vmem:[%s4 + $0xc20] sm:$0xff]
        %v2574 = vld [vmem:[%s4 + $0xc28] sm:$0xff]
        %v2575 = vld [vmem:[%s4 + $0xc30] sm:$0xff]
        %v2576 = vld [vmem:[%s4 + $0xc38] sm:$0xff]
        %v2577 = vld [vmem:[%s4 + $0xc40] sm:$0xff]
        %v2578 = vld [vmem:[%s4 + $0xc48] sm:$0xff]
        %v2579 = vld [vmem:[%s4 + $0xc50] sm:$0xff]
        %v2580 = vld [vmem:[%s4 + $0xc58] sm:$0xff]
        %v2581 = vld [vmem:[%s4 + $0xc60] sm:$0xff]
        %v2582 = vld [vmem:[%s4 + $0xc68] sm:$0xff]
        %v2583 = vld [vmem:[%s4 + $0xc70] sm:$0xff]
        %v2584 = vld [vmem:[%s4 + $0xc78] sm:$0xff]
        %v2585 = vld [vmem:[%s5] sm:$0xff]
        %v2586 = vld [vmem:[%s5 + $0x8] sm:$0xff]
        %v2587 = vld [vmem:[%s5 + $0x10] sm:$0xff]
        %v2588 = vld [vmem:[%s5 + $0x18] sm:$0xff]
        %v2589 = vld [vmem:[%s5 + $0x20] sm:$0xff]
        %v2590 = vld [vmem:[%s5 + $0x28] sm:$0xff]
        %v2591 = vld [vmem:[%s5 + $0x30] sm:$0xff]
        %v2592 = vld [vmem:[%s5 + $0x38] sm:$0xff]
        %v2593 = vld [vmem:[%s5 + $0x40] sm:$0xff]
        %v2594 = vld [vmem:[%s5 + $0x48] sm:$0xff]
        %v2595 = vld [vmem:[%s5 + $0x50] sm:$0xff]
        %v2596 = vld [vmem:[%s5 + $0x58] sm:$0xff]
        %v2597 = vld [vmem:[%s5 + $0x60] sm:$0xff]
        %v2598 = vld [vmem:[%s5 + $0x68] sm:$0xff]
        %v2599 = vld [vmem:[%s5 + $0x70] sm:$0xff]
        %v2600 = vld [vmem:[%s5 + $0x78] sm:$0xff]
        %v2601 = vld [vmem:[%s5 + $0x80] sm:$0xff]
        %v2602 = vld [vmem:[%s5 + $0x88] sm:$0xff]
        %v2603 = vld [vmem:[%s5 + $0x90] sm:$0xff]
        %v2604 = vld [vmem:[%s5 + $0x98] sm:$0xff]
        %v2605 = vld [vmem:[%s5 + $0xa0] sm:$0xff]
        %v2606 = vld [vmem:[%s5 + $0xa8] sm:$0xff]
        %v2607 = vld [vmem:[%s5 + $0xb0] sm:$0xff]
        %v2608 = vld [vmem:[%s5 + $0xb8] sm:$0xff]
        %v2609 = vld [vmem:[%s5 + $0xc0] sm:$0xff]
        %v2610 = vld [vmem:[%s5 + $0xc8] sm:$0xff]
        %v2611 = vld [vmem:[%s5 + $0xd0] sm:$0xff]
        %v2612 = vld [vmem:[%s5 + $0xd8] sm:$0xff]
        %v2613 = vld [vmem:[%s5 + $0xe0] sm:$0xff]
        %v2614 = vld [vmem:[%s5 + $0xe8] sm:$0xff]
        %v2615 = vld [vmem:[%s5 + $0xf0] sm:$0xff]
        %v2616 = vld [vmem:[%s5 + $0xf8] sm:$0xff]
        %v2617 = vld [vmem:[%s5 + $0x100] sm:$0xff]
        %v2618 = vld [vmem:[%s5 + $0x108] sm:$0xff]
        %v2619 = vld [vmem:[%s5 + $0x110] sm:$0xff]
        %v2620 = vld [vmem:[%s5 + $0x118] sm:$0xff]
        %v2621 = vld [vmem:[%s5 + $0x120] sm:$0xff]
        %v2622 = vld [vmem:[%s5 + $0x128] sm:$0xff]
        %v2623 = vld [vmem:[%s5 + $0x130] sm:$0xff]
        %v2624 = vld [vmem:[%s5 + $0x138] sm:$0xff]
        %v2625 = vld [vmem:[%s5 + $0x140] sm:$0xff]
        %v2626 = vld [vmem:[%s5 + $0x148] sm:$0xff]
        %v2627 = vld [vmem:[%s5 + $0x150] sm:$0xff]
        %v2628 = vld [vmem:[%s5 + $0x158] sm:$0xff]
        %v2629 = vld [vmem:[%s5 + $0x160] sm:$0xff]
        %v2630 = vld [vmem:[%s5 + $0x168] sm:$0xff]
        %v2631 = vld [vmem:[%s5 + $0x170] sm:$0xff]
        %v2632 = vld [vmem:[%s5 + $0x178] sm:$0xff]
        %v2633 = vld [vmem:[%s5 + $0x180] sm:$0xff]
        %v2634 = vld [vmem:[%s5 + $0x188] sm:$0xff]
        %v2635 = vld [vmem:[%s5 + $0x190] sm:$0xff]
        %v2636 = vld [vmem:[%s5 + $0x198] sm:$0xff]
        %v2637 = vld [vmem:[%s5 + $0x1a0] sm:$0xff]
        %v2638 = vld [vmem:[%s5 + $0x1a8] sm:$0xff]
        %v2639 = vld [vmem:[%s5 + $0x1b0] sm:$0xff]
        %v2640 = vld [vmem:[%s5 + $0x1b8] sm:$0xff]
        %v2641 = vld [vmem:[%s5 + $0x1c0] sm:$0xff]
        %v2642 = vld [vmem:[%s5 + $0x1c8] sm:$0xff]
        %v2643 = vld [vmem:[%s5 + $0x1d0] sm:$0xff]
        %v2644 = vld [vmem:[%s5 + $0x1d8] sm:$0xff]
        %v2645 = vld [vmem:[%s5 + $0x1e0] sm:$0xff]
        %v2646 = vld [vmem:[%s5 + $0x1e8] sm:$0xff]
        %v2647 = vld [vmem:[%s5 + $0x1f0] sm:$0xff]
        %v2648 = vld [vmem:[%s5 + $0x1f8] sm:$0xff]
        %v2649 = vld [vmem:[%s5 + $0x200] sm:$0xff]
        %v2650 = vld [vmem:[%s5 + $0x208] sm:$0xff]
        %v2651 = vld [vmem:[%s5 + $0x210] sm:$0xff]
        %v2652 = vld [vmem:[%s5 + $0x218] sm:$0xff]
        %v2653 = vld [vmem:[%s5 + $0x220] sm:$0xff]
        %v2654 = vld [vmem:[%s5 + $0x228] sm:$0xff]
        %v2655 = vld [vmem:[%s5 + $0x230] sm:$0xff]
        %v2656 = vld [vmem:[%s5 + $0x238] sm:$0xff]
        %v2657 = vld [vmem:[%s5 + $0x240] sm:$0xff]
        %v2658 = vld [vmem:[%s5 + $0x248] sm:$0xff]
        %v2659 = vld [vmem:[%s5 + $0x250] sm:$0xff]
        %v2660 = vld [vmem:[%s5 + $0x258] sm:$0xff]
        %v2661 = vld [vmem:[%s5 + $0x260] sm:$0xff]
        %v2662 = vld [vmem:[%s5 + $0x268] sm:$0xff]
        %v2663 = vld [vmem:[%s5 + $0x270] sm:$0xff]
        %v2664 = vld [vmem:[%s5 + $0x278] sm:$0xff]
        %2666 = vset.pattern.permute.xlu0 0
        %2667 = vperm.xlu0 %2666, %v2585
        %v2668 = vpop.permute.xlu0 %2667
        %2671 = vset.pattern.permute.xlu0 0
        %2672 = vperm.xlu0 %2671, %v2586
        %v2673 = vpop.permute.xlu0 %2672
        %2676 = vset.pattern.permute.xlu0 0
        %2677 = vperm.xlu0 %2676, %v2587
        %v2678 = vpop.permute.xlu0 %2677
        %2681 = vset.pattern.permute.xlu0 0
        %2682 = vperm.xlu0 %2681, %v2588
        %v2683 = vpop.permute.xlu0 %2682
        %2686 = vset.pattern.permute.xlu0 0
        %2687 = vperm.xlu0 %2686, %v2589
        %v2688 = vpop.permute.xlu0 %2687
        %2691 = vset.pattern.permute.xlu0 0
        %2692 = vperm.xlu0 %2691, %v2590
        %v2693 = vpop.permute.xlu0 %2692
        %2696 = vset.pattern.permute.xlu0 0
        %2697 = vperm.xlu0 %2696, %v2591
        %v2698 = vpop.permute.xlu0 %2697
        %2701 = vset.pattern.permute.xlu0 0
        %2702 = vperm.xlu0 %2701, %v2592
        %v2703 = vpop.permute.xlu0 %2702
        %2706 = vset.pattern.permute.xlu0 0
        %2707 = vperm.xlu0 %2706, %v2593
        %v2708 = vpop.permute.xlu0 %2707
        %2711 = vset.pattern.permute.xlu0 0
        %2712 = vperm.xlu0 %2711, %v2594
        %v2713 = vpop.permute.xlu0 %2712
        %2716 = vset.pattern.permute.xlu0 0
        %2717 = vperm.xlu0 %2716, %v2595
        %v2718 = vpop.permute.xlu0 %2717
        %2721 = vset.pattern.permute.xlu0 0
        %2722 = vperm.xlu0 %2721, %v2596
        %v2723 = vpop.permute.xlu0 %2722
        %2726 = vset.pattern.permute.xlu0 0
        %2727 = vperm.xlu0 %2726, %v2597
        %v2728 = vpop.permute.xlu0 %2727
        %2731 = vset.pattern.permute.xlu0 0
        %2732 = vperm.xlu0 %2731, %v2598
        %v2733 = vpop.permute.xlu0 %2732
        %2736 = vset.pattern.permute.xlu0 0
        %2737 = vperm.xlu0 %2736, %v2599
        %v2738 = vpop.permute.xlu0 %2737
        %2741 = vset.pattern.permute.xlu0 0
        %2742 = vperm.xlu0 %2741, %v2600
        %v2743 = vpop.permute.xlu0 %2742
        %2746 = vset.pattern.permute.xlu0 0
        %2747 = vperm.xlu0 %2746, %v2601
        %v2748 = vpop.permute.xlu0 %2747
        %2751 = vset.pattern.permute.xlu0 0
        %2752 = vperm.xlu0 %2751, %v2602
        %v2753 = vpop.permute.xlu0 %2752
        %2756 = vset.pattern.permute.xlu0 0
        %2757 = vperm.xlu0 %2756, %v2603
        %v2758 = vpop.permute.xlu0 %2757
        %2761 = vset.pattern.permute.xlu0 0
        %2762 = vperm.xlu0 %2761, %v2604
        %v2763 = vpop.permute.xlu0 %2762
        %2766 = vset.pattern.permute.xlu0 0
        %2767 = vperm.xlu0 %2766, %v2605
        %v2768 = vpop.permute.xlu0 %2767
        %2771 = vset.pattern.permute.xlu0 0
        %2772 = vperm.xlu0 %2771, %v2606
        %v2773 = vpop.permute.xlu0 %2772
        %2776 = vset.pattern.permute.xlu0 0
        %2777 = vperm.xlu0 %2776, %v2607
        %v2778 = vpop.permute.xlu0 %2777
        %2781 = vset.pattern.permute.xlu0 0
        %2782 = vperm.xlu0 %2781, %v2608
        %v2783 = vpop.permute.xlu0 %2782
        %2786 = vset.pattern.permute.xlu0 0
        %2787 = vperm.xlu0 %2786, %v2609
        %v2788 = vpop.permute.xlu0 %2787
        %2791 = vset.pattern.permute.xlu0 0
        %2792 = vperm.xlu0 %2791, %v2610
        %v2793 = vpop.permute.xlu0 %2792
        %2796 = vset.pattern.permute.xlu0 0
        %2797 = vperm.xlu0 %2796, %v2611
        %v2798 = vpop.permute.xlu0 %2797
        %2801 = vset.pattern.permute.xlu0 0
        %2802 = vperm.xlu0 %2801, %v2612
        %v2803 = vpop.permute.xlu0 %2802
        %2806 = vset.pattern.permute.xlu0 0
        %2807 = vperm.xlu0 %2806, %v2613
        %v2808 = vpop.permute.xlu0 %2807
        %2811 = vset.pattern.permute.xlu0 0
        %2812 = vperm.xlu0 %2811, %v2614
        %v2813 = vpop.permute.xlu0 %2812
        %2816 = vset.pattern.permute.xlu0 0
        %2817 = vperm.xlu0 %2816, %v2615
        %v2818 = vpop.permute.xlu0 %2817
        %2821 = vset.pattern.permute.xlu0 0
        %2822 = vperm.xlu0 %2821, %v2616
        %v2823 = vpop.permute.xlu0 %2822
        %2826 = vset.pattern.permute.xlu0 0
        %2827 = vperm.xlu0 %2826, %v2617
        %v2828 = vpop.permute.xlu0 %2827
        %2831 = vset.pattern.permute.xlu0 0
        %2832 = vperm.xlu0 %2831, %v2618
        %v2833 = vpop.permute.xlu0 %2832
        %2836 = vset.pattern.permute.xlu0 0
        %2837 = vperm.xlu0 %2836, %v2619
        %v2838 = vpop.permute.xlu0 %2837
        %2841 = vset.pattern.permute.xlu0 0
        %2842 = vperm.xlu0 %2841, %v2620
        %v2843 = vpop.permute.xlu0 %2842
        %2846 = vset.pattern.permute.xlu0 0
        %2847 = vperm.xlu0 %2846, %v2621
        %v2848 = vpop.permute.xlu0 %2847
        %2851 = vset.pattern.permute.xlu0 0
        %2852 = vperm.xlu0 %2851, %v2622
        %v2853 = vpop.permute.xlu0 %2852
        %2856 = vset.pattern.permute.xlu0 0
        %2857 = vperm.xlu0 %2856, %v2623
        %v2858 = vpop.permute.xlu0 %2857
        %2861 = vset.pattern.permute.xlu0 0
        %2862 = vperm.xlu0 %2861, %v2624
        %v2863 = vpop.permute.xlu0 %2862
        %2866 = vset.pattern.permute.xlu0 0
        %2867 = vperm.xlu0 %2866, %v2625
        %v2868 = vpop.permute.xlu0 %2867
        %2871 = vset.pattern.permute.xlu0 0
        %2872 = vperm.xlu0 %2871, %v2626
        %v2873 = vpop.permute.xlu0 %2872
        %2876 = vset.pattern.permute.xlu0 0
        %2877 = vperm.xlu0 %2876, %v2627
        %v2878 = vpop.permute.xlu0 %2877
        %2881 = vset.pattern.permute.xlu0 0
        %2882 = vperm.xlu0 %2881, %v2628
        %v2883 = vpop.permute.xlu0 %2882
        %2886 = vset.pattern.permute.xlu0 0
        %2887 = vperm.xlu0 %2886, %v2629
        %v2888 = vpop.permute.xlu0 %2887
        %2891 = vset.pattern.permute.xlu0 0
        %2892 = vperm.xlu0 %2891, %v2630
        %v2893 = vpop.permute.xlu0 %2892
        %2896 = vset.pattern.permute.xlu0 0
        %2897 = vperm.xlu0 %2896, %v2631
        %v2898 = vpop.permute.xlu0 %2897
        %2901 = vset.pattern.permute.xlu0 0
        %2902 = vperm.xlu0 %2901, %v2632
        %v2903 = vpop.permute.xlu0 %2902
        %2906 = vset.pattern.permute.xlu0 0
        %2907 = vperm.xlu0 %2906, %v2633
        %v2908 = vpop.permute.xlu0 %2907
        %2911 = vset.pattern.permute.xlu0 0
        %2912 = vperm.xlu0 %2911, %v2634
        %v2913 = vpop.permute.xlu0 %2912
        %2916 = vset.pattern.permute.xlu0 0
        %2917 = vperm.xlu0 %2916, %v2635
        %v2918 = vpop.permute.xlu0 %2917
        %2921 = vset.pattern.permute.xlu0 0
        %2922 = vperm.xlu0 %2921, %v2636
        %v2923 = vpop.permute.xlu0 %2922
        %2926 = vset.pattern.permute.xlu0 0
        %2927 = vperm.xlu0 %2926, %v2637
        %v2928 = vpop.permute.xlu0 %2927
        %2931 = vset.pattern.permute.xlu0 0
        %2932 = vperm.xlu0 %2931, %v2638
        %v2933 = vpop.permute.xlu0 %2932
        %2936 = vset.pattern.permute.xlu0 0
        %2937 = vperm.xlu0 %2936, %v2639
        %v2938 = vpop.permute.xlu0 %2937
        %2941 = vset.pattern.permute.xlu0 0
        %2942 = vperm.xlu0 %2941, %v2640
        %v2943 = vpop.permute.xlu0 %2942
        %2946 = vset.pattern.permute.xlu0 0
        %2947 = vperm.xlu0 %2946, %v2641
        %v2948 = vpop.permute.xlu0 %2947
        %2951 = vset.pattern.permute.xlu0 0
        %2952 = vperm.xlu0 %2951, %v2642
        %v2953 = vpop.permute.xlu0 %2952
        %2956 = vset.pattern.permute.xlu0 0
        %2957 = vperm.xlu0 %2956, %v2643
        %v2958 = vpop.permute.xlu0 %2957
        %2961 = vset.pattern.permute.xlu0 0
        %2962 = vperm.xlu0 %2961, %v2644
        %v2963 = vpop.permute.xlu0 %2962
        %2966 = vset.pattern.permute.xlu0 0
        %2967 = vperm.xlu0 %2966, %v2645
        %v2968 = vpop.permute.xlu0 %2967
        %2971 = vset.pattern.permute.xlu0 0
        %2972 = vperm.xlu0 %2971, %v2646
        %v2973 = vpop.permute.xlu0 %2972
        %2976 = vset.pattern.permute.xlu0 0
        %2977 = vperm.xlu0 %2976, %v2647
        %v2978 = vpop.permute.xlu0 %2977
        %2981 = vset.pattern.permute.xlu0 0
        %2982 = vperm.xlu0 %2981, %v2648
        %v2983 = vpop.permute.xlu0 %2982
        %2986 = vset.pattern.permute.xlu0 0
        %2987 = vperm.xlu0 %2986, %v2649
        %v2988 = vpop.permute.xlu0 %2987
        %2991 = vset.pattern.permute.xlu0 0
        %2992 = vperm.xlu0 %2991, %v2650
        %v2993 = vpop.permute.xlu0 %2992
        %2996 = vset.pattern.permute.xlu0 0
        %2997 = vperm.xlu0 %2996, %v2651
        %v2998 = vpop.permute.xlu0 %2997
        %3001 = vset.pattern.permute.xlu0 0
        %3002 = vperm.xlu0 %3001, %v2652
        %v3003 = vpop.permute.xlu0 %3002
        %3006 = vset.pattern.permute.xlu0 0
        %3007 = vperm.xlu0 %3006, %v2653
        %v3008 = vpop.permute.xlu0 %3007
        %3011 = vset.pattern.permute.xlu0 0
        %3012 = vperm.xlu0 %3011, %v2654
        %v3013 = vpop.permute.xlu0 %3012
        %3016 = vset.pattern.permute.xlu0 0
        %3017 = vperm.xlu0 %3016, %v2655
        %v3018 = vpop.permute.xlu0 %3017
        %3021 = vset.pattern.permute.xlu0 0
        %3022 = vperm.xlu0 %3021, %v2656
        %v3023 = vpop.permute.xlu0 %3022
        %3026 = vset.pattern.permute.xlu0 0
        %3027 = vperm.xlu0 %3026, %v2657
        %v3028 = vpop.permute.xlu0 %3027
        %3031 = vset.pattern.permute.xlu0 0
        %3032 = vperm.xlu0 %3031, %v2658
        %v3033 = vpop.permute.xlu0 %3032
        %3036 = vset.pattern.permute.xlu0 0
        %3037 = vperm.xlu0 %3036, %v2659
        %v3038 = vpop.permute.xlu0 %3037
        %3041 = vset.pattern.permute.xlu0 0
        %3042 = vperm.xlu0 %3041, %v2660
        %v3043 = vpop.permute.xlu0 %3042
        %3046 = vset.pattern.permute.xlu0 0
        %3047 = vperm.xlu0 %3046, %v2661
        %v3048 = vpop.permute.xlu0 %3047
        %3051 = vset.pattern.permute.xlu0 0
        %3052 = vperm.xlu0 %3051, %v2662
        %v3053 = vpop.permute.xlu0 %3052
        %3056 = vset.pattern.permute.xlu0 0
        %3057 = vperm.xlu0 %3056, %v2663
        %v3058 = vpop.permute.xlu0 %3057
        %3061 = vset.pattern.permute.xlu0 0
        %3062 = vperm.xlu0 %3061, %v2664
        %v3063 = vpop.permute.xlu0 %3062
        %3065 = vmatpush.msra.mxu0 %v2055
        %3066 = vmatpush.msra.mxu0 %v2053
        %3067 = vmatpush.msra.mxu0 %v2051
        %3068 = vmatpush.msra.mxu0 %v2049
        %3069 = vmatpush.msra.mxu0 %v2047
        %3070 = vmatpush.msra.mxu0 %v2045
        %3071 = vmatpush.msra.mxu0 %v2043
        %3072 = vmatpush.msra.mxu0 %v2041
        %3073 = vmatpush.msra.mxu0 %v2039
        %3074 = vmatpush.msra.mxu0 %v2037
        %3075 = vmatpush.msra.mxu0 %v2035
        %3076 = vmatpush.msra.mxu0 %v2033
        %3077 = vmatpush.msra.mxu0 %v2031
        %3078 = vmatpush.msra.mxu0 %v2029
        %3079 = vmatpush.msra.mxu0 %v2027
        %3080 = vmatpush.msra.mxu0 %v2025
        %3081 = vmatmul.f32.gmra.mxu0 %v2185
        %v3082 = vpop.f32.mrf.mxu0
        %v3083 = vadd.f32 %v2668, %v3082
        %3084 = vmatmul.f32.gmra.mxu0 %v2190
        %v3085 = vpop.f32.mrf.mxu0
        %v3086 = vadd.f32 %v2673, %v3085
        %3087 = vmatmul.f32.gmra.mxu0 %v2195
        %v3088 = vpop.f32.mrf.mxu0
        %v3089 = vadd.f32 %v2678, %v3088
        %3090 = vmatmul.f32.gmra.mxu0 %v2200
        %v3091 = vpop.f32.mrf.mxu0
        %v3092 = vadd.f32 %v2683, %v3091
        %3093 = vmatmul.f32.gmra.mxu0 %v2205
        %v3094 = vpop.f32.mrf.mxu0
        %v3095 = vadd.f32 %v2688, %v3094
        %3096 = vmatmul.f32.gmra.mxu0 %v2210
        %v3097 = vpop.f32.mrf.mxu0
        %v3098 = vadd.f32 %v2693, %v3097
        %3099 = vmatmul.f32.gmra.mxu0 %v2215
        %v3100 = vpop.f32.mrf.mxu0
        %v3101 = vadd.f32 %v2698, %v3100
        %3102 = vmatmul.f32.gmra.mxu0 %v2220
        %v3103 = vpop.f32.mrf.mxu0
        %v3104 = vadd.f32 %v2703, %v3103
        %3105 = vmatmul.f32.gmra.mxu0 %v2225
        %v3106 = vpop.f32.mrf.mxu0
        %v3107 = vadd.f32 %v2708, %v3106
        %3108 = vmatmul.f32.gmra.mxu0 %v2230
        %v3109 = vpop.f32.mrf.mxu0
        %v3110 = vadd.f32 %v2713, %v3109
        %3111 = vmatmul.f32.gmra.mxu0 %v2235
        %v3112 = vpop.f32.mrf.mxu0
        %v3113 = vadd.f32 %v2718, %v3112
        %3114 = vmatmul.f32.gmra.mxu0 %v2240
        %v3115 = vpop.f32.mrf.mxu0
        %v3116 = vadd.f32 %v2723, %v3115
        %3117 = vmatmul.f32.gmra.mxu0 %v2245
        %v3118 = vpop.f32.mrf.mxu0
        %v3119 = vadd.f32 %v2728, %v3118
        %3120 = vmatmul.f32.gmra.mxu0 %v2250
        %v3121 = vpop.f32.mrf.mxu0
        %v3122 = vadd.f32 %v2733, %v3121
        %3123 = vmatmul.f32.gmra.mxu0 %v2255
        %v3124 = vpop.f32.mrf.mxu0
        %v3125 = vadd.f32 %v2738, %v3124
        %3126 = vmatmul.f32.gmra.mxu0 %v2260
        %v3127 = vpop.f32.mrf.mxu0
        %v3128 = vadd.f32 %v2743, %v3127
        %3129 = vmatmul.f32.gmra.mxu0 %v2265
        %v3130 = vpop.f32.mrf.mxu0
        %v3131 = vadd.f32 %v2748, %v3130
        %3132 = vmatmul.f32.gmra.mxu0 %v2270
        %v3133 = vpop.f32.mrf.mxu0
        %v3134 = vadd.f32 %v2753, %v3133
        %3135 = vmatmul.f32.gmra.mxu0 %v2275
        %v3136 = vpop.f32.mrf.mxu0
        %v3137 = vadd.f32 %v2758, %v3136
        %3138 = vmatmul.f32.gmra.mxu0 %v2280
        %v3139 = vpop.f32.mrf.mxu0
        %v3140 = vadd.f32 %v2763, %v3139
        %3141 = vmatmul.f32.gmra.mxu0 %v2285
        %v3142 = vpop.f32.mrf.mxu0
        %v3143 = vadd.f32 %v2768, %v3142
        %3144 = vmatmul.f32.gmra.mxu0 %v2290
        %v3145 = vpop.f32.mrf.mxu0
        %v3146 = vadd.f32 %v2773, %v3145
        %3147 = vmatmul.f32.gmra.mxu0 %v2295
        %v3148 = vpop.f32.mrf.mxu0
        %v3149 = vadd.f32 %v2778, %v3148
        %3150 = vmatmul.f32.gmra.mxu0 %v2300
        %v3151 = vpop.f32.mrf.mxu0
        %v3152 = vadd.f32 %v2783, %v3151
        %3153 = vmatmul.f32.gmra.mxu0 %v2305
        %v3154 = vpop.f32.mrf.mxu0
        %v3155 = vadd.f32 %v2788, %v3154
        %3156 = vmatmul.f32.gmra.mxu0 %v2310
        %v3157 = vpop.f32.mrf.mxu0
        %v3158 = vadd.f32 %v2793, %v3157
        %3159 = vmatmul.f32.gmra.mxu0 %v2315
        %v3160 = vpop.f32.mrf.mxu0
        %v3161 = vadd.f32 %v2798, %v3160
        %3162 = vmatmul.f32.gmra.mxu0 %v2320
        %v3163 = vpop.f32.mrf.mxu0
        %v3164 = vadd.f32 %v2803, %v3163
        %3165 = vmatmul.f32.gmra.mxu0 %v2325
        %v3166 = vpop.f32.mrf.mxu0
        %v3167 = vadd.f32 %v2808, %v3166
        %3168 = vmatmul.f32.gmra.mxu0 %v2330
        %v3169 = vpop.f32.mrf.mxu0
        %v3170 = vadd.f32 %v2813, %v3169
        %3171 = vmatmul.f32.gmra.mxu0 %v2335
        %v3172 = vpop.f32.mrf.mxu0
        %v3173 = vadd.f32 %v2818, %v3172
        %3174 = vmatmul.f32.gmra.mxu0 %v2340
        %v3175 = vpop.f32.mrf.mxu0
        %v3176 = vadd.f32 %v2823, %v3175
        %3177 = vmatmul.f32.gmra.mxu0 %v2345
        %v3178 = vpop.f32.mrf.mxu0
        %v3179 = vadd.f32 %v2828, %v3178
        %3180 = vmatmul.f32.gmra.mxu0 %v2350
        %v3181 = vpop.f32.mrf.mxu0
        %v3182 = vadd.f32 %v2833, %v3181
        %3183 = vmatmul.f32.gmra.mxu0 %v2355
        %v3184 = vpop.f32.mrf.mxu0
        %v3185 = vadd.f32 %v2838, %v3184
        %3186 = vmatmul.f32.gmra.mxu0 %v2360
        %v3187 = vpop.f32.mrf.mxu0
        %v3188 = vadd.f32 %v2843, %v3187
        %3189 = vmatmul.f32.gmra.mxu0 %v2365
        %v3190 = vpop.f32.mrf.mxu0
        %v3191 = vadd.f32 %v2848, %v3190
        %3192 = vmatmul.f32.gmra.mxu0 %v2370
        %v3193 = vpop.f32.mrf.mxu0
        %v3194 = vadd.f32 %v2853, %v3193
        %3195 = vmatmul.f32.gmra.mxu0 %v2375
        %v3196 = vpop.f32.mrf.mxu0
        %v3197 = vadd.f32 %v2858, %v3196
        %3198 = vmatmul.f32.gmra.mxu0 %v2380
        %v3199 = vpop.f32.mrf.mxu0
        %v3200 = vadd.f32 %v2863, %v3199
        %3201 = vmatmul.f32.gmra.mxu0 %v2385
        %v3202 = vpop.f32.mrf.mxu0
        %v3203 = vadd.f32 %v2868, %v3202
        %3204 = vmatmul.f32.gmra.mxu0 %v2390
        %v3205 = vpop.f32.mrf.mxu0
        %v3206 = vadd.f32 %v2873, %v3205
        %3207 = vmatmul.f32.gmra.mxu0 %v2395
        %v3208 = vpop.f32.mrf.mxu0
        %v3209 = vadd.f32 %v2878, %v3208
        %3210 = vmatmul.f32.gmra.mxu0 %v2400
        %v3211 = vpop.f32.mrf.mxu0
        %v3212 = vadd.f32 %v2883, %v3211
        %3213 = vmatmul.f32.gmra.mxu0 %v2405
        %v3214 = vpop.f32.mrf.mxu0
        %v3215 = vadd.f32 %v2888, %v3214
        %3216 = vmatmul.f32.gmra.mxu0 %v2410
        %v3217 = vpop.f32.mrf.mxu0
        %v3218 = vadd.f32 %v2893, %v3217
        %3219 = vmatmul.f32.gmra.mxu0 %v2415
        %v3220 = vpop.f32.mrf.mxu0
        %v3221 = vadd.f32 %v2898, %v3220
        %3222 = vmatmul.f32.gmra.mxu0 %v2420
        %v3223 = vpop.f32.mrf.mxu0
        %v3224 = vadd.f32 %v2903, %v3223
        %3225 = vmatmul.f32.gmra.mxu0 %v2425
        %v3226 = vpop.f32.mrf.mxu0
        %v3227 = vadd.f32 %v2908, %v3226
        %3228 = vmatmul.f32.gmra.mxu0 %v2430
        %v3229 = vpop.f32.mrf.mxu0
        %v3230 = vadd.f32 %v2913, %v3229
        %3231 = vmatmul.f32.gmra.mxu0 %v2435
        %v3232 = vpop.f32.mrf.mxu0
        %v3233 = vadd.f32 %v2918, %v3232
        %3234 = vmatmul.f32.gmra.mxu0 %v2440
        %v3235 = vpop.f32.mrf.mxu0
        %v3236 = vadd.f32 %v2923, %v3235
        %3237 = vmatmul.f32.gmra.mxu0 %v2445
        %v3238 = vpop.f32.mrf.mxu0
        %v3239 = vadd.f32 %v2928, %v3238
        %3240 = vmatmul.f32.gmra.mxu0 %v2450
        %v3241 = vpop.f32.mrf.mxu0
        %v3242 = vadd.f32 %v2933, %v3241
        %3243 = vmatmul.f32.gmra.mxu0 %v2455
        %v3244 = vpop.f32.mrf.mxu0
        %v3245 = vadd.f32 %v2938, %v3244
        %3246 = vmatmul.f32.gmra.mxu0 %v2460
        %v3247 = vpop.f32.mrf.mxu0
        %v3248 = vadd.f32 %v2943, %v3247
        %3249 = vmatmul.f32.gmra.mxu0 %v2465
        %v3250 = vpop.f32.mrf.mxu0
        %v3251 = vadd.f32 %v2948, %v3250
        %3252 = vmatmul.f32.gmra.mxu0 %v2470
        %v3253 = vpop.f32.mrf.mxu0
        %v3254 = vadd.f32 %v2953, %v3253
        %3255 = vmatmul.f32.gmra.mxu0 %v2475
        %v3256 = vpop.f32.mrf.mxu0
        %v3257 = vadd.f32 %v2958, %v3256
        %3258 = vmatmul.f32.gmra.mxu0 %v2480
        %v3259 = vpop.f32.mrf.mxu0
        %v3260 = vadd.f32 %v2963, %v3259
        %3261 = vmatmul.f32.gmra.mxu0 %v2485
        %v3262 = vpop.f32.mrf.mxu0
        %v3263 = vadd.f32 %v2968, %v3262
        %3264 = vmatmul.f32.gmra.mxu0 %v2490
        %v3265 = vpop.f32.mrf.mxu0
        %v3266 = vadd.f32 %v2973, %v3265
        %3267 = vmatmul.f32.gmra.mxu0 %v2495
        %v3268 = vpop.f32.mrf.mxu0
        %v3269 = vadd.f32 %v2978, %v3268
        %3270 = vmatmul.f32.gmra.mxu0 %v2500
        %v3271 = vpop.f32.mrf.mxu0
        %v3272 = vadd.f32 %v2983, %v3271
        %3273 = vmatmul.f32.gmra.mxu0 %v2505
        %v3274 = vpop.f32.mrf.mxu0
        %v3275 = vadd.f32 %v2988, %v3274
        %3276 = vmatmul.f32.gmra.mxu0 %v2510
        %v3277 = vpop.f32.mrf.mxu0
        %v3278 = vadd.f32 %v2993, %v3277
        %3279 = vmatmul.f32.gmra.mxu0 %v2515
        %v3280 = vpop.f32.mrf.mxu0
        %v3281 = vadd.f32 %v2998, %v3280
        %3282 = vmatmul.f32.gmra.mxu0 %v2520
        %v3283 = vpop.f32.mrf.mxu0
        %v3284 = vadd.f32 %v3003, %v3283
        %3285 = vmatmul.f32.gmra.mxu0 %v2525
        %v3286 = vpop.f32.mrf.mxu0
        %v3287 = vadd.f32 %v3008, %v3286
        %3288 = vmatmul.f32.gmra.mxu0 %v2530
        %v3289 = vpop.f32.mrf.mxu0
        %v3290 = vadd.f32 %v3013, %v3289
        %3291 = vmatmul.f32.gmra.mxu0 %v2535
        %v3292 = vpop.f32.mrf.mxu0
        %v3293 = vadd.f32 %v3018, %v3292
        %3294 = vmatmul.f32.gmra.mxu0 %v2540
        %v3295 = vpop.f32.mrf.mxu0
        %v3296 = vadd.f32 %v3023, %v3295
        %3297 = vmatmul.f32.gmra.mxu0 %v2545
        %v3298 = vpop.f32.mrf.mxu0
        %v3299 = vadd.f32 %v3028, %v3298
        %3300 = vmatmul.f32.gmra.mxu0 %v2550
        %v3301 = vpop.f32.mrf.mxu0
        %v3302 = vadd.f32 %v3033, %v3301
        %3303 = vmatmul.f32.gmra.mxu0 %v2555
        %v3304 = vpop.f32.mrf.mxu0
        %v3305 = vadd.f32 %v3038, %v3304
        %3306 = vmatmul.f32.gmra.mxu0 %v2560
        %v3307 = vpop.f32.mrf.mxu0
        %v3308 = vadd.f32 %v3043, %v3307
        %3309 = vmatmul.f32.gmra.mxu0 %v2565
        %v3310 = vpop.f32.mrf.mxu0
        %v3311 = vadd.f32 %v3048, %v3310
        %3312 = vmatmul.f32.gmra.mxu0 %v2570
        %v3313 = vpop.f32.mrf.mxu0
        %v3314 = vadd.f32 %v3053, %v3313
        %3315 = vmatmul.f32.gmra.mxu0 %v2575
        %v3316 = vpop.f32.mrf.mxu0
        %v3317 = vadd.f32 %v3058, %v3316
        %3318 = vmatmul.f32.gmra.mxu0 %v2580
        %v3319 = vpop.f32.mrf.mxu0
        %v3320 = vadd.f32 %v3063, %v3319
        %3321 = vdwg.mxu0
        %3322 = vmatpush.msra.mxu0 %v2087
        %3323 = vmatpush.msra.mxu0 %v2085
        %3324 = vmatpush.msra.mxu0 %v2083
        %3325 = vmatpush.msra.mxu0 %v2081
        %3326 = vmatpush.msra.mxu0 %v2079
        %3327 = vmatpush.msra.mxu0 %v2077
        %3328 = vmatpush.msra.mxu0 %v2075
        %3329 = vmatpush.msra.mxu0 %v2073
        %3330 = vmatpush.msra.mxu0 %v2071
        %3331 = vmatpush.msra.mxu0 %v2069
        %3332 = vmatpush.msra.mxu0 %v2067
        %3333 = vmatpush.msra.mxu0 %v2065
        %3334 = vmatpush.msra.mxu0 %v2063
        %3335 = vmatpush.msra.mxu0 %v2061
        %3336 = vmatpush.msra.mxu0 %v2059
        %3337 = vmatpush.msra.mxu0 %v2057
        %3338 = vmatmul.f32.gmra.mxu0 %v2186
        %v3339 = vpop.f32.mrf.mxu0
        %v3340 = vadd.f32 %v3083, %v3339
        %3341 = vmatmul.f32.gmra.mxu0 %v2191
        %v3342 = vpop.f32.mrf.mxu0
        %v3343 = vadd.f32 %v3086, %v3342
        %3344 = vmatmul.f32.gmra.mxu0 %v2196
        %v3345 = vpop.f32.mrf.mxu0
        %v3346 = vadd.f32 %v3089, %v3345
        %3347 = vmatmul.f32.gmra.mxu0 %v2201
        %v3348 = vpop.f32.mrf.mxu0
        %v3349 = vadd.f32 %v3092, %v3348
        %3350 = vmatmul.f32.gmra.mxu0 %v2206
        %v3351 = vpop.f32.mrf.mxu0
        %v3352 = vadd.f32 %v3095, %v3351
        %3353 = vmatmul.f32.gmra.mxu0 %v2211
        %v3354 = vpop.f32.mrf.mxu0
        %v3355 = vadd.f32 %v3098, %v3354
        %3356 = vmatmul.f32.gmra.mxu0 %v2216
        %v3357 = vpop.f32.mrf.mxu0
        %v3358 = vadd.f32 %v3101, %v3357
        %3359 = vmatmul.f32.gmra.mxu0 %v2221
        %v3360 = vpop.f32.mrf.mxu0
        %v3361 = vadd.f32 %v3104, %v3360
        %3362 = vmatmul.f32.gmra.mxu0 %v2226
        %v3363 = vpop.f32.mrf.mxu0
        %v3364 = vadd.f32 %v3107, %v3363
        %3365 = vmatmul.f32.gmra.mxu0 %v2231
        %v3366 = vpop.f32.mrf.mxu0
        %v3367 = vadd.f32 %v3110, %v3366
        %3368 = vmatmul.f32.gmra.mxu0 %v2236
        %v3369 = vpop.f32.mrf.mxu0
        %v3370 = vadd.f32 %v3113, %v3369
        %3371 = vmatmul.f32.gmra.mxu0 %v2241
        %v3372 = vpop.f32.mrf.mxu0
        %v3373 = vadd.f32 %v3116, %v3372
        %3374 = vmatmul.f32.gmra.mxu0 %v2246
        %v3375 = vpop.f32.mrf.mxu0
        %v3376 = vadd.f32 %v3119, %v3375
        %3377 = vmatmul.f32.gmra.mxu0 %v2251
        %v3378 = vpop.f32.mrf.mxu0
        %v3379 = vadd.f32 %v3122, %v3378
        %3380 = vmatmul.f32.gmra.mxu0 %v2256
        %v3381 = vpop.f32.mrf.mxu0
        %v3382 = vadd.f32 %v3125, %v3381
        %3383 = vmatmul.f32.gmra.mxu0 %v2261
        %v3384 = vpop.f32.mrf.mxu0
        %v3385 = vadd.f32 %v3128, %v3384
        %3386 = vmatmul.f32.gmra.mxu0 %v2266
        %v3387 = vpop.f32.mrf.mxu0
        %v3388 = vadd.f32 %v3131, %v3387
        %3389 = vmatmul.f32.gmra.mxu0 %v2271
        %v3390 = vpop.f32.mrf.mxu0
        %v3391 = vadd.f32 %v3134, %v3390
        %3392 = vmatmul.f32.gmra.mxu0 %v2276
        %v3393 = vpop.f32.mrf.mxu0
        %v3394 = vadd.f32 %v3137, %v3393
        %3395 = vmatmul.f32.gmra.mxu0 %v2281
        %v3396 = vpop.f32.mrf.mxu0
        %v3397 = vadd.f32 %v3140, %v3396
        %3398 = vmatmul.f32.gmra.mxu0 %v2286
        %v3399 = vpop.f32.mrf.mxu0
        %v3400 = vadd.f32 %v3143, %v3399
        %3401 = vmatmul.f32.gmra.mxu0 %v2291
        %v3402 = vpop.f32.mrf.mxu0
        %v3403 = vadd.f32 %v3146, %v3402
        %3404 = vmatmul.f32.gmra.mxu0 %v2296
        %v3405 = vpop.f32.mrf.mxu0
        %v3406 = vadd.f32 %v3149, %v3405
        %3407 = vmatmul.f32.gmra.mxu0 %v2301
        %v3408 = vpop.f32.mrf.mxu0
        %v3409 = vadd.f32 %v3152, %v3408
        %3410 = vmatmul.f32.gmra.mxu0 %v2306
        %v3411 = vpop.f32.mrf.mxu0
        %v3412 = vadd.f32 %v3155, %v3411
        %3413 = vmatmul.f32.gmra.mxu0 %v2311
        %v3414 = vpop.f32.mrf.mxu0
        %v3415 = vadd.f32 %v3158, %v3414
        %3416 = vmatmul.f32.gmra.mxu0 %v2316
        %v3417 = vpop.f32.mrf.mxu0
        %v3418 = vadd.f32 %v3161, %v3417
        %3419 = vmatmul.f32.gmra.mxu0 %v2321
        %v3420 = vpop.f32.mrf.mxu0
        %v3421 = vadd.f32 %v3164, %v3420
        %3422 = vmatmul.f32.gmra.mxu0 %v2326
        %v3423 = vpop.f32.mrf.mxu0
        %v3424 = vadd.f32 %v3167, %v3423
        %3425 = vmatmul.f32.gmra.mxu0 %v2331
        %v3426 = vpop.f32.mrf.mxu0
        %v3427 = vadd.f32 %v3170, %v3426
        %3428 = vmatmul.f32.gmra.mxu0 %v2336
        %v3429 = vpop.f32.mrf.mxu0
        %v3430 = vadd.f32 %v3173, %v3429
        %3431 = vmatmul.f32.gmra.mxu0 %v2341
        %v3432 = vpop.f32.mrf.mxu0
        %v3433 = vadd.f32 %v3176, %v3432
        %3434 = vmatmul.f32.gmra.mxu0 %v2346
        %v3435 = vpop.f32.mrf.mxu0
        %v3436 = vadd.f32 %v3179, %v3435
        %3437 = vmatmul.f32.gmra.mxu0 %v2351
        %v3438 = vpop.f32.mrf.mxu0
        %v3439 = vadd.f32 %v3182, %v3438
        %3440 = vmatmul.f32.gmra.mxu0 %v2356
        %v3441 = vpop.f32.mrf.mxu0
        %v3442 = vadd.f32 %v3185, %v3441
        %3443 = vmatmul.f32.gmra.mxu0 %v2361
        %v3444 = vpop.f32.mrf.mxu0
        %v3445 = vadd.f32 %v3188, %v3444
        %3446 = vmatmul.f32.gmra.mxu0 %v2366
        %v3447 = vpop.f32.mrf.mxu0
        %v3448 = vadd.f32 %v3191, %v3447
        %3449 = vmatmul.f32.gmra.mxu0 %v2371
        %v3450 = vpop.f32.mrf.mxu0
        %v3451 = vadd.f32 %v3194, %v3450
        %3452 = vmatmul.f32.gmra.mxu0 %v2376
        %v3453 = vpop.f32.mrf.mxu0
        %v3454 = vadd.f32 %v3197, %v3453
        %3455 = vmatmul.f32.gmra.mxu0 %v2381
        %v3456 = vpop.f32.mrf.mxu0
        %v3457 = vadd.f32 %v3200, %v3456
        %3458 = vmatmul.f32.gmra.mxu0 %v2386
        %v3459 = vpop.f32.mrf.mxu0
        %v3460 = vadd.f32 %v3203, %v3459
        %3461 = vmatmul.f32.gmra.mxu0 %v2391
        %v3462 = vpop.f32.mrf.mxu0
        %v3463 = vadd.f32 %v3206, %v3462
        %3464 = vmatmul.f32.gmra.mxu0 %v2396
        %v3465 = vpop.f32.mrf.mxu0
        %v3466 = vadd.f32 %v3209, %v3465
        %3467 = vmatmul.f32.gmra.mxu0 %v2401
        %v3468 = vpop.f32.mrf.mxu0
        %v3469 = vadd.f32 %v3212, %v3468
        %3470 = vmatmul.f32.gmra.mxu0 %v2406
        %v3471 = vpop.f32.mrf.mxu0
        %v3472 = vadd.f32 %v3215, %v3471
        %3473 = vmatmul.f32.gmra.mxu0 %v2411
        %v3474 = vpop.f32.mrf.mxu0
        %v3475 = vadd.f32 %v3218, %v3474
        %3476 = vmatmul.f32.gmra.mxu0 %v2416
        %v3477 = vpop.f32.mrf.mxu0
        %v3478 = vadd.f32 %v3221, %v3477
        %3479 = vmatmul.f32.gmra.mxu0 %v2421
        %v3480 = vpop.f32.mrf.mxu0
        %v3481 = vadd.f32 %v3224, %v3480
        %3482 = vmatmul.f32.gmra.mxu0 %v2426
        %v3483 = vpop.f32.mrf.mxu0
        %v3484 = vadd.f32 %v3227, %v3483
        %3485 = vmatmul.f32.gmra.mxu0 %v2431
        %v3486 = vpop.f32.mrf.mxu0
        %v3487 = vadd.f32 %v3230, %v3486
        %3488 = vmatmul.f32.gmra.mxu0 %v2436
        %v3489 = vpop.f32.mrf.mxu0
        %v3490 = vadd.f32 %v3233, %v3489
        %3491 = vmatmul.f32.gmra.mxu0 %v2441
        %v3492 = vpop.f32.mrf.mxu0
        %v3493 = vadd.f32 %v3236, %v3492
        %3494 = vmatmul.f32.gmra.mxu0 %v2446
        %v3495 = vpop.f32.mrf.mxu0
        %v3496 = vadd.f32 %v3239, %v3495
        %3497 = vmatmul.f32.gmra.mxu0 %v2451
        %v3498 = vpop.f32.mrf.mxu0
        %v3499 = vadd.f32 %v3242, %v3498
        %3500 = vmatmul.f32.gmra.mxu0 %v2456
        %v3501 = vpop.f32.mrf.mxu0
        %v3502 = vadd.f32 %v3245, %v3501
        %3503 = vmatmul.f32.gmra.mxu0 %v2461
        %v3504 = vpop.f32.mrf.mxu0
        %v3505 = vadd.f32 %v3248, %v3504
        %3506 = vmatmul.f32.gmra.mxu0 %v2466
        %v3507 = vpop.f32.mrf.mxu0
        %v3508 = vadd.f32 %v3251, %v3507
        %3509 = vmatmul.f32.gmra.mxu0 %v2471
        %v3510 = vpop.f32.mrf.mxu0
        %v3511 = vadd.f32 %v3254, %v3510
        %3512 = vmatmul.f32.gmra.mxu0 %v2476
        %v3513 = vpop.f32.mrf.mxu0
        %v3514 = vadd.f32 %v3257, %v3513
        %3515 = vmatmul.f32.gmra.mxu0 %v2481
        %v3516 = vpop.f32.mrf.mxu0
        %v3517 = vadd.f32 %v3260, %v3516
        %3518 = vmatmul.f32.gmra.mxu0 %v2486
        %v3519 = vpop.f32.mrf.mxu0
        %v3520 = vadd.f32 %v3263, %v3519
        %3521 = vmatmul.f32.gmra.mxu0 %v2491
        %v3522 = vpop.f32.mrf.mxu0
        %v3523 = vadd.f32 %v3266, %v3522
        %3524 = vmatmul.f32.gmra.mxu0 %v2496
        %v3525 = vpop.f32.mrf.mxu0
        %v3526 = vadd.f32 %v3269, %v3525
        %3527 = vmatmul.f32.gmra.mxu0 %v2501
        %v3528 = vpop.f32.mrf.mxu0
        %v3529 = vadd.f32 %v3272, %v3528
        %3530 = vmatmul.f32.gmra.mxu0 %v2506
        %v3531 = vpop.f32.mrf.mxu0
        %v3532 = vadd.f32 %v3275, %v3531
        %3533 = vmatmul.f32.gmra.mxu0 %v2511
        %v3534 = vpop.f32.mrf.mxu0
        %v3535 = vadd.f32 %v3278, %v3534
        %3536 = vmatmul.f32.gmra.mxu0 %v2516
        %v3537 = vpop.f32.mrf.mxu0
        %v3538 = vadd.f32 %v3281, %v3537
        %3539 = vmatmul.f32.gmra.mxu0 %v2521
        %v3540 = vpop.f32.mrf.mxu0
        %v3541 = vadd.f32 %v3284, %v3540
        %3542 = vmatmul.f32.gmra.mxu0 %v2526
        %v3543 = vpop.f32.mrf.mxu0
        %v3544 = vadd.f32 %v3287, %v3543
        %3545 = vmatmul.f32.gmra.mxu0 %v2531
        %v3546 = vpop.f32.mrf.mxu0
        %v3547 = vadd.f32 %v3290, %v3546
        %3548 = vmatmul.f32.gmra.mxu0 %v2536
        %v3549 = vpop.f32.mrf.mxu0
        %v3550 = vadd.f32 %v3293, %v3549
        %3551 = vmatmul.f32.gmra.mxu0 %v2541
        %v3552 = vpop.f32.mrf.mxu0
        %v3553 = vadd.f32 %v3296, %v3552
        %3554 = vmatmul.f32.gmra.mxu0 %v2546
        %v3555 = vpop.f32.mrf.mxu0
        %v3556 = vadd.f32 %v3299, %v3555
        %3557 = vmatmul.f32.gmra.mxu0 %v2551
        %v3558 = vpop.f32.mrf.mxu0
        %v3559 = vadd.f32 %v3302, %v3558
        %3560 = vmatmul.f32.gmra.mxu0 %v2556
        %v3561 = vpop.f32.mrf.mxu0
        %v3562 = vadd.f32 %v3305, %v3561
        %3563 = vmatmul.f32.gmra.mxu0 %v2561
        %v3564 = vpop.f32.mrf.mxu0
        %v3565 = vadd.f32 %v3308, %v3564
        %3566 = vmatmul.f32.gmra.mxu0 %v2566
        %v3567 = vpop.f32.mrf.mxu0
        %v3568 = vadd.f32 %v3311, %v3567
        %3569 = vmatmul.f32.gmra.mxu0 %v2571
        %v3570 = vpop.f32.mrf.mxu0
        %v3571 = vadd.f32 %v3314, %v3570
        %3572 = vmatmul.f32.gmra.mxu0 %v2576
        %v3573 = vpop.f32.mrf.mxu0
        %v3574 = vadd.f32 %v3317, %v3573
        %3575 = vmatmul.f32.gmra.mxu0 %v2581
        %v3576 = vpop.f32.mrf.mxu0
        %v3577 = vadd.f32 %v3320, %v3576
        %3578 = vdwg.mxu0
        %3579 = vmatpush.msra.mxu0 %v2119
        %3580 = vmatpush.msra.mxu0 %v2117
        %3581 = vmatpush.msra.mxu0 %v2115
        %3582 = vmatpush.msra.mxu0 %v2113
        %3583 = vmatpush.msra.mxu0 %v2111
        %3584 = vmatpush.msra.mxu0 %v2109
        %3585 = vmatpush.msra.mxu0 %v2107
        %3586 = vmatpush.msra.mxu0 %v2105
        %3587 = vmatpush.msra.mxu0 %v2103
        %3588 = vmatpush.msra.mxu0 %v2101
        %3589 = vmatpush.msra.mxu0 %v2099
        %3590 = vmatpush.msra.mxu0 %v2097
        %3591 = vmatpush.msra.mxu0 %v2095
        %3592 = vmatpush.msra.mxu0 %v2093
        %3593 = vmatpush.msra.mxu0 %v2091
        %3594 = vmatpush.msra.mxu0 %v2089
        %3595 = vmatmul.f32.gmra.mxu0 %v2187
        %v3596 = vpop.f32.mrf.mxu0
        %v3597 = vadd.f32 %v3340, %v3596
        %3598 = vmatmul.f32.gmra.mxu0 %v2192
        %v3599 = vpop.f32.mrf.mxu0
        %v3600 = vadd.f32 %v3343, %v3599
        %3601 = vmatmul.f32.gmra.mxu0 %v2197
        %v3602 = vpop.f32.mrf.mxu0
        %v3603 = vadd.f32 %v3346, %v3602
        %3604 = vmatmul.f32.gmra.mxu0 %v2202
        %v3605 = vpop.f32.mrf.mxu0
        %v3606 = vadd.f32 %v3349, %v3605
        %3607 = vmatmul.f32.gmra.mxu0 %v2207
        %v3608 = vpop.f32.mrf.mxu0
        %v3609 = vadd.f32 %v3352, %v3608
        %3610 = vmatmul.f32.gmra.mxu0 %v2212
        %v3611 = vpop.f32.mrf.mxu0
        %v3612 = vadd.f32 %v3355, %v3611
        %3613 = vmatmul.f32.gmra.mxu0 %v2217
        %v3614 = vpop.f32.mrf.mxu0
        %v3615 = vadd.f32 %v3358, %v3614
        %3616 = vmatmul.f32.gmra.mxu0 %v2222
        %v3617 = vpop.f32.mrf.mxu0
        %v3618 = vadd.f32 %v3361, %v3617
        %3619 = vmatmul.f32.gmra.mxu0 %v2227
        %v3620 = vpop.f32.mrf.mxu0
        %v3621 = vadd.f32 %v3364, %v3620
        %3622 = vmatmul.f32.gmra.mxu0 %v2232
        %v3623 = vpop.f32.mrf.mxu0
        %v3624 = vadd.f32 %v3367, %v3623
        %3625 = vmatmul.f32.gmra.mxu0 %v2237
        %v3626 = vpop.f32.mrf.mxu0
        %v3627 = vadd.f32 %v3370, %v3626
        %3628 = vmatmul.f32.gmra.mxu0 %v2242
        %v3629 = vpop.f32.mrf.mxu0
        %v3630 = vadd.f32 %v3373, %v3629
        %3631 = vmatmul.f32.gmra.mxu0 %v2247
        %v3632 = vpop.f32.mrf.mxu0
        %v3633 = vadd.f32 %v3376, %v3632
        %3634 = vmatmul.f32.gmra.mxu0 %v2252
        %v3635 = vpop.f32.mrf.mxu0
        %v3636 = vadd.f32 %v3379, %v3635
        %3637 = vmatmul.f32.gmra.mxu0 %v2257
        %v3638 = vpop.f32.mrf.mxu0
        %v3639 = vadd.f32 %v3382, %v3638
        %3640 = vmatmul.f32.gmra.mxu0 %v2262
        %v3641 = vpop.f32.mrf.mxu0
        %v3642 = vadd.f32 %v3385, %v3641
        %3643 = vmatmul.f32.gmra.mxu0 %v2267
        %v3644 = vpop.f32.mrf.mxu0
        %v3645 = vadd.f32 %v3388, %v3644
        %3646 = vmatmul.f32.gmra.mxu0 %v2272
        %v3647 = vpop.f32.mrf.mxu0
        %v3648 = vadd.f32 %v3391, %v3647
        %3649 = vmatmul.f32.gmra.mxu0 %v2277
        %v3650 = vpop.f32.mrf.mxu0
        %v3651 = vadd.f32 %v3394, %v3650
        %3652 = vmatmul.f32.gmra.mxu0 %v2282
        %v3653 = vpop.f32.mrf.mxu0
        %v3654 = vadd.f32 %v3397, %v3653
        %3655 = vmatmul.f32.gmra.mxu0 %v2287
        %v3656 = vpop.f32.mrf.mxu0
        %v3657 = vadd.f32 %v3400, %v3656
        %3658 = vmatmul.f32.gmra.mxu0 %v2292
        %v3659 = vpop.f32.mrf.mxu0
        %v3660 = vadd.f32 %v3403, %v3659
        %3661 = vmatmul.f32.gmra.mxu0 %v2297
        %v3662 = vpop.f32.mrf.mxu0
        %v3663 = vadd.f32 %v3406, %v3662
        %3664 = vmatmul.f32.gmra.mxu0 %v2302
        %v3665 = vpop.f32.mrf.mxu0
        %v3666 = vadd.f32 %v3409, %v3665
        %3667 = vmatmul.f32.gmra.mxu0 %v2307
        %v3668 = vpop.f32.mrf.mxu0
        %v3669 = vadd.f32 %v3412, %v3668
        %3670 = vmatmul.f32.gmra.mxu0 %v2312
        %v3671 = vpop.f32.mrf.mxu0
        %v3672 = vadd.f32 %v3415, %v3671
        %3673 = vmatmul.f32.gmra.mxu0 %v2317
        %v3674 = vpop.f32.mrf.mxu0
        %v3675 = vadd.f32 %v3418, %v3674
        %3676 = vmatmul.f32.gmra.mxu0 %v2322
        %v3677 = vpop.f32.mrf.mxu0
        %v3678 = vadd.f32 %v3421, %v3677
        %3679 = vmatmul.f32.gmra.mxu0 %v2327
        %v3680 = vpop.f32.mrf.mxu0
        %v3681 = vadd.f32 %v3424, %v3680
        %3682 = vmatmul.f32.gmra.mxu0 %v2332
        %v3683 = vpop.f32.mrf.mxu0
        %v3684 = vadd.f32 %v3427, %v3683
        %3685 = vmatmul.f32.gmra.mxu0 %v2337
        %v3686 = vpop.f32.mrf.mxu0
        %v3687 = vadd.f32 %v3430, %v3686
        %3688 = vmatmul.f32.gmra.mxu0 %v2342
        %v3689 = vpop.f32.mrf.mxu0
        %v3690 = vadd.f32 %v3433, %v3689
        %3691 = vmatmul.f32.gmra.mxu0 %v2347
        %v3692 = vpop.f32.mrf.mxu0
        %v3693 = vadd.f32 %v3436, %v3692
        %3694 = vmatmul.f32.gmra.mxu0 %v2352
        %v3695 = vpop.f32.mrf.mxu0
        %v3696 = vadd.f32 %v3439, %v3695
        %3697 = vmatmul.f32.gmra.mxu0 %v2357
        %v3698 = vpop.f32.mrf.mxu0
        %v3699 = vadd.f32 %v3442, %v3698
        %3700 = vmatmul.f32.gmra.mxu0 %v2362
        %v3701 = vpop.f32.mrf.mxu0
        %v3702 = vadd.f32 %v3445, %v3701
        %3703 = vmatmul.f32.gmra.mxu0 %v2367
        %v3704 = vpop.f32.mrf.mxu0
        %v3705 = vadd.f32 %v3448, %v3704
        %3706 = vmatmul.f32.gmra.mxu0 %v2372
        %v3707 = vpop.f32.mrf.mxu0
        %v3708 = vadd.f32 %v3451, %v3707
        %3709 = vmatmul.f32.gmra.mxu0 %v2377
        %v3710 = vpop.f32.mrf.mxu0
        %v3711 = vadd.f32 %v3454, %v3710
        %3712 = vmatmul.f32.gmra.mxu0 %v2382
        %v3713 = vpop.f32.mrf.mxu0
        %v3714 = vadd.f32 %v3457, %v3713
        %3715 = vmatmul.f32.gmra.mxu0 %v2387
        %v3716 = vpop.f32.mrf.mxu0
        %v3717 = vadd.f32 %v3460, %v3716
        %3718 = vmatmul.f32.gmra.mxu0 %v2392
        %v3719 = vpop.f32.mrf.mxu0
        %v3720 = vadd.f32 %v3463, %v3719
        %3721 = vmatmul.f32.gmra.mxu0 %v2397
        %v3722 = vpop.f32.mrf.mxu0
        %v3723 = vadd.f32 %v3466, %v3722
        %3724 = vmatmul.f32.gmra.mxu0 %v2402
        %v3725 = vpop.f32.mrf.mxu0
        %v3726 = vadd.f32 %v3469, %v3725
        %3727 = vmatmul.f32.gmra.mxu0 %v2407
        %v3728 = vpop.f32.mrf.mxu0
        %v3729 = vadd.f32 %v3472, %v3728
        %3730 = vmatmul.f32.gmra.mxu0 %v2412
        %v3731 = vpop.f32.mrf.mxu0
        %v3732 = vadd.f32 %v3475, %v3731
        %3733 = vmatmul.f32.gmra.mxu0 %v2417
        %v3734 = vpop.f32.mrf.mxu0
        %v3735 = vadd.f32 %v3478, %v3734
        %3736 = vmatmul.f32.gmra.mxu0 %v2422
        %v3737 = vpop.f32.mrf.mxu0
        %v3738 = vadd.f32 %v3481, %v3737
        %3739 = vmatmul.f32.gmra.mxu0 %v2427
        %v3740 = vpop.f32.mrf.mxu0
        %v3741 = vadd.f32 %v3484, %v3740
        %3742 = vmatmul.f32.gmra.mxu0 %v2432
        %v3743 = vpop.f32.mrf.mxu0
        %v3744 = vadd.f32 %v3487, %v3743
        %3745 = vmatmul.f32.gmra.mxu0 %v2437
        %v3746 = vpop.f32.mrf.mxu0
        %v3747 = vadd.f32 %v3490, %v3746
        %3748 = vmatmul.f32.gmra.mxu0 %v2442
        %v3749 = vpop.f32.mrf.mxu0
        %v3750 = vadd.f32 %v3493, %v3749
        %3751 = vmatmul.f32.gmra.mxu0 %v2447
        %v3752 = vpop.f32.mrf.mxu0
        %v3753 = vadd.f32 %v3496, %v3752
        %3754 = vmatmul.f32.gmra.mxu0 %v2452
        %v3755 = vpop.f32.mrf.mxu0
        %v3756 = vadd.f32 %v3499, %v3755
        %3757 = vmatmul.f32.gmra.mxu0 %v2457
        %v3758 = vpop.f32.mrf.mxu0
        %v3759 = vadd.f32 %v3502, %v3758
        %3760 = vmatmul.f32.gmra.mxu0 %v2462
        %v3761 = vpop.f32.mrf.mxu0
        %v3762 = vadd.f32 %v3505, %v3761
        %3763 = vmatmul.f32.gmra.mxu0 %v2467
        %v3764 = vpop.f32.mrf.mxu0
        %v3765 = vadd.f32 %v3508, %v3764
        %3766 = vmatmul.f32.gmra.mxu0 %v2472
        %v3767 = vpop.f32.mrf.mxu0
        %v3768 = vadd.f32 %v3511, %v3767
        %3769 = vmatmul.f32.gmra.mxu0 %v2477
        %v3770 = vpop.f32.mrf.mxu0
        %v3771 = vadd.f32 %v3514, %v3770
        %3772 = vmatmul.f32.gmra.mxu0 %v2482
        %v3773 = vpop.f32.mrf.mxu0
        %v3774 = vadd.f32 %v3517, %v3773
        %3775 = vmatmul.f32.gmra.mxu0 %v2487
        %v3776 = vpop.f32.mrf.mxu0
        %v3777 = vadd.f32 %v3520, %v3776
        %3778 = vmatmul.f32.gmra.mxu0 %v2492
        %v3779 = vpop.f32.mrf.mxu0
        %v3780 = vadd.f32 %v3523, %v3779
        %3781 = vmatmul.f32.gmra.mxu0 %v2497
        %v3782 = vpop.f32.mrf.mxu0
        %v3783 = vadd.f32 %v3526, %v3782
        %3784 = vmatmul.f32.gmra.mxu0 %v2502
        %v3785 = vpop.f32.mrf.mxu0
        %v3786 = vadd.f32 %v3529, %v3785
        %3787 = vmatmul.f32.gmra.mxu0 %v2507
        %v3788 = vpop.f32.mrf.mxu0
        %v3789 = vadd.f32 %v3532, %v3788
        %3790 = vmatmul.f32.gmra.mxu0 %v2512
        %v3791 = vpop.f32.mrf.mxu0
        %v3792 = vadd.f32 %v3535, %v3791
        %3793 = vmatmul.f32.gmra.mxu0 %v2517
        %v3794 = vpop.f32.mrf.mxu0
        %v3795 = vadd.f32 %v3538, %v3794
        %3796 = vmatmul.f32.gmra.mxu0 %v2522
        %v3797 = vpop.f32.mrf.mxu0
        %v3798 = vadd.f32 %v3541, %v3797
        %3799 = vmatmul.f32.gmra.mxu0 %v2527
        %v3800 = vpop.f32.mrf.mxu0
        %v3801 = vadd.f32 %v3544, %v3800
        %3802 = vmatmul.f32.gmra.mxu0 %v2532
        %v3803 = vpop.f32.mrf.mxu0
        %v3804 = vadd.f32 %v3547, %v3803
        %3805 = vmatmul.f32.gmra.mxu0 %v2537
        %v3806 = vpop.f32.mrf.mxu0
        %v3807 = vadd.f32 %v3550, %v3806
        %3808 = vmatmul.f32.gmra.mxu0 %v2542
        %v3809 = vpop.f32.mrf.mxu0
        %v3810 = vadd.f32 %v3553, %v3809
        %3811 = vmatmul.f32.gmra.mxu0 %v2547
        %v3812 = vpop.f32.mrf.mxu0
        %v3813 = vadd.f32 %v3556, %v3812
        %3814 = vmatmul.f32.gmra.mxu0 %v2552
        %v3815 = vpop.f32.mrf.mxu0
        %v3816 = vadd.f32 %v3559, %v3815
        %3817 = vmatmul.f32.gmra.mxu0 %v2557
        %v3818 = vpop.f32.mrf.mxu0
        %v3819 = vadd.f32 %v3562, %v3818
        %3820 = vmatmul.f32.gmra.mxu0 %v2562
        %v3821 = vpop.f32.mrf.mxu0
        %v3822 = vadd.f32 %v3565, %v3821
        %3823 = vmatmul.f32.gmra.mxu0 %v2567
        %v3824 = vpop.f32.mrf.mxu0
        %v3825 = vadd.f32 %v3568, %v3824
        %3826 = vmatmul.f32.gmra.mxu0 %v2572
        %v3827 = vpop.f32.mrf.mxu0
        %v3828 = vadd.f32 %v3571, %v3827
        %3829 = vmatmul.f32.gmra.mxu0 %v2577
        %v3830 = vpop.f32.mrf.mxu0
        %v3831 = vadd.f32 %v3574, %v3830
        %3832 = vmatmul.f32.gmra.mxu0 %v2582
        %v3833 = vpop.f32.mrf.mxu0
        %v3834 = vadd.f32 %v3577, %v3833
        %3835 = vdwg.mxu0
        %3836 = vmatpush.msra.mxu0 %v2151
        %3837 = vmatpush.msra.mxu0 %v2149
        %3838 = vmatpush.msra.mxu0 %v2147
        %3839 = vmatpush.msra.mxu0 %v2145
        %3840 = vmatpush.msra.mxu0 %v2143
        %3841 = vmatpush.msra.mxu0 %v2141
        %3842 = vmatpush.msra.mxu0 %v2139
        %3843 = vmatpush.msra.mxu0 %v2137
        %3844 = vmatpush.msra.mxu0 %v2135
        %3845 = vmatpush.msra.mxu0 %v2133
        %3846 = vmatpush.msra.mxu0 %v2131
        %3847 = vmatpush.msra.mxu0 %v2129
        %3848 = vmatpush.msra.mxu0 %v2127
        %3849 = vmatpush.msra.mxu0 %v2125
        %3850 = vmatpush.msra.mxu0 %v2123
        %3851 = vmatpush.msra.mxu0 %v2121
        %3852 = vmatmul.f32.gmra.mxu0 %v2188
        %v3853 = vpop.f32.mrf.mxu0
        %v3854 = vadd.f32 %v3597, %v3853
        %3855 = vmatmul.f32.gmra.mxu0 %v2193
        %v3856 = vpop.f32.mrf.mxu0
        %v3857 = vadd.f32 %v3600, %v3856
        %3858 = vmatmul.f32.gmra.mxu0 %v2198
        %v3859 = vpop.f32.mrf.mxu0
        %v3860 = vadd.f32 %v3603, %v3859
        %3861 = vmatmul.f32.gmra.mxu0 %v2203
        %v3862 = vpop.f32.mrf.mxu0
        %v3863 = vadd.f32 %v3606, %v3862
        %3864 = vmatmul.f32.gmra.mxu0 %v2208
        %v3865 = vpop.f32.mrf.mxu0
        %v3866 = vadd.f32 %v3609, %v3865
        %3867 = vmatmul.f32.gmra.mxu0 %v2213
        %v3868 = vpop.f32.mrf.mxu0
        %v3869 = vadd.f32 %v3612, %v3868
        %3870 = vmatmul.f32.gmra.mxu0 %v2218
        %v3871 = vpop.f32.mrf.mxu0
        %v3872 = vadd.f32 %v3615, %v3871
        %3873 = vmatmul.f32.gmra.mxu0 %v2223
        %v3874 = vpop.f32.mrf.mxu0
        %v3875 = vadd.f32 %v3618, %v3874
        %3876 = vmatmul.f32.gmra.mxu0 %v2228
        %v3877 = vpop.f32.mrf.mxu0
        %v3878 = vadd.f32 %v3621, %v3877
        %3879 = vmatmul.f32.gmra.mxu0 %v2233
        %v3880 = vpop.f32.mrf.mxu0
        %v3881 = vadd.f32 %v3624, %v3880
        %3882 = vmatmul.f32.gmra.mxu0 %v2238
        %v3883 = vpop.f32.mrf.mxu0
        %v3884 = vadd.f32 %v3627, %v3883
        %3885 = vmatmul.f32.gmra.mxu0 %v2243
        %v3886 = vpop.f32.mrf.mxu0
        %v3887 = vadd.f32 %v3630, %v3886
        %3888 = vmatmul.f32.gmra.mxu0 %v2248
        %v3889 = vpop.f32.mrf.mxu0
        %v3890 = vadd.f32 %v3633, %v3889
        %3891 = vmatmul.f32.gmra.mxu0 %v2253
        %v3892 = vpop.f32.mrf.mxu0
        %v3893 = vadd.f32 %v3636, %v3892
        %3894 = vmatmul.f32.gmra.mxu0 %v2258
        %v3895 = vpop.f32.mrf.mxu0
        %v3896 = vadd.f32 %v3639, %v3895
        %3897 = vmatmul.f32.gmra.mxu0 %v2263
        %v3898 = vpop.f32.mrf.mxu0
        %v3899 = vadd.f32 %v3642, %v3898
        %3900 = vmatmul.f32.gmra.mxu0 %v2268
        %v3901 = vpop.f32.mrf.mxu0
        %v3902 = vadd.f32 %v3645, %v3901
        %3903 = vmatmul.f32.gmra.mxu0 %v2273
        %v3904 = vpop.f32.mrf.mxu0
        %v3905 = vadd.f32 %v3648, %v3904
        %3906 = vmatmul.f32.gmra.mxu0 %v2278
        %v3907 = vpop.f32.mrf.mxu0
        %v3908 = vadd.f32 %v3651, %v3907
        %3909 = vmatmul.f32.gmra.mxu0 %v2283
        %v3910 = vpop.f32.mrf.mxu0
        %v3911 = vadd.f32 %v3654, %v3910
        %3912 = vmatmul.f32.gmra.mxu0 %v2288
        %v3913 = vpop.f32.mrf.mxu0
        %v3914 = vadd.f32 %v3657, %v3913
        %3915 = vmatmul.f32.gmra.mxu0 %v2293
        %v3916 = vpop.f32.mrf.mxu0
        %v3917 = vadd.f32 %v3660, %v3916
        %3918 = vmatmul.f32.gmra.mxu0 %v2298
        %v3919 = vpop.f32.mrf.mxu0
        %v3920 = vadd.f32 %v3663, %v3919
        %3921 = vmatmul.f32.gmra.mxu0 %v2303
        %v3922 = vpop.f32.mrf.mxu0
        %v3923 = vadd.f32 %v3666, %v3922
        %3924 = vmatmul.f32.gmra.mxu0 %v2308
        %v3925 = vpop.f32.mrf.mxu0
        %v3926 = vadd.f32 %v3669, %v3925
        %3927 = vmatmul.f32.gmra.mxu0 %v2313
        %v3928 = vpop.f32.mrf.mxu0
        %v3929 = vadd.f32 %v3672, %v3928
        %3930 = vmatmul.f32.gmra.mxu0 %v2318
        %v3931 = vpop.f32.mrf.mxu0
        %v3932 = vadd.f32 %v3675, %v3931
        %3933 = vmatmul.f32.gmra.mxu0 %v2323
        %v3934 = vpop.f32.mrf.mxu0
        %v3935 = vadd.f32 %v3678, %v3934
        %3936 = vmatmul.f32.gmra.mxu0 %v2328
        %v3937 = vpop.f32.mrf.mxu0
        %v3938 = vadd.f32 %v3681, %v3937
        %3939 = vmatmul.f32.gmra.mxu0 %v2333
        %v3940 = vpop.f32.mrf.mxu0
        %v3941 = vadd.f32 %v3684, %v3940
        %3942 = vmatmul.f32.gmra.mxu0 %v2338
        %v3943 = vpop.f32.mrf.mxu0
        %v3944 = vadd.f32 %v3687, %v3943
        %3945 = vmatmul.f32.gmra.mxu0 %v2343
        %v3946 = vpop.f32.mrf.mxu0
        %v3947 = vadd.f32 %v3690, %v3946
        %3948 = vmatmul.f32.gmra.mxu0 %v2348
        %v3949 = vpop.f32.mrf.mxu0
        %v3950 = vadd.f32 %v3693, %v3949
        %3951 = vmatmul.f32.gmra.mxu0 %v2353
        %v3952 = vpop.f32.mrf.mxu0
        %v3953 = vadd.f32 %v3696, %v3952
        %3954 = vmatmul.f32.gmra.mxu0 %v2358
        %v3955 = vpop.f32.mrf.mxu0
        %v3956 = vadd.f32 %v3699, %v3955
        %3957 = vmatmul.f32.gmra.mxu0 %v2363
        %v3958 = vpop.f32.mrf.mxu0
        %v3959 = vadd.f32 %v3702, %v3958
        %3960 = vmatmul.f32.gmra.mxu0 %v2368
        %v3961 = vpop.f32.mrf.mxu0
        %v3962 = vadd.f32 %v3705, %v3961
        %3963 = vmatmul.f32.gmra.mxu0 %v2373
        %v3964 = vpop.f32.mrf.mxu0
        %v3965 = vadd.f32 %v3708, %v3964
        %3966 = vmatmul.f32.gmra.mxu0 %v2378
        %v3967 = vpop.f32.mrf.mxu0
        %v3968 = vadd.f32 %v3711, %v3967
        %3969 = vmatmul.f32.gmra.mxu0 %v2383
        %v3970 = vpop.f32.mrf.mxu0
        %v3971 = vadd.f32 %v3714, %v3970
        %3972 = vmatmul.f32.gmra.mxu0 %v2388
        %v3973 = vpop.f32.mrf.mxu0
        %v3974 = vadd.f32 %v3717, %v3973
        %3975 = vmatmul.f32.gmra.mxu0 %v2393
        %v3976 = vpop.f32.mrf.mxu0
        %v3977 = vadd.f32 %v3720, %v3976
        %3978 = vmatmul.f32.gmra.mxu0 %v2398
        %v3979 = vpop.f32.mrf.mxu0
        %v3980 = vadd.f32 %v3723, %v3979
        %3981 = vmatmul.f32.gmra.mxu0 %v2403
        %v3982 = vpop.f32.mrf.mxu0
        %v3983 = vadd.f32 %v3726, %v3982
        %3984 = vmatmul.f32.gmra.mxu0 %v2408
        %v3985 = vpop.f32.mrf.mxu0
        %v3986 = vadd.f32 %v3729, %v3985
        %3987 = vmatmul.f32.gmra.mxu0 %v2413
        %v3988 = vpop.f32.mrf.mxu0
        %v3989 = vadd.f32 %v3732, %v3988
        %3990 = vmatmul.f32.gmra.mxu0 %v2418
        %v3991 = vpop.f32.mrf.mxu0
        %v3992 = vadd.f32 %v3735, %v3991
        %3993 = vmatmul.f32.gmra.mxu0 %v2423
        %v3994 = vpop.f32.mrf.mxu0
        %v3995 = vadd.f32 %v3738, %v3994
        %3996 = vmatmul.f32.gmra.mxu0 %v2428
        %v3997 = vpop.f32.mrf.mxu0
        %v3998 = vadd.f32 %v3741, %v3997
        %3999 = vmatmul.f32.gmra.mxu0 %v2433
        %v4000 = vpop.f32.mrf.mxu0
        %v4001 = vadd.f32 %v3744, %v4000
        %4002 = vmatmul.f32.gmra.mxu0 %v2438
        %v4003 = vpop.f32.mrf.mxu0
        %v4004 = vadd.f32 %v3747, %v4003
        %4005 = vmatmul.f32.gmra.mxu0 %v2443
        %v4006 = vpop.f32.mrf.mxu0
        %v4007 = vadd.f32 %v3750, %v4006
        %4008 = vmatmul.f32.gmra.mxu0 %v2448
        %v4009 = vpop.f32.mrf.mxu0
        %v4010 = vadd.f32 %v3753, %v4009
        %4011 = vmatmul.f32.gmra.mxu0 %v2453
        %v4012 = vpop.f32.mrf.mxu0
        %v4013 = vadd.f32 %v3756, %v4012
        %4014 = vmatmul.f32.gmra.mxu0 %v2458
        %v4015 = vpop.f32.mrf.mxu0
        %v4016 = vadd.f32 %v3759, %v4015
        %4017 = vmatmul.f32.gmra.mxu0 %v2463
        %v4018 = vpop.f32.mrf.mxu0
        %v4019 = vadd.f32 %v3762, %v4018
        %4020 = vmatmul.f32.gmra.mxu0 %v2468
        %v4021 = vpop.f32.mrf.mxu0
        %v4022 = vadd.f32 %v3765, %v4021
        %4023 = vmatmul.f32.gmra.mxu0 %v2473
        %v4024 = vpop.f32.mrf.mxu0
        %v4025 = vadd.f32 %v3768, %v4024
        %4026 = vmatmul.f32.gmra.mxu0 %v2478
        %v4027 = vpop.f32.mrf.mxu0
        %v4028 = vadd.f32 %v3771, %v4027
        %4029 = vmatmul.f32.gmra.mxu0 %v2483
        %v4030 = vpop.f32.mrf.mxu0
        %v4031 = vadd.f32 %v3774, %v4030
        %4032 = vmatmul.f32.gmra.mxu0 %v2488
        %v4033 = vpop.f32.mrf.mxu0
        %v4034 = vadd.f32 %v3777, %v4033
        %4035 = vmatmul.f32.gmra.mxu0 %v2493
        %v4036 = vpop.f32.mrf.mxu0
        %v4037 = vadd.f32 %v3780, %v4036
        %4038 = vmatmul.f32.gmra.mxu0 %v2498
        %v4039 = vpop.f32.mrf.mxu0
        %v4040 = vadd.f32 %v3783, %v4039
        %4041 = vmatmul.f32.gmra.mxu0 %v2503
        %v4042 = vpop.f32.mrf.mxu0
        %v4043 = vadd.f32 %v3786, %v4042
        %4044 = vmatmul.f32.gmra.mxu0 %v2508
        %v4045 = vpop.f32.mrf.mxu0
        %v4046 = vadd.f32 %v3789, %v4045
        %4047 = vmatmul.f32.gmra.mxu0 %v2513
        %v4048 = vpop.f32.mrf.mxu0
        %v4049 = vadd.f32 %v3792, %v4048
        %4050 = vmatmul.f32.gmra.mxu0 %v2518
        %v4051 = vpop.f32.mrf.mxu0
        %v4052 = vadd.f32 %v3795, %v4051
        %4053 = vmatmul.f32.gmra.mxu0 %v2523
        %v4054 = vpop.f32.mrf.mxu0
        %v4055 = vadd.f32 %v3798, %v4054
        %4056 = vmatmul.f32.gmra.mxu0 %v2528
        %v4057 = vpop.f32.mrf.mxu0
        %v4058 = vadd.f32 %v3801, %v4057
        %4059 = vmatmul.f32.gmra.mxu0 %v2533
        %v4060 = vpop.f32.mrf.mxu0
        %v4061 = vadd.f32 %v3804, %v4060
        %4062 = vmatmul.f32.gmra.mxu0 %v2538
        %v4063 = vpop.f32.mrf.mxu0
        %v4064 = vadd.f32 %v3807, %v4063
        %4065 = vmatmul.f32.gmra.mxu0 %v2543
        %v4066 = vpop.f32.mrf.mxu0
        %v4067 = vadd.f32 %v3810, %v4066
        %4068 = vmatmul.f32.gmra.mxu0 %v2548
        %v4069 = vpop.f32.mrf.mxu0
        %v4070 = vadd.f32 %v3813, %v4069
        %4071 = vmatmul.f32.gmra.mxu0 %v2553
        %v4072 = vpop.f32.mrf.mxu0
        %v4073 = vadd.f32 %v3816, %v4072
        %4074 = vmatmul.f32.gmra.mxu0 %v2558
        %v4075 = vpop.f32.mrf.mxu0
        %v4076 = vadd.f32 %v3819, %v4075
        %4077 = vmatmul.f32.gmra.mxu0 %v2563
        %v4078 = vpop.f32.mrf.mxu0
        %v4079 = vadd.f32 %v3822, %v4078
        %4080 = vmatmul.f32.gmra.mxu0 %v2568
        %v4081 = vpop.f32.mrf.mxu0
        %v4082 = vadd.f32 %v3825, %v4081
        %4083 = vmatmul.f32.gmra.mxu0 %v2573
        %v4084 = vpop.f32.mrf.mxu0
        %v4085 = vadd.f32 %v3828, %v4084
        %4086 = vmatmul.f32.gmra.mxu0 %v2578
        %v4087 = vpop.f32.mrf.mxu0
        %v4088 = vadd.f32 %v3831, %v4087
        %4089 = vmatmul.f32.gmra.mxu0 %v2583
        %v4090 = vpop.f32.mrf.mxu0
        %v4091 = vadd.f32 %v3834, %v4090
        %4092 = vdwg.mxu0
        %4093 = vmatpush.msra.mxu0 %v2183
        %4094 = vmatpush.msra.mxu0 %v2181
        %4095 = vmatpush.msra.mxu0 %v2179
        %4096 = vmatpush.msra.mxu0 %v2177
        %4097 = vmatpush.msra.mxu0 %v2175
        %4098 = vmatpush.msra.mxu0 %v2173
        %4099 = vmatpush.msra.mxu0 %v2171
        %4100 = vmatpush.msra.mxu0 %v2169
        %4101 = vmatpush.msra.mxu0 %v2167
        %4102 = vmatpush.msra.mxu0 %v2165
        %4103 = vmatpush.msra.mxu0 %v2163
        %4104 = vmatpush.msra.mxu0 %v2161
        %4105 = vmatpush.msra.mxu0 %v2159
        %4106 = vmatpush.msra.mxu0 %v2157
        %4107 = vmatpush.msra.mxu0 %v2155
        %4108 = vmatpush.msra.mxu0 %v2153
        %4109 = vmatmul.f32.gmra.mxu0 %v2189
        %v4110 = vpop.f32.mrf.mxu0
        %v4111 = vadd.f32 %v3854, %v4110
        %4112 = vmatmul.f32.gmra.mxu0 %v2194
        %v4113 = vpop.f32.mrf.mxu0
        %v4114 = vadd.f32 %v3857, %v4113
        %4115 = vmatmul.f32.gmra.mxu0 %v2199
        %v4116 = vpop.f32.mrf.mxu0
        %v4117 = vadd.f32 %v3860, %v4116
        %4118 = vmatmul.f32.gmra.mxu0 %v2204
        %v4119 = vpop.f32.mrf.mxu0
        %v4120 = vadd.f32 %v3863, %v4119
        %4121 = vmatmul.f32.gmra.mxu0 %v2209
        %v4122 = vpop.f32.mrf.mxu0
        %v4123 = vadd.f32 %v3866, %v4122
        %4124 = vmatmul.f32.gmra.mxu0 %v2214
        %v4125 = vpop.f32.mrf.mxu0
        %v4126 = vadd.f32 %v3869, %v4125
        %4127 = vmatmul.f32.gmra.mxu0 %v2219
        %v4128 = vpop.f32.mrf.mxu0
        %v4129 = vadd.f32 %v3872, %v4128
        %4130 = vmatmul.f32.gmra.mxu0 %v2224
        %v4131 = vpop.f32.mrf.mxu0
        %v4132 = vadd.f32 %v3875, %v4131
        %4133 = vmatmul.f32.gmra.mxu0 %v2229
        %v4134 = vpop.f32.mrf.mxu0
        %v4135 = vadd.f32 %v3878, %v4134
        %4136 = vmatmul.f32.gmra.mxu0 %v2234
        %v4137 = vpop.f32.mrf.mxu0
        %v4138 = vadd.f32 %v3881, %v4137
        %4139 = vmatmul.f32.gmra.mxu0 %v2239
        %v4140 = vpop.f32.mrf.mxu0
        %v4141 = vadd.f32 %v3884, %v4140
        %4142 = vmatmul.f32.gmra.mxu0 %v2244
        %v4143 = vpop.f32.mrf.mxu0
        %v4144 = vadd.f32 %v3887, %v4143
        %4145 = vmatmul.f32.gmra.mxu0 %v2249
        %v4146 = vpop.f32.mrf.mxu0
        %v4147 = vadd.f32 %v3890, %v4146
        %4148 = vmatmul.f32.gmra.mxu0 %v2254
        %v4149 = vpop.f32.mrf.mxu0
        %v4150 = vadd.f32 %v3893, %v4149
        %4151 = vmatmul.f32.gmra.mxu0 %v2259
        %v4152 = vpop.f32.mrf.mxu0
        %v4153 = vadd.f32 %v3896, %v4152
        %4154 = vmatmul.f32.gmra.mxu0 %v2264
        %v4155 = vpop.f32.mrf.mxu0
        %v4156 = vadd.f32 %v3899, %v4155
        %4157 = vmatmul.f32.gmra.mxu0 %v2269
        %v4158 = vpop.f32.mrf.mxu0
        %v4159 = vadd.f32 %v3902, %v4158
        %4160 = vmatmul.f32.gmra.mxu0 %v2274
        %v4161 = vpop.f32.mrf.mxu0
        %v4162 = vadd.f32 %v3905, %v4161
        %4163 = vmatmul.f32.gmra.mxu0 %v2279
        %v4164 = vpop.f32.mrf.mxu0
        %v4165 = vadd.f32 %v3908, %v4164
        %4166 = vmatmul.f32.gmra.mxu0 %v2284
        %v4167 = vpop.f32.mrf.mxu0
        %v4168 = vadd.f32 %v3911, %v4167
        %4169 = vmatmul.f32.gmra.mxu0 %v2289
        %v4170 = vpop.f32.mrf.mxu0
        %v4171 = vadd.f32 %v3914, %v4170
        %4172 = vmatmul.f32.gmra.mxu0 %v2294
        %v4173 = vpop.f32.mrf.mxu0
        %v4174 = vadd.f32 %v3917, %v4173
        %4175 = vmatmul.f32.gmra.mxu0 %v2299
        %v4176 = vpop.f32.mrf.mxu0
        %v4177 = vadd.f32 %v3920, %v4176
        %4178 = vmatmul.f32.gmra.mxu0 %v2304
        %v4179 = vpop.f32.mrf.mxu0
        %v4180 = vadd.f32 %v3923, %v4179
        %4181 = vmatmul.f32.gmra.mxu0 %v2309
        %v4182 = vpop.f32.mrf.mxu0
        %v4183 = vadd.f32 %v3926, %v4182
        %4184 = vmatmul.f32.gmra.mxu0 %v2314
        %v4185 = vpop.f32.mrf.mxu0
        %v4186 = vadd.f32 %v3929, %v4185
        %4187 = vmatmul.f32.gmra.mxu0 %v2319
        %v4188 = vpop.f32.mrf.mxu0
        %v4189 = vadd.f32 %v3932, %v4188
        %4190 = vmatmul.f32.gmra.mxu0 %v2324
        %v4191 = vpop.f32.mrf.mxu0
        %v4192 = vadd.f32 %v3935, %v4191
        %4193 = vmatmul.f32.gmra.mxu0 %v2329
        %v4194 = vpop.f32.mrf.mxu0
        %v4195 = vadd.f32 %v3938, %v4194
        %4196 = vmatmul.f32.gmra.mxu0 %v2334
        %v4197 = vpop.f32.mrf.mxu0
        %v4198 = vadd.f32 %v3941, %v4197
        %4199 = vmatmul.f32.gmra.mxu0 %v2339
        %v4200 = vpop.f32.mrf.mxu0
        %v4201 = vadd.f32 %v3944, %v4200
        %4202 = vmatmul.f32.gmra.mxu0 %v2344
        %v4203 = vpop.f32.mrf.mxu0
        %v4204 = vadd.f32 %v3947, %v4203
        %4205 = vmatmul.f32.gmra.mxu0 %v2349
        %v4206 = vpop.f32.mrf.mxu0
        %v4207 = vadd.f32 %v3950, %v4206
        %4208 = vmatmul.f32.gmra.mxu0 %v2354
        %v4209 = vpop.f32.mrf.mxu0
        %v4210 = vadd.f32 %v3953, %v4209
        %4211 = vmatmul.f32.gmra.mxu0 %v2359
        %v4212 = vpop.f32.mrf.mxu0
        %v4213 = vadd.f32 %v3956, %v4212
        %4214 = vmatmul.f32.gmra.mxu0 %v2364
        %v4215 = vpop.f32.mrf.mxu0
        %v4216 = vadd.f32 %v3959, %v4215
        %4217 = vmatmul.f32.gmra.mxu0 %v2369
        %v4218 = vpop.f32.mrf.mxu0
        %v4219 = vadd.f32 %v3962, %v4218
        %4220 = vmatmul.f32.gmra.mxu0 %v2374
        %v4221 = vpop.f32.mrf.mxu0
        %v4222 = vadd.f32 %v3965, %v4221
        %4223 = vmatmul.f32.gmra.mxu0 %v2379
        %v4224 = vpop.f32.mrf.mxu0
        %v4225 = vadd.f32 %v3968, %v4224
        %4226 = vmatmul.f32.gmra.mxu0 %v2384
        %v4227 = vpop.f32.mrf.mxu0
        %v4228 = vadd.f32 %v3971, %v4227
        %4229 = vmatmul.f32.gmra.mxu0 %v2389
        %v4230 = vpop.f32.mrf.mxu0
        %v4231 = vadd.f32 %v3974, %v4230
        %4232 = vmatmul.f32.gmra.mxu0 %v2394
        %v4233 = vpop.f32.mrf.mxu0
        %v4234 = vadd.f32 %v3977, %v4233
        %4235 = vmatmul.f32.gmra.mxu0 %v2399
        %v4236 = vpop.f32.mrf.mxu0
        %v4237 = vadd.f32 %v3980, %v4236
        %4238 = vmatmul.f32.gmra.mxu0 %v2404
        %v4239 = vpop.f32.mrf.mxu0
        %v4240 = vadd.f32 %v3983, %v4239
        %4241 = vmatmul.f32.gmra.mxu0 %v2409
        %v4242 = vpop.f32.mrf.mxu0
        %v4243 = vadd.f32 %v3986, %v4242
        %4244 = vmatmul.f32.gmra.mxu0 %v2414
        %v4245 = vpop.f32.mrf.mxu0
        %v4246 = vadd.f32 %v3989, %v4245
        %4247 = vmatmul.f32.gmra.mxu0 %v2419
        %v4248 = vpop.f32.mrf.mxu0
        %v4249 = vadd.f32 %v3992, %v4248
        %4250 = vmatmul.f32.gmra.mxu0 %v2424
        %v4251 = vpop.f32.mrf.mxu0
        %v4252 = vadd.f32 %v3995, %v4251
        %4253 = vmatmul.f32.gmra.mxu0 %v2429
        %v4254 = vpop.f32.mrf.mxu0
        %v4255 = vadd.f32 %v3998, %v4254
        %4256 = vmatmul.f32.gmra.mxu0 %v2434
        %v4257 = vpop.f32.mrf.mxu0
        %v4258 = vadd.f32 %v4001, %v4257
        %4259 = vmatmul.f32.gmra.mxu0 %v2439
        %v4260 = vpop.f32.mrf.mxu0
        %v4261 = vadd.f32 %v4004, %v4260
        %4262 = vmatmul.f32.gmra.mxu0 %v2444
        %v4263 = vpop.f32.mrf.mxu0
        %v4264 = vadd.f32 %v4007, %v4263
        %4265 = vmatmul.f32.gmra.mxu0 %v2449
        %v4266 = vpop.f32.mrf.mxu0
        %v4267 = vadd.f32 %v4010, %v4266
        %4268 = vmatmul.f32.gmra.mxu0 %v2454
        %v4269 = vpop.f32.mrf.mxu0
        %v4270 = vadd.f32 %v4013, %v4269
        %4271 = vmatmul.f32.gmra.mxu0 %v2459
        %v4272 = vpop.f32.mrf.mxu0
        %v4273 = vadd.f32 %v4016, %v4272
        %4274 = vmatmul.f32.gmra.mxu0 %v2464
        %v4275 = vpop.f32.mrf.mxu0
        %v4276 = vadd.f32 %v4019, %v4275
        %4277 = vmatmul.f32.gmra.mxu0 %v2469
        %v4278 = vpop.f32.mrf.mxu0
        %v4279 = vadd.f32 %v4022, %v4278
        %4280 = vmatmul.f32.gmra.mxu0 %v2474
        %v4281 = vpop.f32.mrf.mxu0
        %v4282 = vadd.f32 %v4025, %v4281
        %4283 = vmatmul.f32.gmra.mxu0 %v2479
        %v4284 = vpop.f32.mrf.mxu0
        %v4285 = vadd.f32 %v4028, %v4284
        %4286 = vmatmul.f32.gmra.mxu0 %v2484
        %v4287 = vpop.f32.mrf.mxu0
        %v4288 = vadd.f32 %v4031, %v4287
        %4289 = vmatmul.f32.gmra.mxu0 %v2489
        %v4290 = vpop.f32.mrf.mxu0
        %v4291 = vadd.f32 %v4034, %v4290
        %4292 = vmatmul.f32.gmra.mxu0 %v2494
        %v4293 = vpop.f32.mrf.mxu0
        %v4294 = vadd.f32 %v4037, %v4293
        %4295 = vmatmul.f32.gmra.mxu0 %v2499
        %v4296 = vpop.f32.mrf.mxu0
        %v4297 = vadd.f32 %v4040, %v4296
        %4298 = vmatmul.f32.gmra.mxu0 %v2504
        %v4299 = vpop.f32.mrf.mxu0
        %v4300 = vadd.f32 %v4043, %v4299
        %4301 = vmatmul.f32.gmra.mxu0 %v2509
        %v4302 = vpop.f32.mrf.mxu0
        %v4303 = vadd.f32 %v4046, %v4302
        %4304 = vmatmul.f32.gmra.mxu0 %v2514
        %v4305 = vpop.f32.mrf.mxu0
        %v4306 = vadd.f32 %v4049, %v4305
        %4307 = vmatmul.f32.gmra.mxu0 %v2519
        %v4308 = vpop.f32.mrf.mxu0
        %v4309 = vadd.f32 %v4052, %v4308
        %4310 = vmatmul.f32.gmra.mxu0 %v2524
        %v4311 = vpop.f32.mrf.mxu0
        %v4312 = vadd.f32 %v4055, %v4311
        %4313 = vmatmul.f32.gmra.mxu0 %v2529
        %v4314 = vpop.f32.mrf.mxu0
        %v4315 = vadd.f32 %v4058, %v4314
        %4316 = vmatmul.f32.gmra.mxu0 %v2534
        %v4317 = vpop.f32.mrf.mxu0
        %v4318 = vadd.f32 %v4061, %v4317
        %4319 = vmatmul.f32.gmra.mxu0 %v2539
        %v4320 = vpop.f32.mrf.mxu0
        %v4321 = vadd.f32 %v4064, %v4320
        %4322 = vmatmul.f32.gmra.mxu0 %v2544
        %v4323 = vpop.f32.mrf.mxu0
        %v4324 = vadd.f32 %v4067, %v4323
        %4325 = vmatmul.f32.gmra.mxu0 %v2549
        %v4326 = vpop.f32.mrf.mxu0
        %v4327 = vadd.f32 %v4070, %v4326
        %4328 = vmatmul.f32.gmra.mxu0 %v2554
        %v4329 = vpop.f32.mrf.mxu0
        %v4330 = vadd.f32 %v4073, %v4329
        %4331 = vmatmul.f32.gmra.mxu0 %v2559
        %v4332 = vpop.f32.mrf.mxu0
        %v4333 = vadd.f32 %v4076, %v4332
        %4334 = vmatmul.f32.gmra.mxu0 %v2564
        %v4335 = vpop.f32.mrf.mxu0
        %v4336 = vadd.f32 %v4079, %v4335
        %4337 = vmatmul.f32.gmra.mxu0 %v2569
        %v4338 = vpop.f32.mrf.mxu0
        %v4339 = vadd.f32 %v4082, %v4338
        %4340 = vmatmul.f32.gmra.mxu0 %v2574
        %v4341 = vpop.f32.mrf.mxu0
        %v4342 = vadd.f32 %v4085, %v4341
        %4343 = vmatmul.f32.gmra.mxu0 %v2579
        %v4344 = vpop.f32.mrf.mxu0
        %v4345 = vadd.f32 %v4088, %v4344
        %4346 = vmatmul.f32.gmra.mxu0 %v2584
        %v4347 = vpop.f32.mrf.mxu0
        %v4348 = vadd.f32 %v4091, %v4347
        %4349 = vdwg.mxu0
        %4350 = vmatpush.msra.mxu0 %v2056
        %4351 = vmatpush.msra.mxu0 %v2054
        %4352 = vmatpush.msra.mxu0 %v2052
        %4353 = vmatpush.msra.mxu0 %v2050
        %4354 = vmatpush.msra.mxu0 %v2048
        %4355 = vmatpush.msra.mxu0 %v2046
        %4356 = vmatpush.msra.mxu0 %v2044
        %4357 = vmatpush.msra.mxu0 %v2042
        %4358 = vmatpush.msra.mxu0 %v2040
        %4359 = vmatpush.msra.mxu0 %v2038
        %4360 = vmatpush.msra.mxu0 %v2036
        %4361 = vmatpush.msra.mxu0 %v2034
        %4362 = vmatpush.msra.mxu0 %v2032
        %4363 = vmatpush.msra.mxu0 %v2030
        %4364 = vmatpush.msra.mxu0 %v2028
        %4365 = vmatpush.msra.mxu0 %v2026
        %4366 = vmatmul.f32.gmra.mxu0 %v2185
        %v4367 = vpop.f32.mrf.mxu0
        %v4368 = vadd.f32 %v2668, %v4367
        %4369 = vmatmul.f32.gmra.mxu0 %v2190
        %v4370 = vpop.f32.mrf.mxu0
        %v4371 = vadd.f32 %v2673, %v4370
        %4372 = vmatmul.f32.gmra.mxu0 %v2195
        %v4373 = vpop.f32.mrf.mxu0
        %v4374 = vadd.f32 %v2678, %v4373
        %4375 = vmatmul.f32.gmra.mxu0 %v2200
        %v4376 = vpop.f32.mrf.mxu0
        %v4377 = vadd.f32 %v2683, %v4376
        %4378 = vmatmul.f32.gmra.mxu0 %v2205
        %v4379 = vpop.f32.mrf.mxu0
        %v4380 = vadd.f32 %v2688, %v4379
        %4381 = vmatmul.f32.gmra.mxu0 %v2210
        %v4382 = vpop.f32.mrf.mxu0
        %v4383 = vadd.f32 %v2693, %v4382
        %4384 = vmatmul.f32.gmra.mxu0 %v2215
        %v4385 = vpop.f32.mrf.mxu0
        %v4386 = vadd.f32 %v2698, %v4385
        %4387 = vmatmul.f32.gmra.mxu0 %v2220
        %v4388 = vpop.f32.mrf.mxu0
        %v4389 = vadd.f32 %v2703, %v4388
        %4390 = vmatmul.f32.gmra.mxu0 %v2225
        %v4391 = vpop.f32.mrf.mxu0
        %v4392 = vadd.f32 %v2708, %v4391
        %4393 = vmatmul.f32.gmra.mxu0 %v2230
        %v4394 = vpop.f32.mrf.mxu0
        %v4395 = vadd.f32 %v2713, %v4394
        %4396 = vmatmul.f32.gmra.mxu0 %v2235
        %v4397 = vpop.f32.mrf.mxu0
        %v4398 = vadd.f32 %v2718, %v4397
        %4399 = vmatmul.f32.gmra.mxu0 %v2240
        %v4400 = vpop.f32.mrf.mxu0
        %v4401 = vadd.f32 %v2723, %v4400
        %4402 = vmatmul.f32.gmra.mxu0 %v2245
        %v4403 = vpop.f32.mrf.mxu0
        %v4404 = vadd.f32 %v2728, %v4403
        %4405 = vmatmul.f32.gmra.mxu0 %v2250
        %v4406 = vpop.f32.mrf.mxu0
        %v4407 = vadd.f32 %v2733, %v4406
        %4408 = vmatmul.f32.gmra.mxu0 %v2255
        %v4409 = vpop.f32.mrf.mxu0
        %v4410 = vadd.f32 %v2738, %v4409
        %4411 = vmatmul.f32.gmra.mxu0 %v2260
        %v4412 = vpop.f32.mrf.mxu0
        %v4413 = vadd.f32 %v2743, %v4412
        %4414 = vmatmul.f32.gmra.mxu0 %v2265
        %v4415 = vpop.f32.mrf.mxu0
        %v4416 = vadd.f32 %v2748, %v4415
        %4417 = vmatmul.f32.gmra.mxu0 %v2270
        %v4418 = vpop.f32.mrf.mxu0
        %v4419 = vadd.f32 %v2753, %v4418
        %4420 = vmatmul.f32.gmra.mxu0 %v2275
        %v4421 = vpop.f32.mrf.mxu0
        %v4422 = vadd.f32 %v2758, %v4421
        %4423 = vmatmul.f32.gmra.mxu0 %v2280
        %v4424 = vpop.f32.mrf.mxu0
        %v4425 = vadd.f32 %v2763, %v4424
        %4426 = vmatmul.f32.gmra.mxu0 %v2285
        %v4427 = vpop.f32.mrf.mxu0
        %v4428 = vadd.f32 %v2768, %v4427
        %4429 = vmatmul.f32.gmra.mxu0 %v2290
        %v4430 = vpop.f32.mrf.mxu0
        %v4431 = vadd.f32 %v2773, %v4430
        %4432 = vmatmul.f32.gmra.mxu0 %v2295
        %v4433 = vpop.f32.mrf.mxu0
        %v4434 = vadd.f32 %v2778, %v4433
        %4435 = vmatmul.f32.gmra.mxu0 %v2300
        %v4436 = vpop.f32.mrf.mxu0
        %v4437 = vadd.f32 %v2783, %v4436
        %4438 = vmatmul.f32.gmra.mxu0 %v2305
        %v4439 = vpop.f32.mrf.mxu0
        %v4440 = vadd.f32 %v2788, %v4439
        %4441 = vmatmul.f32.gmra.mxu0 %v2310
        %v4442 = vpop.f32.mrf.mxu0
        %v4443 = vadd.f32 %v2793, %v4442
        %4444 = vmatmul.f32.gmra.mxu0 %v2315
        %v4445 = vpop.f32.mrf.mxu0
        %v4446 = vadd.f32 %v2798, %v4445
        %4447 = vmatmul.f32.gmra.mxu0 %v2320
        %v4448 = vpop.f32.mrf.mxu0
        %v4449 = vadd.f32 %v2803, %v4448
        %4450 = vmatmul.f32.gmra.mxu0 %v2325
        %v4451 = vpop.f32.mrf.mxu0
        %v4452 = vadd.f32 %v2808, %v4451
        %4453 = vmatmul.f32.gmra.mxu0 %v2330
        %v4454 = vpop.f32.mrf.mxu0
        %v4455 = vadd.f32 %v2813, %v4454
        %4456 = vmatmul.f32.gmra.mxu0 %v2335
        %v4457 = vpop.f32.mrf.mxu0
        %v4458 = vadd.f32 %v2818, %v4457
        %4459 = vmatmul.f32.gmra.mxu0 %v2340
        %v4460 = vpop.f32.mrf.mxu0
        %v4461 = vadd.f32 %v2823, %v4460
        %4462 = vmatmul.f32.gmra.mxu0 %v2345
        %v4463 = vpop.f32.mrf.mxu0
        %v4464 = vadd.f32 %v2828, %v4463
        %4465 = vmatmul.f32.gmra.mxu0 %v2350
        %v4466 = vpop.f32.mrf.mxu0
        %v4467 = vadd.f32 %v2833, %v4466
        %4468 = vmatmul.f32.gmra.mxu0 %v2355
        %v4469 = vpop.f32.mrf.mxu0
        %v4470 = vadd.f32 %v2838, %v4469
        %4471 = vmatmul.f32.gmra.mxu0 %v2360
        %v4472 = vpop.f32.mrf.mxu0
        %v4473 = vadd.f32 %v2843, %v4472
        %4474 = vmatmul.f32.gmra.mxu0 %v2365
        %v4475 = vpop.f32.mrf.mxu0
        %v4476 = vadd.f32 %v2848, %v4475
        %4477 = vmatmul.f32.gmra.mxu0 %v2370
        %v4478 = vpop.f32.mrf.mxu0
        %v4479 = vadd.f32 %v2853, %v4478
        %4480 = vmatmul.f32.gmra.mxu0 %v2375
        %v4481 = vpop.f32.mrf.mxu0
        %v4482 = vadd.f32 %v2858, %v4481
        %4483 = vmatmul.f32.gmra.mxu0 %v2380
        %v4484 = vpop.f32.mrf.mxu0
        %v4485 = vadd.f32 %v2863, %v4484
        %4486 = vmatmul.f32.gmra.mxu0 %v2385
        %v4487 = vpop.f32.mrf.mxu0
        %v4488 = vadd.f32 %v2868, %v4487
        %4489 = vmatmul.f32.gmra.mxu0 %v2390
        %v4490 = vpop.f32.mrf.mxu0
        %v4491 = vadd.f32 %v2873, %v4490
        %4492 = vmatmul.f32.gmra.mxu0 %v2395
        %v4493 = vpop.f32.mrf.mxu0
        %v4494 = vadd.f32 %v2878, %v4493
        %4495 = vmatmul.f32.gmra.mxu0 %v2400
        %v4496 = vpop.f32.mrf.mxu0
        %v4497 = vadd.f32 %v2883, %v4496
        %4498 = vmatmul.f32.gmra.mxu0 %v2405
        %v4499 = vpop.f32.mrf.mxu0
        %v4500 = vadd.f32 %v2888, %v4499
        %4501 = vmatmul.f32.gmra.mxu0 %v2410
        %v4502 = vpop.f32.mrf.mxu0
        %v4503 = vadd.f32 %v2893, %v4502
        %4504 = vmatmul.f32.gmra.mxu0 %v2415
        %v4505 = vpop.f32.mrf.mxu0
        %v4506 = vadd.f32 %v2898, %v4505
        %4507 = vmatmul.f32.gmra.mxu0 %v2420
        %v4508 = vpop.f32.mrf.mxu0
        %v4509 = vadd.f32 %v2903, %v4508
        %4510 = vmatmul.f32.gmra.mxu0 %v2425
        %v4511 = vpop.f32.mrf.mxu0
        %v4512 = vadd.f32 %v2908, %v4511
        %4513 = vmatmul.f32.gmra.mxu0 %v2430
        %v4514 = vpop.f32.mrf.mxu0
        %v4515 = vadd.f32 %v2913, %v4514
        %4516 = vmatmul.f32.gmra.mxu0 %v2435
        %v4517 = vpop.f32.mrf.mxu0
        %v4518 = vadd.f32 %v2918, %v4517
        %4519 = vmatmul.f32.gmra.mxu0 %v2440
        %v4520 = vpop.f32.mrf.mxu0
        %v4521 = vadd.f32 %v2923, %v4520
        %4522 = vmatmul.f32.gmra.mxu0 %v2445
        %v4523 = vpop.f32.mrf.mxu0
        %v4524 = vadd.f32 %v2928, %v4523
        %4525 = vmatmul.f32.gmra.mxu0 %v2450
        %v4526 = vpop.f32.mrf.mxu0
        %v4527 = vadd.f32 %v2933, %v4526
        %4528 = vmatmul.f32.gmra.mxu0 %v2455
        %v4529 = vpop.f32.mrf.mxu0
        %v4530 = vadd.f32 %v2938, %v4529
        %4531 = vmatmul.f32.gmra.mxu0 %v2460
        %v4532 = vpop.f32.mrf.mxu0
        %v4533 = vadd.f32 %v2943, %v4532
        %4534 = vmatmul.f32.gmra.mxu0 %v2465
        %v4535 = vpop.f32.mrf.mxu0
        %v4536 = vadd.f32 %v2948, %v4535
        %4537 = vmatmul.f32.gmra.mxu0 %v2470
        %v4538 = vpop.f32.mrf.mxu0
        %v4539 = vadd.f32 %v2953, %v4538
        %4540 = vmatmul.f32.gmra.mxu0 %v2475
        %v4541 = vpop.f32.mrf.mxu0
        %v4542 = vadd.f32 %v2958, %v4541
        %4543 = vmatmul.f32.gmra.mxu0 %v2480
        %v4544 = vpop.f32.mrf.mxu0
        %v4545 = vadd.f32 %v2963, %v4544
        %4546 = vmatmul.f32.gmra.mxu0 %v2485
        %v4547 = vpop.f32.mrf.mxu0
        %v4548 = vadd.f32 %v2968, %v4547
        %4549 = vmatmul.f32.gmra.mxu0 %v2490
        %v4550 = vpop.f32.mrf.mxu0
        %v4551 = vadd.f32 %v2973, %v4550
        %4552 = vmatmul.f32.gmra.mxu0 %v2495
        %v4553 = vpop.f32.mrf.mxu0
        %v4554 = vadd.f32 %v2978, %v4553
        %4555 = vmatmul.f32.gmra.mxu0 %v2500
        %v4556 = vpop.f32.mrf.mxu0
        %v4557 = vadd.f32 %v2983, %v4556
        %4558 = vmatmul.f32.gmra.mxu0 %v2505
        %v4559 = vpop.f32.mrf.mxu0
        %v4560 = vadd.f32 %v2988, %v4559
        %4561 = vmatmul.f32.gmra.mxu0 %v2510
        %v4562 = vpop.f32.mrf.mxu0
        %v4563 = vadd.f32 %v2993, %v4562
        %4564 = vmatmul.f32.gmra.mxu0 %v2515
        %v4565 = vpop.f32.mrf.mxu0
        %v4566 = vadd.f32 %v2998, %v4565
        %4567 = vmatmul.f32.gmra.mxu0 %v2520
        %v4568 = vpop.f32.mrf.mxu0
        %v4569 = vadd.f32 %v3003, %v4568
        %4570 = vmatmul.f32.gmra.mxu0 %v2525
        %v4571 = vpop.f32.mrf.mxu0
        %v4572 = vadd.f32 %v3008, %v4571
        %4573 = vmatmul.f32.gmra.mxu0 %v2530
        %v4574 = vpop.f32.mrf.mxu0
        %v4575 = vadd.f32 %v3013, %v4574
        %4576 = vmatmul.f32.gmra.mxu0 %v2535
        %v4577 = vpop.f32.mrf.mxu0
        %v4578 = vadd.f32 %v3018, %v4577
        %4579 = vmatmul.f32.gmra.mxu0 %v2540
        %v4580 = vpop.f32.mrf.mxu0
        %v4581 = vadd.f32 %v3023, %v4580
        %4582 = vmatmul.f32.gmra.mxu0 %v2545
        %v4583 = vpop.f32.mrf.mxu0
        %v4584 = vadd.f32 %v3028, %v4583
        %4585 = vmatmul.f32.gmra.mxu0 %v2550
        %v4586 = vpop.f32.mrf.mxu0
        %v4587 = vadd.f32 %v3033, %v4586
        %4588 = vmatmul.f32.gmra.mxu0 %v2555
        %v4589 = vpop.f32.mrf.mxu0
        %v4590 = vadd.f32 %v3038, %v4589
        %4591 = vmatmul.f32.gmra.mxu0 %v2560
        %v4592 = vpop.f32.mrf.mxu0
        %v4593 = vadd.f32 %v3043, %v4592
        %4594 = vmatmul.f32.gmra.mxu0 %v2565
        %v4595 = vpop.f32.mrf.mxu0
        %v4596 = vadd.f32 %v3048, %v4595
        %4597 = vmatmul.f32.gmra.mxu0 %v2570
        %v4598 = vpop.f32.mrf.mxu0
        %v4599 = vadd.f32 %v3053, %v4598
        %4600 = vmatmul.f32.gmra.mxu0 %v2575
        %v4601 = vpop.f32.mrf.mxu0
        %v4602 = vadd.f32 %v3058, %v4601
        %4603 = vmatmul.f32.gmra.mxu0 %v2580
        %v4604 = vpop.f32.mrf.mxu0
        %v4605 = vadd.f32 %v3063, %v4604
        %4606 = vdwg.mxu0
        %4607 = vmatpush.msra.mxu0 %v2088
        %4608 = vmatpush.msra.mxu0 %v2086
        %4609 = vmatpush.msra.mxu0 %v2084
        %4610 = vmatpush.msra.mxu0 %v2082
        %4611 = vmatpush.msra.mxu0 %v2080
        %4612 = vmatpush.msra.mxu0 %v2078
        %4613 = vmatpush.msra.mxu0 %v2076
        %4614 = vmatpush.msra.mxu0 %v2074
        %4615 = vmatpush.msra.mxu0 %v2072
        %4616 = vmatpush.msra.mxu0 %v2070
        %4617 = vmatpush.msra.mxu0 %v2068
        %4618 = vmatpush.msra.mxu0 %v2066
        %4619 = vmatpush.msra.mxu0 %v2064
        %4620 = vmatpush.msra.mxu0 %v2062
        %4621 = vmatpush.msra.mxu0 %v2060
        %4622 = vmatpush.msra.mxu0 %v2058
        %4623 = vmatmul.f32.gmra.mxu0 %v2186
        %v4624 = vpop.f32.mrf.mxu0
        %v4625 = vadd.f32 %v4368, %v4624
        %4626 = vmatmul.f32.gmra.mxu0 %v2191
        %v4627 = vpop.f32.mrf.mxu0
        %v4628 = vadd.f32 %v4371, %v4627
        %4629 = vmatmul.f32.gmra.mxu0 %v2196
        %v4630 = vpop.f32.mrf.mxu0
        %v4631 = vadd.f32 %v4374, %v4630
        %4632 = vmatmul.f32.gmra.mxu0 %v2201
        %v4633 = vpop.f32.mrf.mxu0
        %v4634 = vadd.f32 %v4377, %v4633
        %4635 = vmatmul.f32.gmra.mxu0 %v2206
        %v4636 = vpop.f32.mrf.mxu0
        %v4637 = vadd.f32 %v4380, %v4636
        %4638 = vmatmul.f32.gmra.mxu0 %v2211
        %v4639 = vpop.f32.mrf.mxu0
        %v4640 = vadd.f32 %v4383, %v4639
        %4641 = vmatmul.f32.gmra.mxu0 %v2216
        %v4642 = vpop.f32.mrf.mxu0
        %v4643 = vadd.f32 %v4386, %v4642
        %4644 = vmatmul.f32.gmra.mxu0 %v2221
        %v4645 = vpop.f32.mrf.mxu0
        %v4646 = vadd.f32 %v4389, %v4645
        %4647 = vmatmul.f32.gmra.mxu0 %v2226
        %v4648 = vpop.f32.mrf.mxu0
        %v4649 = vadd.f32 %v4392, %v4648
        %4650 = vmatmul.f32.gmra.mxu0 %v2231
        %v4651 = vpop.f32.mrf.mxu0
        %v4652 = vadd.f32 %v4395, %v4651
        %4653 = vmatmul.f32.gmra.mxu0 %v2236
        %v4654 = vpop.f32.mrf.mxu0
        %v4655 = vadd.f32 %v4398, %v4654
        %4656 = vmatmul.f32.gmra.mxu0 %v2241
        %v4657 = vpop.f32.mrf.mxu0
        %v4658 = vadd.f32 %v4401, %v4657
        %4659 = vmatmul.f32.gmra.mxu0 %v2246
        %v4660 = vpop.f32.mrf.mxu0
        %v4661 = vadd.f32 %v4404, %v4660
        %4662 = vmatmul.f32.gmra.mxu0 %v2251
        %v4663 = vpop.f32.mrf.mxu0
        %v4664 = vadd.f32 %v4407, %v4663
        %4665 = vmatmul.f32.gmra.mxu0 %v2256
        %v4666 = vpop.f32.mrf.mxu0
        %v4667 = vadd.f32 %v4410, %v4666
        %4668 = vmatmul.f32.gmra.mxu0 %v2261
        %v4669 = vpop.f32.mrf.mxu0
        %v4670 = vadd.f32 %v4413, %v4669
        %4671 = vmatmul.f32.gmra.mxu0 %v2266
        %v4672 = vpop.f32.mrf.mxu0
        %v4673 = vadd.f32 %v4416, %v4672
        %4674 = vmatmul.f32.gmra.mxu0 %v2271
        %v4675 = vpop.f32.mrf.mxu0
        %v4676 = vadd.f32 %v4419, %v4675
        %4677 = vmatmul.f32.gmra.mxu0 %v2276
        %v4678 = vpop.f32.mrf.mxu0
        %v4679 = vadd.f32 %v4422, %v4678
        %4680 = vmatmul.f32.gmra.mxu0 %v2281
        %v4681 = vpop.f32.mrf.mxu0
        %v4682 = vadd.f32 %v4425, %v4681
        %4683 = vmatmul.f32.gmra.mxu0 %v2286
        %v4684 = vpop.f32.mrf.mxu0
        %v4685 = vadd.f32 %v4428, %v4684
        %4686 = vmatmul.f32.gmra.mxu0 %v2291
        %v4687 = vpop.f32.mrf.mxu0
        %v4688 = vadd.f32 %v4431, %v4687
        %4689 = vmatmul.f32.gmra.mxu0 %v2296
        %v4690 = vpop.f32.mrf.mxu0
        %v4691 = vadd.f32 %v4434, %v4690
        %4692 = vmatmul.f32.gmra.mxu0 %v2301
        %v4693 = vpop.f32.mrf.mxu0
        %v4694 = vadd.f32 %v4437, %v4693
        %4695 = vmatmul.f32.gmra.mxu0 %v2306
        %v4696 = vpop.f32.mrf.mxu0
        %v4697 = vadd.f32 %v4440, %v4696
        %4698 = vmatmul.f32.gmra.mxu0 %v2311
        %v4699 = vpop.f32.mrf.mxu0
        %v4700 = vadd.f32 %v4443, %v4699
        %4701 = vmatmul.f32.gmra.mxu0 %v2316
        %v4702 = vpop.f32.mrf.mxu0
        %v4703 = vadd.f32 %v4446, %v4702
        %4704 = vmatmul.f32.gmra.mxu0 %v2321
        %v4705 = vpop.f32.mrf.mxu0
        %v4706 = vadd.f32 %v4449, %v4705
        %4707 = vmatmul.f32.gmra.mxu0 %v2326
        %v4708 = vpop.f32.mrf.mxu0
        %v4709 = vadd.f32 %v4452, %v4708
        %4710 = vmatmul.f32.gmra.mxu0 %v2331
        %v4711 = vpop.f32.mrf.mxu0
        %v4712 = vadd.f32 %v4455, %v4711
        %4713 = vmatmul.f32.gmra.mxu0 %v2336
        %v4714 = vpop.f32.mrf.mxu0
        %v4715 = vadd.f32 %v4458, %v4714
        %4716 = vmatmul.f32.gmra.mxu0 %v2341
        %v4717 = vpop.f32.mrf.mxu0
        %v4718 = vadd.f32 %v4461, %v4717
        %4719 = vmatmul.f32.gmra.mxu0 %v2346
        %v4720 = vpop.f32.mrf.mxu0
        %v4721 = vadd.f32 %v4464, %v4720
        %4722 = vmatmul.f32.gmra.mxu0 %v2351
        %v4723 = vpop.f32.mrf.mxu0
        %v4724 = vadd.f32 %v4467, %v4723
        %4725 = vmatmul.f32.gmra.mxu0 %v2356
        %v4726 = vpop.f32.mrf.mxu0
        %v4727 = vadd.f32 %v4470, %v4726
        %4728 = vmatmul.f32.gmra.mxu0 %v2361
        %v4729 = vpop.f32.mrf.mxu0
        %v4730 = vadd.f32 %v4473, %v4729
        %4731 = vmatmul.f32.gmra.mxu0 %v2366
        %v4732 = vpop.f32.mrf.mxu0
        %v4733 = vadd.f32 %v4476, %v4732
        %4734 = vmatmul.f32.gmra.mxu0 %v2371
        %v4735 = vpop.f32.mrf.mxu0
        %v4736 = vadd.f32 %v4479, %v4735
        %4737 = vmatmul.f32.gmra.mxu0 %v2376
        %v4738 = vpop.f32.mrf.mxu0
        %v4739 = vadd.f32 %v4482, %v4738
        %4740 = vmatmul.f32.gmra.mxu0 %v2381
        %v4741 = vpop.f32.mrf.mxu0
        %v4742 = vadd.f32 %v4485, %v4741
        %4743 = vmatmul.f32.gmra.mxu0 %v2386
        %v4744 = vpop.f32.mrf.mxu0
        %v4745 = vadd.f32 %v4488, %v4744
        %4746 = vmatmul.f32.gmra.mxu0 %v2391
        %v4747 = vpop.f32.mrf.mxu0
        %v4748 = vadd.f32 %v4491, %v4747
        %4749 = vmatmul.f32.gmra.mxu0 %v2396
        %v4750 = vpop.f32.mrf.mxu0
        %v4751 = vadd.f32 %v4494, %v4750
        %4752 = vmatmul.f32.gmra.mxu0 %v2401
        %v4753 = vpop.f32.mrf.mxu0
        %v4754 = vadd.f32 %v4497, %v4753
        %4755 = vmatmul.f32.gmra.mxu0 %v2406
        %v4756 = vpop.f32.mrf.mxu0
        %v4757 = vadd.f32 %v4500, %v4756
        %4758 = vmatmul.f32.gmra.mxu0 %v2411
        %v4759 = vpop.f32.mrf.mxu0
        %v4760 = vadd.f32 %v4503, %v4759
        %4761 = vmatmul.f32.gmra.mxu0 %v2416
        %v4762 = vpop.f32.mrf.mxu0
        %v4763 = vadd.f32 %v4506, %v4762
        %4764 = vmatmul.f32.gmra.mxu0 %v2421
        %v4765 = vpop.f32.mrf.mxu0
        %v4766 = vadd.f32 %v4509, %v4765
        %4767 = vmatmul.f32.gmra.mxu0 %v2426
        %v4768 = vpop.f32.mrf.mxu0
        %v4769 = vadd.f32 %v4512, %v4768
        %4770 = vmatmul.f32.gmra.mxu0 %v2431
        %v4771 = vpop.f32.mrf.mxu0
        %v4772 = vadd.f32 %v4515, %v4771
        %4773 = vmatmul.f32.gmra.mxu0 %v2436
        %v4774 = vpop.f32.mrf.mxu0
        %v4775 = vadd.f32 %v4518, %v4774
        %4776 = vmatmul.f32.gmra.mxu0 %v2441
        %v4777 = vpop.f32.mrf.mxu0
        %v4778 = vadd.f32 %v4521, %v4777
        %4779 = vmatmul.f32.gmra.mxu0 %v2446
        %v4780 = vpop.f32.mrf.mxu0
        %v4781 = vadd.f32 %v4524, %v4780
        %4782 = vmatmul.f32.gmra.mxu0 %v2451
        %v4783 = vpop.f32.mrf.mxu0
        %v4784 = vadd.f32 %v4527, %v4783
        %4785 = vmatmul.f32.gmra.mxu0 %v2456
        %v4786 = vpop.f32.mrf.mxu0
        %v4787 = vadd.f32 %v4530, %v4786
        %4788 = vmatmul.f32.gmra.mxu0 %v2461
        %v4789 = vpop.f32.mrf.mxu0
        %v4790 = vadd.f32 %v4533, %v4789
        %4791 = vmatmul.f32.gmra.mxu0 %v2466
        %v4792 = vpop.f32.mrf.mxu0
        %v4793 = vadd.f32 %v4536, %v4792
        %4794 = vmatmul.f32.gmra.mxu0 %v2471
        %v4795 = vpop.f32.mrf.mxu0
        %v4796 = vadd.f32 %v4539, %v4795
        %4797 = vmatmul.f32.gmra.mxu0 %v2476
        %v4798 = vpop.f32.mrf.mxu0
        %v4799 = vadd.f32 %v4542, %v4798
        %4800 = vmatmul.f32.gmra.mxu0 %v2481
        %v4801 = vpop.f32.mrf.mxu0
        %v4802 = vadd.f32 %v4545, %v4801
        %4803 = vmatmul.f32.gmra.mxu0 %v2486
        %v4804 = vpop.f32.mrf.mxu0
        %v4805 = vadd.f32 %v4548, %v4804
        %4806 = vmatmul.f32.gmra.mxu0 %v2491
        %v4807 = vpop.f32.mrf.mxu0
        %v4808 = vadd.f32 %v4551, %v4807
        %4809 = vmatmul.f32.gmra.mxu0 %v2496
        %v4810 = vpop.f32.mrf.mxu0
        %v4811 = vadd.f32 %v4554, %v4810
        %4812 = vmatmul.f32.gmra.mxu0 %v2501
        %v4813 = vpop.f32.mrf.mxu0
        %v4814 = vadd.f32 %v4557, %v4813
        %4815 = vmatmul.f32.gmra.mxu0 %v2506
        %v4816 = vpop.f32.mrf.mxu0
        %v4817 = vadd.f32 %v4560, %v4816
        %4818 = vmatmul.f32.gmra.mxu0 %v2511
        %v4819 = vpop.f32.mrf.mxu0
        %v4820 = vadd.f32 %v4563, %v4819
        %4821 = vmatmul.f32.gmra.mxu0 %v2516
        %v4822 = vpop.f32.mrf.mxu0
        %v4823 = vadd.f32 %v4566, %v4822
        %4824 = vmatmul.f32.gmra.mxu0 %v2521
        %v4825 = vpop.f32.mrf.mxu0
        %v4826 = vadd.f32 %v4569, %v4825
        %4827 = vmatmul.f32.gmra.mxu0 %v2526
        %v4828 = vpop.f32.mrf.mxu0
        %v4829 = vadd.f32 %v4572, %v4828
        %4830 = vmatmul.f32.gmra.mxu0 %v2531
        %v4831 = vpop.f32.mrf.mxu0
        %v4832 = vadd.f32 %v4575, %v4831
        %4833 = vmatmul.f32.gmra.mxu0 %v2536
        %v4834 = vpop.f32.mrf.mxu0
        %v4835 = vadd.f32 %v4578, %v4834
        %4836 = vmatmul.f32.gmra.mxu0 %v2541
        %v4837 = vpop.f32.mrf.mxu0
        %v4838 = vadd.f32 %v4581, %v4837
        %4839 = vmatmul.f32.gmra.mxu0 %v2546
        %v4840 = vpop.f32.mrf.mxu0
        %v4841 = vadd.f32 %v4584, %v4840
        %4842 = vmatmul.f32.gmra.mxu0 %v2551
        %v4843 = vpop.f32.mrf.mxu0
        %v4844 = vadd.f32 %v4587, %v4843
        %4845 = vmatmul.f32.gmra.mxu0 %v2556
        %v4846 = vpop.f32.mrf.mxu0
        %v4847 = vadd.f32 %v4590, %v4846
        %4848 = vmatmul.f32.gmra.mxu0 %v2561
        %v4849 = vpop.f32.mrf.mxu0
        %v4850 = vadd.f32 %v4593, %v4849
        %4851 = vmatmul.f32.gmra.mxu0 %v2566
        %v4852 = vpop.f32.mrf.mxu0
        %v4853 = vadd.f32 %v4596, %v4852
        %4854 = vmatmul.f32.gmra.mxu0 %v2571
        %v4855 = vpop.f32.mrf.mxu0
        %v4856 = vadd.f32 %v4599, %v4855
        %4857 = vmatmul.f32.gmra.mxu0 %v2576
        %v4858 = vpop.f32.mrf.mxu0
        %v4859 = vadd.f32 %v4602, %v4858
        %4860 = vmatmul.f32.gmra.mxu0 %v2581
        %v4861 = vpop.f32.mrf.mxu0
        %v4862 = vadd.f32 %v4605, %v4861
        %4863 = vdwg.mxu0
        %4864 = vmatpush.msra.mxu0 %v2120
        %4865 = vmatpush.msra.mxu0 %v2118
        %4866 = vmatpush.msra.mxu0 %v2116
        %4867 = vmatpush.msra.mxu0 %v2114
        %4868 = vmatpush.msra.mxu0 %v2112
        %4869 = vmatpush.msra.mxu0 %v2110
        %4870 = vmatpush.msra.mxu0 %v2108
        %4871 = vmatpush.msra.mxu0 %v2106
        %4872 = vmatpush.msra.mxu0 %v2104
        %4873 = vmatpush.msra.mxu0 %v2102
        %4874 = vmatpush.msra.mxu0 %v2100
        %4875 = vmatpush.msra.mxu0 %v2098
        %4876 = vmatpush.msra.mxu0 %v2096
        %4877 = vmatpush.msra.mxu0 %v2094
        %4878 = vmatpush.msra.mxu0 %v2092
        %4879 = vmatpush.msra.mxu0 %v2090
        %4880 = vmatmul.f32.gmra.mxu0 %v2187
        %v4881 = vpop.f32.mrf.mxu0
        %v4882 = vadd.f32 %v4625, %v4881
        %4883 = vmatmul.f32.gmra.mxu0 %v2192
        %v4884 = vpop.f32.mrf.mxu0
        %v4885 = vadd.f32 %v4628, %v4884
        %4886 = vmatmul.f32.gmra.mxu0 %v2197
        %v4887 = vpop.f32.mrf.mxu0
        %v4888 = vadd.f32 %v4631, %v4887
        %4889 = vmatmul.f32.gmra.mxu0 %v2202
        %v4890 = vpop.f32.mrf.mxu0
        %v4891 = vadd.f32 %v4634, %v4890
        %4892 = vmatmul.f32.gmra.mxu0 %v2207
        %v4893 = vpop.f32.mrf.mxu0
        %v4894 = vadd.f32 %v4637, %v4893
        %4895 = vmatmul.f32.gmra.mxu0 %v2212
        %v4896 = vpop.f32.mrf.mxu0
        %v4897 = vadd.f32 %v4640, %v4896
        %4898 = vmatmul.f32.gmra.mxu0 %v2217
        %v4899 = vpop.f32.mrf.mxu0
        %v4900 = vadd.f32 %v4643, %v4899
        %4901 = vmatmul.f32.gmra.mxu0 %v2222
        %v4902 = vpop.f32.mrf.mxu0
        %v4903 = vadd.f32 %v4646, %v4902
        %4904 = vmatmul.f32.gmra.mxu0 %v2227
        %v4905 = vpop.f32.mrf.mxu0
        %v4906 = vadd.f32 %v4649, %v4905
        %4907 = vmatmul.f32.gmra.mxu0 %v2232
        %v4908 = vpop.f32.mrf.mxu0
        %v4909 = vadd.f32 %v4652, %v4908
        %4910 = vmatmul.f32.gmra.mxu0 %v2237
        %v4911 = vpop.f32.mrf.mxu0
        %v4912 = vadd.f32 %v4655, %v4911
        %4913 = vmatmul.f32.gmra.mxu0 %v2242
        %v4914 = vpop.f32.mrf.mxu0
        %v4915 = vadd.f32 %v4658, %v4914
        %4916 = vmatmul.f32.gmra.mxu0 %v2247
        %v4917 = vpop.f32.mrf.mxu0
        %v4918 = vadd.f32 %v4661, %v4917
        %4919 = vmatmul.f32.gmra.mxu0 %v2252
        %v4920 = vpop.f32.mrf.mxu0
        %v4921 = vadd.f32 %v4664, %v4920
        %4922 = vmatmul.f32.gmra.mxu0 %v2257
        %v4923 = vpop.f32.mrf.mxu0
        %v4924 = vadd.f32 %v4667, %v4923
        %4925 = vmatmul.f32.gmra.mxu0 %v2262
        %v4926 = vpop.f32.mrf.mxu0
        %v4927 = vadd.f32 %v4670, %v4926
        %4928 = vmatmul.f32.gmra.mxu0 %v2267
        %v4929 = vpop.f32.mrf.mxu0
        %v4930 = vadd.f32 %v4673, %v4929
        %4931 = vmatmul.f32.gmra.mxu0 %v2272
        %v4932 = vpop.f32.mrf.mxu0
        %v4933 = vadd.f32 %v4676, %v4932
        %4934 = vmatmul.f32.gmra.mxu0 %v2277
        %v4935 = vpop.f32.mrf.mxu0
        %v4936 = vadd.f32 %v4679, %v4935
        %4937 = vmatmul.f32.gmra.mxu0 %v2282
        %v4938 = vpop.f32.mrf.mxu0
        %v4939 = vadd.f32 %v4682, %v4938
        %4940 = vmatmul.f32.gmra.mxu0 %v2287
        %v4941 = vpop.f32.mrf.mxu0
        %v4942 = vadd.f32 %v4685, %v4941
        %4943 = vmatmul.f32.gmra.mxu0 %v2292
        %v4944 = vpop.f32.mrf.mxu0
        %v4945 = vadd.f32 %v4688, %v4944
        %4946 = vmatmul.f32.gmra.mxu0 %v2297
        %v4947 = vpop.f32.mrf.mxu0
        %v4948 = vadd.f32 %v4691, %v4947
        %4949 = vmatmul.f32.gmra.mxu0 %v2302
        %v4950 = vpop.f32.mrf.mxu0
        %v4951 = vadd.f32 %v4694, %v4950
        %4952 = vmatmul.f32.gmra.mxu0 %v2307
        %v4953 = vpop.f32.mrf.mxu0
        %v4954 = vadd.f32 %v4697, %v4953
        %4955 = vmatmul.f32.gmra.mxu0 %v2312
        %v4956 = vpop.f32.mrf.mxu0
        %v4957 = vadd.f32 %v4700, %v4956
        %4958 = vmatmul.f32.gmra.mxu0 %v2317
        %v4959 = vpop.f32.mrf.mxu0
        %v4960 = vadd.f32 %v4703, %v4959
        %4961 = vmatmul.f32.gmra.mxu0 %v2322
        %v4962 = vpop.f32.mrf.mxu0
        %v4963 = vadd.f32 %v4706, %v4962
        %4964 = vmatmul.f32.gmra.mxu0 %v2327
        %v4965 = vpop.f32.mrf.mxu0
        %v4966 = vadd.f32 %v4709, %v4965
        %4967 = vmatmul.f32.gmra.mxu0 %v2332
        %v4968 = vpop.f32.mrf.mxu0
        %v4969 = vadd.f32 %v4712, %v4968
        %4970 = vmatmul.f32.gmra.mxu0 %v2337
        %v4971 = vpop.f32.mrf.mxu0
        %v4972 = vadd.f32 %v4715, %v4971
        %4973 = vmatmul.f32.gmra.mxu0 %v2342
        %v4974 = vpop.f32.mrf.mxu0
        %v4975 = vadd.f32 %v4718, %v4974
        %4976 = vmatmul.f32.gmra.mxu0 %v2347
        %v4977 = vpop.f32.mrf.mxu0
        %v4978 = vadd.f32 %v4721, %v4977
        %4979 = vmatmul.f32.gmra.mxu0 %v2352
        %v4980 = vpop.f32.mrf.mxu0
        %v4981 = vadd.f32 %v4724, %v4980
        %4982 = vmatmul.f32.gmra.mxu0 %v2357
        %v4983 = vpop.f32.mrf.mxu0
        %v4984 = vadd.f32 %v4727, %v4983
        %4985 = vmatmul.f32.gmra.mxu0 %v2362
        %v4986 = vpop.f32.mrf.mxu0
        %v4987 = vadd.f32 %v4730, %v4986
        %4988 = vmatmul.f32.gmra.mxu0 %v2367
        %v4989 = vpop.f32.mrf.mxu0
        %v4990 = vadd.f32 %v4733, %v4989
        %4991 = vmatmul.f32.gmra.mxu0 %v2372
        %v4992 = vpop.f32.mrf.mxu0
        %v4993 = vadd.f32 %v4736, %v4992
        %4994 = vmatmul.f32.gmra.mxu0 %v2377
        %v4995 = vpop.f32.mrf.mxu0
        %v4996 = vadd.f32 %v4739, %v4995
        %4997 = vmatmul.f32.gmra.mxu0 %v2382
        %v4998 = vpop.f32.mrf.mxu0
        %v4999 = vadd.f32 %v4742, %v4998
        %5000 = vmatmul.f32.gmra.mxu0 %v2387
        %v5001 = vpop.f32.mrf.mxu0
        %v5002 = vadd.f32 %v4745, %v5001
        %5003 = vmatmul.f32.gmra.mxu0 %v2392
        %v5004 = vpop.f32.mrf.mxu0
        %v5005 = vadd.f32 %v4748, %v5004
        %5006 = vmatmul.f32.gmra.mxu0 %v2397
        %v5007 = vpop.f32.mrf.mxu0
        %v5008 = vadd.f32 %v4751, %v5007
        %5009 = vmatmul.f32.gmra.mxu0 %v2402
        %v5010 = vpop.f32.mrf.mxu0
        %v5011 = vadd.f32 %v4754, %v5010
        %5012 = vmatmul.f32.gmra.mxu0 %v2407
        %v5013 = vpop.f32.mrf.mxu0
        %v5014 = vadd.f32 %v4757, %v5013
        %5015 = vmatmul.f32.gmra.mxu0 %v2412
        %v5016 = vpop.f32.mrf.mxu0
        %v5017 = vadd.f32 %v4760, %v5016
        %5018 = vmatmul.f32.gmra.mxu0 %v2417
        %v5019 = vpop.f32.mrf.mxu0
        %v5020 = vadd.f32 %v4763, %v5019
        %5021 = vmatmul.f32.gmra.mxu0 %v2422
        %v5022 = vpop.f32.mrf.mxu0
        %v5023 = vadd.f32 %v4766, %v5022
        %5024 = vmatmul.f32.gmra.mxu0 %v2427
        %v5025 = vpop.f32.mrf.mxu0
        %v5026 = vadd.f32 %v4769, %v5025
        %5027 = vmatmul.f32.gmra.mxu0 %v2432
        %v5028 = vpop.f32.mrf.mxu0
        %v5029 = vadd.f32 %v4772, %v5028
        %5030 = vmatmul.f32.gmra.mxu0 %v2437
        %v5031 = vpop.f32.mrf.mxu0
        %v5032 = vadd.f32 %v4775, %v5031
        %5033 = vmatmul.f32.gmra.mxu0 %v2442
        %v5034 = vpop.f32.mrf.mxu0
        %v5035 = vadd.f32 %v4778, %v5034
        %5036 = vmatmul.f32.gmra.mxu0 %v2447
        %v5037 = vpop.f32.mrf.mxu0
        %v5038 = vadd.f32 %v4781, %v5037
        %5039 = vmatmul.f32.gmra.mxu0 %v2452
        %v5040 = vpop.f32.mrf.mxu0
        %v5041 = vadd.f32 %v4784, %v5040
        %5042 = vmatmul.f32.gmra.mxu0 %v2457
        %v5043 = vpop.f32.mrf.mxu0
        %v5044 = vadd.f32 %v4787, %v5043
        %5045 = vmatmul.f32.gmra.mxu0 %v2462
        %v5046 = vpop.f32.mrf.mxu0
        %v5047 = vadd.f32 %v4790, %v5046
        %5048 = vmatmul.f32.gmra.mxu0 %v2467
        %v5049 = vpop.f32.mrf.mxu0
        %v5050 = vadd.f32 %v4793, %v5049
        %5051 = vmatmul.f32.gmra.mxu0 %v2472
        %v5052 = vpop.f32.mrf.mxu0
        %v5053 = vadd.f32 %v4796, %v5052
        %5054 = vmatmul.f32.gmra.mxu0 %v2477
        %v5055 = vpop.f32.mrf.mxu0
        %v5056 = vadd.f32 %v4799, %v5055
        %5057 = vmatmul.f32.gmra.mxu0 %v2482
        %v5058 = vpop.f32.mrf.mxu0
        %v5059 = vadd.f32 %v4802, %v5058
        %5060 = vmatmul.f32.gmra.mxu0 %v2487
        %v5061 = vpop.f32.mrf.mxu0
        %v5062 = vadd.f32 %v4805, %v5061
        %5063 = vmatmul.f32.gmra.mxu0 %v2492
        %v5064 = vpop.f32.mrf.mxu0
        %v5065 = vadd.f32 %v4808, %v5064
        %5066 = vmatmul.f32.gmra.mxu0 %v2497
        %v5067 = vpop.f32.mrf.mxu0
        %v5068 = vadd.f32 %v4811, %v5067
        %5069 = vmatmul.f32.gmra.mxu0 %v2502
        %v5070 = vpop.f32.mrf.mxu0
        %v5071 = vadd.f32 %v4814, %v5070
        %5072 = vmatmul.f32.gmra.mxu0 %v2507
        %v5073 = vpop.f32.mrf.mxu0
        %v5074 = vadd.f32 %v4817, %v5073
        %5075 = vmatmul.f32.gmra.mxu0 %v2512
        %v5076 = vpop.f32.mrf.mxu0
        %v5077 = vadd.f32 %v4820, %v5076
        %5078 = vmatmul.f32.gmra.mxu0 %v2517
        %v5079 = vpop.f32.mrf.mxu0
        %v5080 = vadd.f32 %v4823, %v5079
        %5081 = vmatmul.f32.gmra.mxu0 %v2522
        %v5082 = vpop.f32.mrf.mxu0
        %v5083 = vadd.f32 %v4826, %v5082
        %5084 = vmatmul.f32.gmra.mxu0 %v2527
        %v5085 = vpop.f32.mrf.mxu0
        %v5086 = vadd.f32 %v4829, %v5085
        %5087 = vmatmul.f32.gmra.mxu0 %v2532
        %v5088 = vpop.f32.mrf.mxu0
        %v5089 = vadd.f32 %v4832, %v5088
        %5090 = vmatmul.f32.gmra.mxu0 %v2537
        %v5091 = vpop.f32.mrf.mxu0
        %v5092 = vadd.f32 %v4835, %v5091
        %5093 = vmatmul.f32.gmra.mxu0 %v2542
        %v5094 = vpop.f32.mrf.mxu0
        %v5095 = vadd.f32 %v4838, %v5094
        %5096 = vmatmul.f32.gmra.mxu0 %v2547
        %v5097 = vpop.f32.mrf.mxu0
        %v5098 = vadd.f32 %v4841, %v5097
        %5099 = vmatmul.f32.gmra.mxu0 %v2552
        %v5100 = vpop.f32.mrf.mxu0
        %v5101 = vadd.f32 %v4844, %v5100
        %5102 = vmatmul.f32.gmra.mxu0 %v2557
        %v5103 = vpop.f32.mrf.mxu0
        %v5104 = vadd.f32 %v4847, %v5103
        %5105 = vmatmul.f32.gmra.mxu0 %v2562
        %v5106 = vpop.f32.mrf.mxu0
        %v5107 = vadd.f32 %v4850, %v5106
        %5108 = vmatmul.f32.gmra.mxu0 %v2567
        %v5109 = vpop.f32.mrf.mxu0
        %v5110 = vadd.f32 %v4853, %v5109
        %5111 = vmatmul.f32.gmra.mxu0 %v2572
        %v5112 = vpop.f32.mrf.mxu0
        %v5113 = vadd.f32 %v4856, %v5112
        %5114 = vmatmul.f32.gmra.mxu0 %v2577
        %v5115 = vpop.f32.mrf.mxu0
        %v5116 = vadd.f32 %v4859, %v5115
        %5117 = vmatmul.f32.gmra.mxu0 %v2582
        %v5118 = vpop.f32.mrf.mxu0
        %v5119 = vadd.f32 %v4862, %v5118
        %5120 = vdwg.mxu0
        %5121 = vmatpush.msra.mxu0 %v2152
        %5122 = vmatpush.msra.mxu0 %v2150
        %5123 = vmatpush.msra.mxu0 %v2148
        %5124 = vmatpush.msra.mxu0 %v2146
        %5125 = vmatpush.msra.mxu0 %v2144
        %5126 = vmatpush.msra.mxu0 %v2142
        %5127 = vmatpush.msra.mxu0 %v2140
        %5128 = vmatpush.msra.mxu0 %v2138
        %5129 = vmatpush.msra.mxu0 %v2136
        %5130 = vmatpush.msra.mxu0 %v2134
        %5131 = vmatpush.msra.mxu0 %v2132
        %5132 = vmatpush.msra.mxu0 %v2130
        %5133 = vmatpush.msra.mxu0 %v2128
        %5134 = vmatpush.msra.mxu0 %v2126
        %5135 = vmatpush.msra.mxu0 %v2124
        %5136 = vmatpush.msra.mxu0 %v2122
        %5137 = vmatmul.f32.gmra.mxu0 %v2188
        %v5138 = vpop.f32.mrf.mxu0
        %v5139 = vadd.f32 %v4882, %v5138
        %5140 = vmatmul.f32.gmra.mxu0 %v2193
        %v5141 = vpop.f32.mrf.mxu0
        %v5142 = vadd.f32 %v4885, %v5141
        %5143 = vmatmul.f32.gmra.mxu0 %v2198
        %v5144 = vpop.f32.mrf.mxu0
        %v5145 = vadd.f32 %v4888, %v5144
        %5146 = vmatmul.f32.gmra.mxu0 %v2203
        %v5147 = vpop.f32.mrf.mxu0
        %v5148 = vadd.f32 %v4891, %v5147
        %5149 = vmatmul.f32.gmra.mxu0 %v2208
        %v5150 = vpop.f32.mrf.mxu0
        %v5151 = vadd.f32 %v4894, %v5150
        %5152 = vmatmul.f32.gmra.mxu0 %v2213
        %v5153 = vpop.f32.mrf.mxu0
        %v5154 = vadd.f32 %v4897, %v5153
        %5155 = vmatmul.f32.gmra.mxu0 %v2218
        %v5156 = vpop.f32.mrf.mxu0
        %v5157 = vadd.f32 %v4900, %v5156
        %5158 = vmatmul.f32.gmra.mxu0 %v2223
        %v5159 = vpop.f32.mrf.mxu0
        %v5160 = vadd.f32 %v4903, %v5159
        %5161 = vmatmul.f32.gmra.mxu0 %v2228
        %v5162 = vpop.f32.mrf.mxu0
        %v5163 = vadd.f32 %v4906, %v5162
        %5164 = vmatmul.f32.gmra.mxu0 %v2233
        %v5165 = vpop.f32.mrf.mxu0
        %v5166 = vadd.f32 %v4909, %v5165
        %5167 = vmatmul.f32.gmra.mxu0 %v2238
        %v5168 = vpop.f32.mrf.mxu0
        %v5169 = vadd.f32 %v4912, %v5168
        %5170 = vmatmul.f32.gmra.mxu0 %v2243
        %v5171 = vpop.f32.mrf.mxu0
        %v5172 = vadd.f32 %v4915, %v5171
        %5173 = vmatmul.f32.gmra.mxu0 %v2248
        %v5174 = vpop.f32.mrf.mxu0
        %v5175 = vadd.f32 %v4918, %v5174
        %5176 = vmatmul.f32.gmra.mxu0 %v2253
        %v5177 = vpop.f32.mrf.mxu0
        %v5178 = vadd.f32 %v4921, %v5177
        %5179 = vmatmul.f32.gmra.mxu0 %v2258
        %v5180 = vpop.f32.mrf.mxu0
        %v5181 = vadd.f32 %v4924, %v5180
        %5182 = vmatmul.f32.gmra.mxu0 %v2263
        %v5183 = vpop.f32.mrf.mxu0
        %v5184 = vadd.f32 %v4927, %v5183
        %5185 = vmatmul.f32.gmra.mxu0 %v2268
        %v5186 = vpop.f32.mrf.mxu0
        %v5187 = vadd.f32 %v4930, %v5186
        %5188 = vmatmul.f32.gmra.mxu0 %v2273
        %v5189 = vpop.f32.mrf.mxu0
        %v5190 = vadd.f32 %v4933, %v5189
        %5191 = vmatmul.f32.gmra.mxu0 %v2278
        %v5192 = vpop.f32.mrf.mxu0
        %v5193 = vadd.f32 %v4936, %v5192
        %5194 = vmatmul.f32.gmra.mxu0 %v2283
        %v5195 = vpop.f32.mrf.mxu0
        %v5196 = vadd.f32 %v4939, %v5195
        %5197 = vmatmul.f32.gmra.mxu0 %v2288
        %v5198 = vpop.f32.mrf.mxu0
        %v5199 = vadd.f32 %v4942, %v5198
        %5200 = vmatmul.f32.gmra.mxu0 %v2293
        %v5201 = vpop.f32.mrf.mxu0
        %v5202 = vadd.f32 %v4945, %v5201
        %5203 = vmatmul.f32.gmra.mxu0 %v2298
        %v5204 = vpop.f32.mrf.mxu0
        %v5205 = vadd.f32 %v4948, %v5204
        %5206 = vmatmul.f32.gmra.mxu0 %v2303
        %v5207 = vpop.f32.mrf.mxu0
        %v5208 = vadd.f32 %v4951, %v5207
        %5209 = vmatmul.f32.gmra.mxu0 %v2308
        %v5210 = vpop.f32.mrf.mxu0
        %v5211 = vadd.f32 %v4954, %v5210
        %5212 = vmatmul.f32.gmra.mxu0 %v2313
        %v5213 = vpop.f32.mrf.mxu0
        %v5214 = vadd.f32 %v4957, %v5213
        %5215 = vmatmul.f32.gmra.mxu0 %v2318
        %v5216 = vpop.f32.mrf.mxu0
        %v5217 = vadd.f32 %v4960, %v5216
        %5218 = vmatmul.f32.gmra.mxu0 %v2323
        %v5219 = vpop.f32.mrf.mxu0
        %v5220 = vadd.f32 %v4963, %v5219
        %5221 = vmatmul.f32.gmra.mxu0 %v2328
        %v5222 = vpop.f32.mrf.mxu0
        %v5223 = vadd.f32 %v4966, %v5222
        %5224 = vmatmul.f32.gmra.mxu0 %v2333
        %v5225 = vpop.f32.mrf.mxu0
        %v5226 = vadd.f32 %v4969, %v5225
        %5227 = vmatmul.f32.gmra.mxu0 %v2338
        %v5228 = vpop.f32.mrf.mxu0
        %v5229 = vadd.f32 %v4972, %v5228
        %5230 = vmatmul.f32.gmra.mxu0 %v2343
        %v5231 = vpop.f32.mrf.mxu0
        %v5232 = vadd.f32 %v4975, %v5231
        %5233 = vmatmul.f32.gmra.mxu0 %v2348
        %v5234 = vpop.f32.mrf.mxu0
        %v5235 = vadd.f32 %v4978, %v5234
        %5236 = vmatmul.f32.gmra.mxu0 %v2353
        %v5237 = vpop.f32.mrf.mxu0
        %v5238 = vadd.f32 %v4981, %v5237
        %5239 = vmatmul.f32.gmra.mxu0 %v2358
        %v5240 = vpop.f32.mrf.mxu0
        %v5241 = vadd.f32 %v4984, %v5240
        %5242 = vmatmul.f32.gmra.mxu0 %v2363
        %v5243 = vpop.f32.mrf.mxu0
        %v5244 = vadd.f32 %v4987, %v5243
        %5245 = vmatmul.f32.gmra.mxu0 %v2368
        %v5246 = vpop.f32.mrf.mxu0
        %v5247 = vadd.f32 %v4990, %v5246
        %5248 = vmatmul.f32.gmra.mxu0 %v2373
        %v5249 = vpop.f32.mrf.mxu0
        %v5250 = vadd.f32 %v4993, %v5249
        %5251 = vmatmul.f32.gmra.mxu0 %v2378
        %v5252 = vpop.f32.mrf.mxu0
        %v5253 = vadd.f32 %v4996, %v5252
        %5254 = vmatmul.f32.gmra.mxu0 %v2383
        %v5255 = vpop.f32.mrf.mxu0
        %v5256 = vadd.f32 %v4999, %v5255
        %5257 = vmatmul.f32.gmra.mxu0 %v2388
        %v5258 = vpop.f32.mrf.mxu0
        %v5259 = vadd.f32 %v5002, %v5258
        %5260 = vmatmul.f32.gmra.mxu0 %v2393
        %v5261 = vpop.f32.mrf.mxu0
        %v5262 = vadd.f32 %v5005, %v5261
        %5263 = vmatmul.f32.gmra.mxu0 %v2398
        %v5264 = vpop.f32.mrf.mxu0
        %v5265 = vadd.f32 %v5008, %v5264
        %5266 = vmatmul.f32.gmra.mxu0 %v2403
        %v5267 = vpop.f32.mrf.mxu0
        %v5268 = vadd.f32 %v5011, %v5267
        %5269 = vmatmul.f32.gmra.mxu0 %v2408
        %v5270 = vpop.f32.mrf.mxu0
        %v5271 = vadd.f32 %v5014, %v5270
        %5272 = vmatmul.f32.gmra.mxu0 %v2413
        %v5273 = vpop.f32.mrf.mxu0
        %v5274 = vadd.f32 %v5017, %v5273
        %5275 = vmatmul.f32.gmra.mxu0 %v2418
        %v5276 = vpop.f32.mrf.mxu0
        %v5277 = vadd.f32 %v5020, %v5276
        %5278 = vmatmul.f32.gmra.mxu0 %v2423
        %v5279 = vpop.f32.mrf.mxu0
        %v5280 = vadd.f32 %v5023, %v5279
        %5281 = vmatmul.f32.gmra.mxu0 %v2428
        %v5282 = vpop.f32.mrf.mxu0
        %v5283 = vadd.f32 %v5026, %v5282
        %5284 = vmatmul.f32.gmra.mxu0 %v2433
        %v5285 = vpop.f32.mrf.mxu0
        %v5286 = vadd.f32 %v5029, %v5285
        %5287 = vmatmul.f32.gmra.mxu0 %v2438
        %v5288 = vpop.f32.mrf.mxu0
        %v5289 = vadd.f32 %v5032, %v5288
        %5290 = vmatmul.f32.gmra.mxu0 %v2443
        %v5291 = vpop.f32.mrf.mxu0
        %v5292 = vadd.f32 %v5035, %v5291
        %5293 = vmatmul.f32.gmra.mxu0 %v2448
        %v5294 = vpop.f32.mrf.mxu0
        %v5295 = vadd.f32 %v5038, %v5294
        %5296 = vmatmul.f32.gmra.mxu0 %v2453
        %v5297 = vpop.f32.mrf.mxu0
        %v5298 = vadd.f32 %v5041, %v5297
        %5299 = vmatmul.f32.gmra.mxu0 %v2458
        %v5300 = vpop.f32.mrf.mxu0
        %v5301 = vadd.f32 %v5044, %v5300
        %5302 = vmatmul.f32.gmra.mxu0 %v2463
        %v5303 = vpop.f32.mrf.mxu0
        %v5304 = vadd.f32 %v5047, %v5303
        %5305 = vmatmul.f32.gmra.mxu0 %v2468
        %v5306 = vpop.f32.mrf.mxu0
        %v5307 = vadd.f32 %v5050, %v5306
        %5308 = vmatmul.f32.gmra.mxu0 %v2473
        %v5309 = vpop.f32.mrf.mxu0
        %v5310 = vadd.f32 %v5053, %v5309
        %5311 = vmatmul.f32.gmra.mxu0 %v2478
        %v5312 = vpop.f32.mrf.mxu0
        %v5313 = vadd.f32 %v5056, %v5312
        %5314 = vmatmul.f32.gmra.mxu0 %v2483
        %v5315 = vpop.f32.mrf.mxu0
        %v5316 = vadd.f32 %v5059, %v5315
        %5317 = vmatmul.f32.gmra.mxu0 %v2488
        %v5318 = vpop.f32.mrf.mxu0
        %v5319 = vadd.f32 %v5062, %v5318
        %5320 = vmatmul.f32.gmra.mxu0 %v2493
        %v5321 = vpop.f32.mrf.mxu0
        %v5322 = vadd.f32 %v5065, %v5321
        %5323 = vmatmul.f32.gmra.mxu0 %v2498
        %v5324 = vpop.f32.mrf.mxu0
        %v5325 = vadd.f32 %v5068, %v5324
        %5326 = vmatmul.f32.gmra.mxu0 %v2503
        %v5327 = vpop.f32.mrf.mxu0
        %v5328 = vadd.f32 %v5071, %v5327
        %5329 = vmatmul.f32.gmra.mxu0 %v2508
        %v5330 = vpop.f32.mrf.mxu0
        %v5331 = vadd.f32 %v5074, %v5330
        %5332 = vmatmul.f32.gmra.mxu0 %v2513
        %v5333 = vpop.f32.mrf.mxu0
        %v5334 = vadd.f32 %v5077, %v5333
        %5335 = vmatmul.f32.gmra.mxu0 %v2518
        %v5336 = vpop.f32.mrf.mxu0
        %v5337 = vadd.f32 %v5080, %v5336
        %5338 = vmatmul.f32.gmra.mxu0 %v2523
        %v5339 = vpop.f32.mrf.mxu0
        %v5340 = vadd.f32 %v5083, %v5339
        %5341 = vmatmul.f32.gmra.mxu0 %v2528
        %v5342 = vpop.f32.mrf.mxu0
        %v5343 = vadd.f32 %v5086, %v5342
        %5344 = vmatmul.f32.gmra.mxu0 %v2533
        %v5345 = vpop.f32.mrf.mxu0
        %v5346 = vadd.f32 %v5089, %v5345
        %5347 = vmatmul.f32.gmra.mxu0 %v2538
        %v5348 = vpop.f32.mrf.mxu0
        %v5349 = vadd.f32 %v5092, %v5348
        %5350 = vmatmul.f32.gmra.mxu0 %v2543
        %v5351 = vpop.f32.mrf.mxu0
        %v5352 = vadd.f32 %v5095, %v5351
        %5353 = vmatmul.f32.gmra.mxu0 %v2548
        %v5354 = vpop.f32.mrf.mxu0
        %v5355 = vadd.f32 %v5098, %v5354
        %5356 = vmatmul.f32.gmra.mxu0 %v2553
        %v5357 = vpop.f32.mrf.mxu0
        %v5358 = vadd.f32 %v5101, %v5357
        %5359 = vmatmul.f32.gmra.mxu0 %v2558
        %v5360 = vpop.f32.mrf.mxu0
        %v5361 = vadd.f32 %v5104, %v5360
        %5362 = vmatmul.f32.gmra.mxu0 %v2563
        %v5363 = vpop.f32.mrf.mxu0
        %v5364 = vadd.f32 %v5107, %v5363
        %5365 = vmatmul.f32.gmra.mxu0 %v2568
        %v5366 = vpop.f32.mrf.mxu0
        %v5367 = vadd.f32 %v5110, %v5366
        %5368 = vmatmul.f32.gmra.mxu0 %v2573
        %v5369 = vpop.f32.mrf.mxu0
        %v5370 = vadd.f32 %v5113, %v5369
        %5371 = vmatmul.f32.gmra.mxu0 %v2578
        %v5372 = vpop.f32.mrf.mxu0
        %v5373 = vadd.f32 %v5116, %v5372
        %5374 = vmatmul.f32.gmra.mxu0 %v2583
        %v5375 = vpop.f32.mrf.mxu0
        %v5376 = vadd.f32 %v5119, %v5375
        %5377 = vdwg.mxu0
        %5378 = vmatpush.msra.mxu0 %v2184
        %5379 = vmatpush.msra.mxu0 %v2182
        %5380 = vmatpush.msra.mxu0 %v2180
        %5381 = vmatpush.msra.mxu0 %v2178
        %5382 = vmatpush.msra.mxu0 %v2176
        %5383 = vmatpush.msra.mxu0 %v2174
        %5384 = vmatpush.msra.mxu0 %v2172
        %5385 = vmatpush.msra.mxu0 %v2170
        %5386 = vmatpush.msra.mxu0 %v2168
        %5387 = vmatpush.msra.mxu0 %v2166
        %5388 = vmatpush.msra.mxu0 %v2164
        %5389 = vmatpush.msra.mxu0 %v2162
        %5390 = vmatpush.msra.mxu0 %v2160
        %5391 = vmatpush.msra.mxu0 %v2158
        %5392 = vmatpush.msra.mxu0 %v2156
        %5393 = vmatpush.msra.mxu0 %v2154
        %5394 = vmatmul.f32.gmra.mxu0 %v2189
        %v5395 = vpop.f32.mrf.mxu0
        %v5396 = vadd.f32 %v5139, %v5395
        %5397 = vmatmul.f32.gmra.mxu0 %v2194
        %v5398 = vpop.f32.mrf.mxu0
        %v5399 = vadd.f32 %v5142, %v5398
        %5400 = vmatmul.f32.gmra.mxu0 %v2199
        %v5401 = vpop.f32.mrf.mxu0
        %v5402 = vadd.f32 %v5145, %v5401
        %5403 = vmatmul.f32.gmra.mxu0 %v2204
        %v5404 = vpop.f32.mrf.mxu0
        %v5405 = vadd.f32 %v5148, %v5404
        %5406 = vmatmul.f32.gmra.mxu0 %v2209
        %v5407 = vpop.f32.mrf.mxu0
        %v5408 = vadd.f32 %v5151, %v5407
        %5409 = vmatmul.f32.gmra.mxu0 %v2214
        %v5410 = vpop.f32.mrf.mxu0
        %v5411 = vadd.f32 %v5154, %v5410
        %5412 = vmatmul.f32.gmra.mxu0 %v2219
        %v5413 = vpop.f32.mrf.mxu0
        %v5414 = vadd.f32 %v5157, %v5413
        %5415 = vmatmul.f32.gmra.mxu0 %v2224
        %v5416 = vpop.f32.mrf.mxu0
        %v5417 = vadd.f32 %v5160, %v5416
        %5418 = vmatmul.f32.gmra.mxu0 %v2229
        %v5419 = vpop.f32.mrf.mxu0
        %v5420 = vadd.f32 %v5163, %v5419
        %5421 = vmatmul.f32.gmra.mxu0 %v2234
        %v5422 = vpop.f32.mrf.mxu0
        %v5423 = vadd.f32 %v5166, %v5422
        %5424 = vmatmul.f32.gmra.mxu0 %v2239
        %v5425 = vpop.f32.mrf.mxu0
        %v5426 = vadd.f32 %v5169, %v5425
        %5427 = vmatmul.f32.gmra.mxu0 %v2244
        %v5428 = vpop.f32.mrf.mxu0
        %v5429 = vadd.f32 %v5172, %v5428
        %5430 = vmatmul.f32.gmra.mxu0 %v2249
        %v5431 = vpop.f32.mrf.mxu0
        %v5432 = vadd.f32 %v5175, %v5431
        %5433 = vmatmul.f32.gmra.mxu0 %v2254
        %v5434 = vpop.f32.mrf.mxu0
        %v5435 = vadd.f32 %v5178, %v5434
        %5436 = vmatmul.f32.gmra.mxu0 %v2259
        %v5437 = vpop.f32.mrf.mxu0
        %v5438 = vadd.f32 %v5181, %v5437
        %5439 = vmatmul.f32.gmra.mxu0 %v2264
        %v5440 = vpop.f32.mrf.mxu0
        %v5441 = vadd.f32 %v5184, %v5440
        %5442 = vmatmul.f32.gmra.mxu0 %v2269
        %v5443 = vpop.f32.mrf.mxu0
        %v5444 = vadd.f32 %v5187, %v5443
        %5445 = vmatmul.f32.gmra.mxu0 %v2274
        %v5446 = vpop.f32.mrf.mxu0
        %v5447 = vadd.f32 %v5190, %v5446
        %5448 = vmatmul.f32.gmra.mxu0 %v2279
        %v5449 = vpop.f32.mrf.mxu0
        %v5450 = vadd.f32 %v5193, %v5449
        %5451 = vmatmul.f32.gmra.mxu0 %v2284
        %v5452 = vpop.f32.mrf.mxu0
        %v5453 = vadd.f32 %v5196, %v5452
        %5454 = vmatmul.f32.gmra.mxu0 %v2289
        %v5455 = vpop.f32.mrf.mxu0
        %v5456 = vadd.f32 %v5199, %v5455
        %5457 = vmatmul.f32.gmra.mxu0 %v2294
        %v5458 = vpop.f32.mrf.mxu0
        %v5459 = vadd.f32 %v5202, %v5458
        %5460 = vmatmul.f32.gmra.mxu0 %v2299
        %v5461 = vpop.f32.mrf.mxu0
        %v5462 = vadd.f32 %v5205, %v5461
        %5463 = vmatmul.f32.gmra.mxu0 %v2304
        %v5464 = vpop.f32.mrf.mxu0
        %v5465 = vadd.f32 %v5208, %v5464
        %5466 = vmatmul.f32.gmra.mxu0 %v2309
        %v5467 = vpop.f32.mrf.mxu0
        %v5468 = vadd.f32 %v5211, %v5467
        %5469 = vmatmul.f32.gmra.mxu0 %v2314
        %v5470 = vpop.f32.mrf.mxu0
        %v5471 = vadd.f32 %v5214, %v5470
        %5472 = vmatmul.f32.gmra.mxu0 %v2319
        %v5473 = vpop.f32.mrf.mxu0
        %v5474 = vadd.f32 %v5217, %v5473
        %5475 = vmatmul.f32.gmra.mxu0 %v2324
        %v5476 = vpop.f32.mrf.mxu0
        %v5477 = vadd.f32 %v5220, %v5476
        %5478 = vmatmul.f32.gmra.mxu0 %v2329
        %v5479 = vpop.f32.mrf.mxu0
        %v5480 = vadd.f32 %v5223, %v5479
        %5481 = vmatmul.f32.gmra.mxu0 %v2334
        %v5482 = vpop.f32.mrf.mxu0
        %v5483 = vadd.f32 %v5226, %v5482
        %5484 = vmatmul.f32.gmra.mxu0 %v2339
        %v5485 = vpop.f32.mrf.mxu0
        %v5486 = vadd.f32 %v5229, %v5485
        %5487 = vmatmul.f32.gmra.mxu0 %v2344
        %v5488 = vpop.f32.mrf.mxu0
        %v5489 = vadd.f32 %v5232, %v5488
        %5490 = vmatmul.f32.gmra.mxu0 %v2349
        %v5491 = vpop.f32.mrf.mxu0
        %v5492 = vadd.f32 %v5235, %v5491
        %5493 = vmatmul.f32.gmra.mxu0 %v2354
        %v5494 = vpop.f32.mrf.mxu0
        %v5495 = vadd.f32 %v5238, %v5494
        %5496 = vmatmul.f32.gmra.mxu0 %v2359
        %v5497 = vpop.f32.mrf.mxu0
        %v5498 = vadd.f32 %v5241, %v5497
        %5499 = vmatmul.f32.gmra.mxu0 %v2364
        %v5500 = vpop.f32.mrf.mxu0
        %v5501 = vadd.f32 %v5244, %v5500
        %5502 = vmatmul.f32.gmra.mxu0 %v2369
        %v5503 = vpop.f32.mrf.mxu0
        %v5504 = vadd.f32 %v5247, %v5503
        %5505 = vmatmul.f32.gmra.mxu0 %v2374
        %v5506 = vpop.f32.mrf.mxu0
        %v5507 = vadd.f32 %v5250, %v5506
        %5508 = vmatmul.f32.gmra.mxu0 %v2379
        %v5509 = vpop.f32.mrf.mxu0
        %v5510 = vadd.f32 %v5253, %v5509
        %5511 = vmatmul.f32.gmra.mxu0 %v2384
        %v5512 = vpop.f32.mrf.mxu0
        %v5513 = vadd.f32 %v5256, %v5512
        %5514 = vmatmul.f32.gmra.mxu0 %v2389
        %v5515 = vpop.f32.mrf.mxu0
        %v5516 = vadd.f32 %v5259, %v5515
        %5517 = vmatmul.f32.gmra.mxu0 %v2394
        %v5518 = vpop.f32.mrf.mxu0
        %v5519 = vadd.f32 %v5262, %v5518
        %5520 = vmatmul.f32.gmra.mxu0 %v2399
        %v5521 = vpop.f32.mrf.mxu0
        %v5522 = vadd.f32 %v5265, %v5521
        %5523 = vmatmul.f32.gmra.mxu0 %v2404
        %v5524 = vpop.f32.mrf.mxu0
        %v5525 = vadd.f32 %v5268, %v5524
        %5526 = vmatmul.f32.gmra.mxu0 %v2409
        %v5527 = vpop.f32.mrf.mxu0
        %v5528 = vadd.f32 %v5271, %v5527
        %5529 = vmatmul.f32.gmra.mxu0 %v2414
        %v5530 = vpop.f32.mrf.mxu0
        %v5531 = vadd.f32 %v5274, %v5530
        %5532 = vmatmul.f32.gmra.mxu0 %v2419
        %v5533 = vpop.f32.mrf.mxu0
        %v5534 = vadd.f32 %v5277, %v5533
        %5535 = vmatmul.f32.gmra.mxu0 %v2424
        %v5536 = vpop.f32.mrf.mxu0
        %v5537 = vadd.f32 %v5280, %v5536
        %5538 = vmatmul.f32.gmra.mxu0 %v2429
        %v5539 = vpop.f32.mrf.mxu0
        %v5540 = vadd.f32 %v5283, %v5539
        %5541 = vmatmul.f32.gmra.mxu0 %v2434
        %v5542 = vpop.f32.mrf.mxu0
        %v5543 = vadd.f32 %v5286, %v5542
        %5544 = vmatmul.f32.gmra.mxu0 %v2439
        %v5545 = vpop.f32.mrf.mxu0
        %v5546 = vadd.f32 %v5289, %v5545
        %5547 = vmatmul.f32.gmra.mxu0 %v2444
        %v5548 = vpop.f32.mrf.mxu0
        %v5549 = vadd.f32 %v5292, %v5548
        %5550 = vmatmul.f32.gmra.mxu0 %v2449
        %v5551 = vpop.f32.mrf.mxu0
        %v5552 = vadd.f32 %v5295, %v5551
        %5553 = vmatmul.f32.gmra.mxu0 %v2454
        %v5554 = vpop.f32.mrf.mxu0
        %v5555 = vadd.f32 %v5298, %v5554
        %5556 = vmatmul.f32.gmra.mxu0 %v2459
        %v5557 = vpop.f32.mrf.mxu0
        %v5558 = vadd.f32 %v5301, %v5557
        %5559 = vmatmul.f32.gmra.mxu0 %v2464
        %v5560 = vpop.f32.mrf.mxu0
        %v5561 = vadd.f32 %v5304, %v5560
        %5562 = vmatmul.f32.gmra.mxu0 %v2469
        %v5563 = vpop.f32.mrf.mxu0
        %v5564 = vadd.f32 %v5307, %v5563
        %5565 = vmatmul.f32.gmra.mxu0 %v2474
        %v5566 = vpop.f32.mrf.mxu0
        %v5567 = vadd.f32 %v5310, %v5566
        %5568 = vmatmul.f32.gmra.mxu0 %v2479
        %v5569 = vpop.f32.mrf.mxu0
        %v5570 = vadd.f32 %v5313, %v5569
        %5571 = vmatmul.f32.gmra.mxu0 %v2484
        %v5572 = vpop.f32.mrf.mxu0
        %v5573 = vadd.f32 %v5316, %v5572
        %5574 = vmatmul.f32.gmra.mxu0 %v2489
        %v5575 = vpop.f32.mrf.mxu0
        %v5576 = vadd.f32 %v5319, %v5575
        %5577 = vmatmul.f32.gmra.mxu0 %v2494
        %v5578 = vpop.f32.mrf.mxu0
        %v5579 = vadd.f32 %v5322, %v5578
        %5580 = vmatmul.f32.gmra.mxu0 %v2499
        %v5581 = vpop.f32.mrf.mxu0
        %v5582 = vadd.f32 %v5325, %v5581
        %5583 = vmatmul.f32.gmra.mxu0 %v2504
        %v5584 = vpop.f32.mrf.mxu0
        %v5585 = vadd.f32 %v5328, %v5584
        %5586 = vmatmul.f32.gmra.mxu0 %v2509
        %v5587 = vpop.f32.mrf.mxu0
        %v5588 = vadd.f32 %v5331, %v5587
        %5589 = vmatmul.f32.gmra.mxu0 %v2514
        %v5590 = vpop.f32.mrf.mxu0
        %v5591 = vadd.f32 %v5334, %v5590
        %5592 = vmatmul.f32.gmra.mxu0 %v2519
        %v5593 = vpop.f32.mrf.mxu0
        %v5594 = vadd.f32 %v5337, %v5593
        %5595 = vmatmul.f32.gmra.mxu0 %v2524
        %v5596 = vpop.f32.mrf.mxu0
        %v5597 = vadd.f32 %v5340, %v5596
        %5598 = vmatmul.f32.gmra.mxu0 %v2529
        %v5599 = vpop.f32.mrf.mxu0
        %v5600 = vadd.f32 %v5343, %v5599
        %5601 = vmatmul.f32.gmra.mxu0 %v2534
        %v5602 = vpop.f32.mrf.mxu0
        %v5603 = vadd.f32 %v5346, %v5602
        %5604 = vmatmul.f32.gmra.mxu0 %v2539
        %v5605 = vpop.f32.mrf.mxu0
        %v5606 = vadd.f32 %v5349, %v5605
        %5607 = vmatmul.f32.gmra.mxu0 %v2544
        %v5608 = vpop.f32.mrf.mxu0
        %v5609 = vadd.f32 %v5352, %v5608
        %5610 = vmatmul.f32.gmra.mxu0 %v2549
        %v5611 = vpop.f32.mrf.mxu0
        %v5612 = vadd.f32 %v5355, %v5611
        %5613 = vmatmul.f32.gmra.mxu0 %v2554
        %v5614 = vpop.f32.mrf.mxu0
        %v5615 = vadd.f32 %v5358, %v5614
        %5616 = vmatmul.f32.gmra.mxu0 %v2559
        %v5617 = vpop.f32.mrf.mxu0
        %v5618 = vadd.f32 %v5361, %v5617
        %5619 = vmatmul.f32.gmra.mxu0 %v2564
        %v5620 = vpop.f32.mrf.mxu0
        %v5621 = vadd.f32 %v5364, %v5620
        %5622 = vmatmul.f32.gmra.mxu0 %v2569
        %v5623 = vpop.f32.mrf.mxu0
        %v5624 = vadd.f32 %v5367, %v5623
        %5625 = vmatmul.f32.gmra.mxu0 %v2574
        %v5626 = vpop.f32.mrf.mxu0
        %v5627 = vadd.f32 %v5370, %v5626
        %5628 = vmatmul.f32.gmra.mxu0 %v2579
        %v5629 = vpop.f32.mrf.mxu0
        %v5630 = vadd.f32 %v5373, %v5629
        %5631 = vmatmul.f32.gmra.mxu0 %v2584
        %v5632 = vpop.f32.mrf.mxu0
        %v5633 = vadd.f32 %v5376, %v5632
        %5634 = vdwg.mxu0
        %vm5635 = vcmp.gt.f32.partialorder %v4111, 0.0
        %vm5636 = vcmp.gt.f32.partialorder %v5396, 0.0
        %vm5637 = vcmp.gt.f32.partialorder %v4114, 0.0
        %vm5638 = vcmp.gt.f32.partialorder %v5399, 0.0
        %vm5639 = vcmp.gt.f32.partialorder %v4117, 0.0
        %vm5640 = vcmp.gt.f32.partialorder %v5402, 0.0
        %vm5641 = vcmp.gt.f32.partialorder %v4120, 0.0
        %vm5642 = vcmp.gt.f32.partialorder %v5405, 0.0
        %vm5643 = vcmp.gt.f32.partialorder %v4123, 0.0
        %vm5644 = vcmp.gt.f32.partialorder %v5408, 0.0
        %vm5645 = vcmp.gt.f32.partialorder %v4126, 0.0
        %vm5646 = vcmp.gt.f32.partialorder %v5411, 0.0
        %vm5647 = vcmp.gt.f32.partialorder %v4129, 0.0
        %vm5648 = vcmp.gt.f32.partialorder %v5414, 0.0
        %vm5649 = vcmp.gt.f32.partialorder %v4132, 0.0
        %vm5650 = vcmp.gt.f32.partialorder %v5417, 0.0
        %vm5651 = vcmp.gt.f32.partialorder %v4135, 0.0
        %vm5652 = vcmp.gt.f32.partialorder %v5420, 0.0
        %vm5653 = vcmp.gt.f32.partialorder %v4138, 0.0
        %vm5654 = vcmp.gt.f32.partialorder %v5423, 0.0
        %vm5655 = vcmp.gt.f32.partialorder %v4141, 0.0
        %vm5656 = vcmp.gt.f32.partialorder %v5426, 0.0
        %vm5657 = vcmp.gt.f32.partialorder %v4144, 0.0
        %vm5658 = vcmp.gt.f32.partialorder %v5429, 0.0
        %vm5659 = vcmp.gt.f32.partialorder %v4147, 0.0
        %vm5660 = vcmp.gt.f32.partialorder %v5432, 0.0
        %vm5661 = vcmp.gt.f32.partialorder %v4150, 0.0
        %vm5662 = vcmp.gt.f32.partialorder %v5435, 0.0
        %vm5663 = vcmp.gt.f32.partialorder %v4153, 0.0
        %vm5664 = vcmp.gt.f32.partialorder %v5438, 0.0
        %vm5665 = vcmp.gt.f32.partialorder %v4156, 0.0
        %vm5666 = vcmp.gt.f32.partialorder %v5441, 0.0
        %vm5667 = vcmp.gt.f32.partialorder %v4159, 0.0
        %vm5668 = vcmp.gt.f32.partialorder %v5444, 0.0
        %vm5669 = vcmp.gt.f32.partialorder %v4162, 0.0
        %vm5670 = vcmp.gt.f32.partialorder %v5447, 0.0
        %vm5671 = vcmp.gt.f32.partialorder %v4165, 0.0
        %vm5672 = vcmp.gt.f32.partialorder %v5450, 0.0
        %vm5673 = vcmp.gt.f32.partialorder %v4168, 0.0
        %vm5674 = vcmp.gt.f32.partialorder %v5453, 0.0
        %vm5675 = vcmp.gt.f32.partialorder %v4171, 0.0
        %vm5676 = vcmp.gt.f32.partialorder %v5456, 0.0
        %vm5677 = vcmp.gt.f32.partialorder %v4174, 0.0
        %vm5678 = vcmp.gt.f32.partialorder %v5459, 0.0
        %vm5679 = vcmp.gt.f32.partialorder %v4177, 0.0
        %vm5680 = vcmp.gt.f32.partialorder %v5462, 0.0
        %vm5681 = vcmp.gt.f32.partialorder %v4180, 0.0
        %vm5682 = vcmp.gt.f32.partialorder %v5465, 0.0
        %vm5683 = vcmp.gt.f32.partialorder %v4183, 0.0
        %vm5684 = vcmp.gt.f32.partialorder %v5468, 0.0
        %vm5685 = vcmp.gt.f32.partialorder %v4186, 0.0
        %vm5686 = vcmp.gt.f32.partialorder %v5471, 0.0
        %vm5687 = vcmp.gt.f32.partialorder %v4189, 0.0
        %vm5688 = vcmp.gt.f32.partialorder %v5474, 0.0
        %vm5689 = vcmp.gt.f32.partialorder %v4192, 0.0
        %vm5690 = vcmp.gt.f32.partialorder %v5477, 0.0
        %vm5691 = vcmp.gt.f32.partialorder %v4195, 0.0
        %vm5692 = vcmp.gt.f32.partialorder %v5480, 0.0
        %vm5693 = vcmp.gt.f32.partialorder %v4198, 0.0
        %vm5694 = vcmp.gt.f32.partialorder %v5483, 0.0
        %vm5695 = vcmp.gt.f32.partialorder %v4201, 0.0
        %vm5696 = vcmp.gt.f32.partialorder %v5486, 0.0
        %vm5697 = vcmp.gt.f32.partialorder %v4204, 0.0
        %vm5698 = vcmp.gt.f32.partialorder %v5489, 0.0
        %vm5699 = vcmp.gt.f32.partialorder %v4207, 0.0
        %vm5700 = vcmp.gt.f32.partialorder %v5492, 0.0
        %vm5701 = vcmp.gt.f32.partialorder %v4210, 0.0
        %vm5702 = vcmp.gt.f32.partialorder %v5495, 0.0
        %vm5703 = vcmp.gt.f32.partialorder %v4213, 0.0
        %vm5704 = vcmp.gt.f32.partialorder %v5498, 0.0
        %vm5705 = vcmp.gt.f32.partialorder %v4216, 0.0
        %vm5706 = vcmp.gt.f32.partialorder %v5501, 0.0
        %vm5707 = vcmp.gt.f32.partialorder %v4219, 0.0
        %vm5708 = vcmp.gt.f32.partialorder %v5504, 0.0
        %vm5709 = vcmp.gt.f32.partialorder %v4222, 0.0
        %vm5710 = vcmp.gt.f32.partialorder %v5507, 0.0
        %vm5711 = vcmp.gt.f32.partialorder %v4225, 0.0
        %vm5712 = vcmp.gt.f32.partialorder %v5510, 0.0
        %vm5713 = vcmp.gt.f32.partialorder %v4228, 0.0
        %vm5714 = vcmp.gt.f32.partialorder %v5513, 0.0
        %vm5715 = vcmp.gt.f32.partialorder %v4231, 0.0
        %vm5716 = vcmp.gt.f32.partialorder %v5516, 0.0
        %vm5717 = vcmp.gt.f32.partialorder %v4234, 0.0
        %vm5718 = vcmp.gt.f32.partialorder %v5519, 0.0
        %vm5719 = vcmp.gt.f32.partialorder %v4237, 0.0
        %vm5720 = vcmp.gt.f32.partialorder %v5522, 0.0
        %vm5721 = vcmp.gt.f32.partialorder %v4240, 0.0
        %vm5722 = vcmp.gt.f32.partialorder %v5525, 0.0
        %vm5723 = vcmp.gt.f32.partialorder %v4243, 0.0
        %vm5724 = vcmp.gt.f32.partialorder %v5528, 0.0
        %vm5725 = vcmp.gt.f32.partialorder %v4246, 0.0
        %vm5726 = vcmp.gt.f32.partialorder %v5531, 0.0
        %vm5727 = vcmp.gt.f32.partialorder %v4249, 0.0
        %vm5728 = vcmp.gt.f32.partialorder %v5534, 0.0
        %vm5729 = vcmp.gt.f32.partialorder %v4252, 0.0
        %vm5730 = vcmp.gt.f32.partialorder %v5537, 0.0
        %vm5731 = vcmp.gt.f32.partialorder %v4255, 0.0
        %vm5732 = vcmp.gt.f32.partialorder %v5540, 0.0
        %vm5733 = vcmp.gt.f32.partialorder %v4258, 0.0
        %vm5734 = vcmp.gt.f32.partialorder %v5543, 0.0
        %vm5735 = vcmp.gt.f32.partialorder %v4261, 0.0
        %vm5736 = vcmp.gt.f32.partialorder %v5546, 0.0
        %vm5737 = vcmp.gt.f32.partialorder %v4264, 0.0
        %vm5738 = vcmp.gt.f32.partialorder %v5549, 0.0
        %vm5739 = vcmp.gt.f32.partialorder %v4267, 0.0
        %vm5740 = vcmp.gt.f32.partialorder %v5552, 0.0
        %vm5741 = vcmp.gt.f32.partialorder %v4270, 0.0
        %vm5742 = vcmp.gt.f32.partialorder %v5555, 0.0
        %vm5743 = vcmp.gt.f32.partialorder %v4273, 0.0
        %vm5744 = vcmp.gt.f32.partialorder %v5558, 0.0
        %vm5745 = vcmp.gt.f32.partialorder %v4276, 0.0
        %vm5746 = vcmp.gt.f32.partialorder %v5561, 0.0
        %vm5747 = vcmp.gt.f32.partialorder %v4279, 0.0
        %vm5748 = vcmp.gt.f32.partialorder %v5564, 0.0
        %vm5749 = vcmp.gt.f32.partialorder %v4282, 0.0
        %vm5750 = vcmp.gt.f32.partialorder %v5567, 0.0
        %vm5751 = vcmp.gt.f32.partialorder %v4285, 0.0
        %vm5752 = vcmp.gt.f32.partialorder %v5570, 0.0
        %vm5753 = vcmp.gt.f32.partialorder %v4288, 0.0
        %vm5754 = vcmp.gt.f32.partialorder %v5573, 0.0
        %vm5755 = vcmp.gt.f32.partialorder %v4291, 0.0
        %vm5756 = vcmp.gt.f32.partialorder %v5576, 0.0
        %vm5757 = vcmp.gt.f32.partialorder %v4294, 0.0
        %vm5758 = vcmp.gt.f32.partialorder %v5579, 0.0
        %vm5759 = vcmp.gt.f32.partialorder %v4297, 0.0
        %vm5760 = vcmp.gt.f32.partialorder %v5582, 0.0
        %vm5761 = vcmp.gt.f32.partialorder %v4300, 0.0
        %vm5762 = vcmp.gt.f32.partialorder %v5585, 0.0
        %vm5763 = vcmp.gt.f32.partialorder %v4303, 0.0
        %vm5764 = vcmp.gt.f32.partialorder %v5588, 0.0
        %vm5765 = vcmp.gt.f32.partialorder %v4306, 0.0
        %vm5766 = vcmp.gt.f32.partialorder %v5591, 0.0
        %vm5767 = vcmp.gt.f32.partialorder %v4309, 0.0
        %vm5768 = vcmp.gt.f32.partialorder %v5594, 0.0
        %vm5769 = vcmp.gt.f32.partialorder %v4312, 0.0
        %vm5770 = vcmp.gt.f32.partialorder %v5597, 0.0
        %vm5771 = vcmp.gt.f32.partialorder %v4315, 0.0
        %vm5772 = vcmp.gt.f32.partialorder %v5600, 0.0
        %vm5773 = vcmp.gt.f32.partialorder %v4318, 0.0
        %vm5774 = vcmp.gt.f32.partialorder %v5603, 0.0
        %vm5775 = vcmp.gt.f32.partialorder %v4321, 0.0
        %vm5776 = vcmp.gt.f32.partialorder %v5606, 0.0
        %vm5777 = vcmp.gt.f32.partialorder %v4324, 0.0
        %vm5778 = vcmp.gt.f32.partialorder %v5609, 0.0
        %vm5779 = vcmp.gt.f32.partialorder %v4327, 0.0
        %vm5780 = vcmp.gt.f32.partialorder %v5612, 0.0
        %vm5781 = vcmp.gt.f32.partialorder %v4330, 0.0
        %vm5782 = vcmp.gt.f32.partialorder %v5615, 0.0
        %vm5783 = vcmp.gt.f32.partialorder %v4333, 0.0
        %vm5784 = vcmp.gt.f32.partialorder %v5618, 0.0
        %vm5785 = vcmp.gt.f32.partialorder %v4336, 0.0
        %vm5786 = vcmp.gt.f32.partialorder %v5621, 0.0
        %vm5787 = vcmp.gt.f32.partialorder %v4339, 0.0
        %vm5788 = vcmp.gt.f32.partialorder %v5624, 0.0
        %vm5789 = vcmp.gt.f32.partialorder %v4342, 0.0
        %vm5790 = vcmp.gt.f32.partialorder %v5627, 0.0
        %vm5791 = vcmp.gt.f32.partialorder %v4345, 0.0
        %vm5792 = vcmp.gt.f32.partialorder %v5630, 0.0
        %vm5793 = vcmp.gt.f32.partialorder %v4348, 0.0
        %vm5794 = vcmp.gt.f32.partialorder %v5633, 0.0
        %v5795 = vmul.f32 %v4111, 0.01
        %v5796 = vmul.f32 %v5396, 0.01
        %v5797 = vmul.f32 %v4114, 0.01
        %v5798 = vmul.f32 %v5399, 0.01
        %v5799 = vmul.f32 %v4117, 0.01
        %v5800 = vmul.f32 %v5402, 0.01
        %v5801 = vmul.f32 %v4120, 0.01
        %v5802 = vmul.f32 %v5405, 0.01
        %v5803 = vmul.f32 %v4123, 0.01
        %v5804 = vmul.f32 %v5408, 0.01
        %v5805 = vmul.f32 %v4126, 0.01
        %v5806 = vmul.f32 %v5411, 0.01
        %v5807 = vmul.f32 %v4129, 0.01
        %v5808 = vmul.f32 %v5414, 0.01
        %v5809 = vmul.f32 %v4132, 0.01
        %v5810 = vmul.f32 %v5417, 0.01
        %v5811 = vmul.f32 %v4135, 0.01
        %v5812 = vmul.f32 %v5420, 0.01
        %v5813 = vmul.f32 %v4138, 0.01
        %v5814 = vmul.f32 %v5423, 0.01
        %v5815 = vmul.f32 %v4141, 0.01
        %v5816 = vmul.f32 %v5426, 0.01
        %v5817 = vmul.f32 %v4144, 0.01
        %v5818 = vmul.f32 %v5429, 0.01
        %v5819 = vmul.f32 %v4147, 0.01
        %v5820 = vmul.f32 %v5432, 0.01
        %v5821 = vmul.f32 %v4150, 0.01
        %v5822 = vmul.f32 %v5435, 0.01
        %v5823 = vmul.f32 %v4153, 0.01
        %v5824 = vmul.f32 %v5438, 0.01
        %v5825 = vmul.f32 %v4156, 0.01
        %v5826 = vmul.f32 %v5441, 0.01
        %v5827 = vmul.f32 %v4159, 0.01
        %v5828 = vmul.f32 %v5444, 0.01
        %v5829 = vmul.f32 %v4162, 0.01
        %v5830 = vmul.f32 %v5447, 0.01
        %v5831 = vmul.f32 %v4165, 0.01
        %v5832 = vmul.f32 %v5450, 0.01
        %v5833 = vmul.f32 %v4168, 0.01
        %v5834 = vmul.f32 %v5453, 0.01
        %v5835 = vmul.f32 %v4171, 0.01
        %v5836 = vmul.f32 %v5456, 0.01
        %v5837 = vmul.f32 %v4174, 0.01
        %v5838 = vmul.f32 %v5459, 0.01
        %v5839 = vmul.f32 %v4177, 0.01
        %v5840 = vmul.f32 %v5462, 0.01
        %v5841 = vmul.f32 %v4180, 0.01
        %v5842 = vmul.f32 %v5465, 0.01
        %v5843 = vmul.f32 %v4183, 0.01
        %v5844 = vmul.f32 %v5468, 0.01
        %v5845 = vmul.f32 %v4186, 0.01
        %v5846 = vmul.f32 %v5471, 0.01
        %v5847 = vmul.f32 %v4189, 0.01
        %v5848 = vmul.f32 %v5474, 0.01
        %v5849 = vmul.f32 %v4192, 0.01
        %v5850 = vmul.f32 %v5477, 0.01
        %v5851 = vmul.f32 %v4195, 0.01
        %v5852 = vmul.f32 %v5480, 0.01
        %v5853 = vmul.f32 %v4198, 0.01
        %v5854 = vmul.f32 %v5483, 0.01
        %v5855 = vmul.f32 %v4201, 0.01
        %v5856 = vmul.f32 %v5486, 0.01
        %v5857 = vmul.f32 %v4204, 0.01
        %v5858 = vmul.f32 %v5489, 0.01
        %v5859 = vmul.f32 %v4207, 0.01
        %v5860 = vmul.f32 %v5492, 0.01
        %v5861 = vmul.f32 %v4210, 0.01
        %v5862 = vmul.f32 %v5495, 0.01
        %v5863 = vmul.f32 %v4213, 0.01
        %v5864 = vmul.f32 %v5498, 0.01
        %v5865 = vmul.f32 %v4216, 0.01
        %v5866 = vmul.f32 %v5501, 0.01
        %v5867 = vmul.f32 %v4219, 0.01
        %v5868 = vmul.f32 %v5504, 0.01
        %v5869 = vmul.f32 %v4222, 0.01
        %v5870 = vmul.f32 %v5507, 0.01
        %v5871 = vmul.f32 %v4225, 0.01
        %v5872 = vmul.f32 %v5510, 0.01
        %v5873 = vmul.f32 %v4228, 0.01
        %v5874 = vmul.f32 %v5513, 0.01
        %v5875 = vmul.f32 %v4231, 0.01
        %v5876 = vmul.f32 %v5516, 0.01
        %v5877 = vmul.f32 %v4234, 0.01
        %v5878 = vmul.f32 %v5519, 0.01
        %v5879 = vmul.f32 %v4237, 0.01
        %v5880 = vmul.f32 %v5522, 0.01
        %v5881 = vmul.f32 %v4240, 0.01
        %v5882 = vmul.f32 %v5525, 0.01
        %v5883 = vmul.f32 %v4243, 0.01
        %v5884 = vmul.f32 %v5528, 0.01
        %v5885 = vmul.f32 %v4246, 0.01
        %v5886 = vmul.f32 %v5531, 0.01
        %v5887 = vmul.f32 %v4249, 0.01
        %v5888 = vmul.f32 %v5534, 0.01
        %v5889 = vmul.f32 %v4252, 0.01
        %v5890 = vmul.f32 %v5537, 0.01
        %v5891 = vmul.f32 %v4255, 0.01
        %v5892 = vmul.f32 %v5540, 0.01
        %v5893 = vmul.f32 %v4258, 0.01
        %v5894 = vmul.f32 %v5543, 0.01
        %v5895 = vmul.f32 %v4261, 0.01
        %v5896 = vmul.f32 %v5546, 0.01
        %v5897 = vmul.f32 %v4264, 0.01
        %v5898 = vmul.f32 %v5549, 0.01
        %v5899 = vmul.f32 %v4267, 0.01
        %v5900 = vmul.f32 %v5552, 0.01
        %v5901 = vmul.f32 %v4270, 0.01
        %v5902 = vmul.f32 %v5555, 0.01
        %v5903 = vmul.f32 %v4273, 0.01
        %v5904 = vmul.f32 %v5558, 0.01
        %v5905 = vmul.f32 %v4276, 0.01
        %v5906 = vmul.f32 %v5561, 0.01
        %v5907 = vmul.f32 %v4279, 0.01
        %v5908 = vmul.f32 %v5564, 0.01
        %v5909 = vmul.f32 %v4282, 0.01
        %v5910 = vmul.f32 %v5567, 0.01
        %v5911 = vmul.f32 %v4285, 0.01
        %v5912 = vmul.f32 %v5570, 0.01
        %v5913 = vmul.f32 %v4288, 0.01
        %v5914 = vmul.f32 %v5573, 0.01
        %v5915 = vmul.f32 %v4291, 0.01
        %v5916 = vmul.f32 %v5576, 0.01
        %v5917 = vmul.f32 %v4294, 0.01
        %v5918 = vmul.f32 %v5579, 0.01
        %v5919 = vmul.f32 %v4297, 0.01
        %v5920 = vmul.f32 %v5582, 0.01
        %v5921 = vmul.f32 %v4300, 0.01
        %v5922 = vmul.f32 %v5585, 0.01
        %v5923 = vmul.f32 %v4303, 0.01
        %v5924 = vmul.f32 %v5588, 0.01
        %v5925 = vmul.f32 %v4306, 0.01
        %v5926 = vmul.f32 %v5591, 0.01
        %v5927 = vmul.f32 %v4309, 0.01
        %v5928 = vmul.f32 %v5594, 0.01
        %v5929 = vmul.f32 %v4312, 0.01
        %v5930 = vmul.f32 %v5597, 0.01
        %v5931 = vmul.f32 %v4315, 0.01
        %v5932 = vmul.f32 %v5600, 0.01
        %v5933 = vmul.f32 %v4318, 0.01
        %v5934 = vmul.f32 %v5603, 0.01
        %v5935 = vmul.f32 %v4321, 0.01
        %v5936 = vmul.f32 %v5606, 0.01
        %v5937 = vmul.f32 %v4324, 0.01
        %v5938 = vmul.f32 %v5609, 0.01
        %v5939 = vmul.f32 %v4327, 0.01
        %v5940 = vmul.f32 %v5612, 0.01
        %v5941 = vmul.f32 %v4330, 0.01
        %v5942 = vmul.f32 %v5615, 0.01
        %v5943 = vmul.f32 %v4333, 0.01
        %v5944 = vmul.f32 %v5618, 0.01
        %v5945 = vmul.f32 %v4336, 0.01
        %v5946 = vmul.f32 %v5621, 0.01
        %v5947 = vmul.f32 %v4339, 0.01
        %v5948 = vmul.f32 %v5624, 0.01
        %v5949 = vmul.f32 %v4342, 0.01
        %v5950 = vmul.f32 %v5627, 0.01
        %v5951 = vmul.f32 %v4345, 0.01
        %v5952 = vmul.f32 %v5630, 0.01
        %v5953 = vmul.f32 %v4348, 0.01
        %v5954 = vmul.f32 %v5633, 0.01
        %v5955 = vsel %vm5635, %v4111, %v5795
        %v5956 = vsel %vm5636, %v5396, %v5796
        %v5957 = vsel %vm5637, %v4114, %v5797
        %v5958 = vsel %vm5638, %v5399, %v5798
        %v5959 = vsel %vm5639, %v4117, %v5799
        %v5960 = vsel %vm5640, %v5402, %v5800
        %v5961 = vsel %vm5641, %v4120, %v5801
        %v5962 = vsel %vm5642, %v5405, %v5802
        %v5963 = vsel %vm5643, %v4123, %v5803
        %v5964 = vsel %vm5644, %v5408, %v5804
        %v5965 = vsel %vm5645, %v4126, %v5805
        %v5966 = vsel %vm5646, %v5411, %v5806
        %v5967 = vsel %vm5647, %v4129, %v5807
        %v5968 = vsel %vm5648, %v5414, %v5808
        %v5969 = vsel %vm5649, %v4132, %v5809
        %v5970 = vsel %vm5650, %v5417, %v5810
        %v5971 = vsel %vm5651, %v4135, %v5811
        %v5972 = vsel %vm5652, %v5420, %v5812
        %v5973 = vsel %vm5653, %v4138, %v5813
        %v5974 = vsel %vm5654, %v5423, %v5814
        %v5975 = vsel %vm5655, %v4141, %v5815
        %v5976 = vsel %vm5656, %v5426, %v5816
        %v5977 = vsel %vm5657, %v4144, %v5817
        %v5978 = vsel %vm5658, %v5429, %v5818
        %v5979 = vsel %vm5659, %v4147, %v5819
        %v5980 = vsel %vm5660, %v5432, %v5820
        %v5981 = vsel %vm5661, %v4150, %v5821
        %v5982 = vsel %vm5662, %v5435, %v5822
        %v5983 = vsel %vm5663, %v4153, %v5823
        %v5984 = vsel %vm5664, %v5438, %v5824
        %v5985 = vsel %vm5665, %v4156, %v5825
        %v5986 = vsel %vm5666, %v5441, %v5826
        %v5987 = vsel %vm5667, %v4159, %v5827
        %v5988 = vsel %vm5668, %v5444, %v5828
        %v5989 = vsel %vm5669, %v4162, %v5829
        %v5990 = vsel %vm5670, %v5447, %v5830
        %v5991 = vsel %vm5671, %v4165, %v5831
        %v5992 = vsel %vm5672, %v5450, %v5832
        %v5993 = vsel %vm5673, %v4168, %v5833
        %v5994 = vsel %vm5674, %v5453, %v5834
        %v5995 = vsel %vm5675, %v4171, %v5835
        %v5996 = vsel %vm5676, %v5456, %v5836
        %v5997 = vsel %vm5677, %v4174, %v5837
        %v5998 = vsel %vm5678, %v5459, %v5838
        %v5999 = vsel %vm5679, %v4177, %v5839
        %v6000 = vsel %vm5680, %v5462, %v5840
        %v6001 = vsel %vm5681, %v4180, %v5841
        %v6002 = vsel %vm5682, %v5465, %v5842
        %v6003 = vsel %vm5683, %v4183, %v5843
        %v6004 = vsel %vm5684, %v5468, %v5844
        %v6005 = vsel %vm5685, %v4186, %v5845
        %v6006 = vsel %vm5686, %v5471, %v5846
        %v6007 = vsel %vm5687, %v4189, %v5847
        %v6008 = vsel %vm5688, %v5474, %v5848
        %v6009 = vsel %vm5689, %v4192, %v5849
        %v6010 = vsel %vm5690, %v5477, %v5850
        %v6011 = vsel %vm5691, %v4195, %v5851
        %v6012 = vsel %vm5692, %v5480, %v5852
        %v6013 = vsel %vm5693, %v4198, %v5853
        %v6014 = vsel %vm5694, %v5483, %v5854
        %v6015 = vsel %vm5695, %v4201, %v5855
        %v6016 = vsel %vm5696, %v5486, %v5856
        %v6017 = vsel %vm5697, %v4204, %v5857
        %v6018 = vsel %vm5698, %v5489, %v5858
        %v6019 = vsel %vm5699, %v4207, %v5859
        %v6020 = vsel %vm5700, %v5492, %v5860
        %v6021 = vsel %vm5701, %v4210, %v5861
        %v6022 = vsel %vm5702, %v5495, %v5862
        %v6023 = vsel %vm5703, %v4213, %v5863
        %v6024 = vsel %vm5704, %v5498, %v5864
        %v6025 = vsel %vm5705, %v4216, %v5865
        %v6026 = vsel %vm5706, %v5501, %v5866
        %v6027 = vsel %vm5707, %v4219, %v5867
        %v6028 = vsel %vm5708, %v5504, %v5868
        %v6029 = vsel %vm5709, %v4222, %v5869
        %v6030 = vsel %vm5710, %v5507, %v5870
        %v6031 = vsel %vm5711, %v4225, %v5871
        %v6032 = vsel %vm5712, %v5510, %v5872
        %v6033 = vsel %vm5713, %v4228, %v5873
        %v6034 = vsel %vm5714, %v5513, %v5874
        %v6035 = vsel %vm5715, %v4231, %v5875
        %v6036 = vsel %vm5716, %v5516, %v5876
        %v6037 = vsel %vm5717, %v4234, %v5877
        %v6038 = vsel %vm5718, %v5519, %v5878
        %v6039 = vsel %vm5719, %v4237, %v5879
        %v6040 = vsel %vm5720, %v5522, %v5880
        %v6041 = vsel %vm5721, %v4240, %v5881
        %v6042 = vsel %vm5722, %v5525, %v5882
        %v6043 = vsel %vm5723, %v4243, %v5883
        %v6044 = vsel %vm5724, %v5528, %v5884
        %v6045 = vsel %vm5725, %v4246, %v5885
        %v6046 = vsel %vm5726, %v5531, %v5886
        %v6047 = vsel %vm5727, %v4249, %v5887
        %v6048 = vsel %vm5728, %v5534, %v5888
        %v6049 = vsel %vm5729, %v4252, %v5889
        %v6050 = vsel %vm5730, %v5537, %v5890
        %v6051 = vsel %vm5731, %v4255, %v5891
        %v6052 = vsel %vm5732, %v5540, %v5892
        %v6053 = vsel %vm5733, %v4258, %v5893
        %v6054 = vsel %vm5734, %v5543, %v5894
        %v6055 = vsel %vm5735, %v4261, %v5895
        %v6056 = vsel %vm5736, %v5546, %v5896
        %v6057 = vsel %vm5737, %v4264, %v5897
        %v6058 = vsel %vm5738, %v5549, %v5898
        %v6059 = vsel %vm5739, %v4267, %v5899
        %v6060 = vsel %vm5740, %v5552, %v5900
        %v6061 = vsel %vm5741, %v4270, %v5901
        %v6062 = vsel %vm5742, %v5555, %v5902
        %v6063 = vsel %vm5743, %v4273, %v5903
        %v6064 = vsel %vm5744, %v5558, %v5904
        %v6065 = vsel %vm5745, %v4276, %v5905
        %v6066 = vsel %vm5746, %v5561, %v5906
        %v6067 = vsel %vm5747, %v4279, %v5907
        %v6068 = vsel %vm5748, %v5564, %v5908
        %v6069 = vsel %vm5749, %v4282, %v5909
        %v6070 = vsel %vm5750, %v5567, %v5910
        %v6071 = vsel %vm5751, %v4285, %v5911
        %v6072 = vsel %vm5752, %v5570, %v5912
        %v6073 = vsel %vm5753, %v4288, %v5913
        %v6074 = vsel %vm5754, %v5573, %v5914
        %v6075 = vsel %vm5755, %v4291, %v5915
        %v6076 = vsel %vm5756, %v5576, %v5916
        %v6077 = vsel %vm5757, %v4294, %v5917
        %v6078 = vsel %vm5758, %v5579, %v5918
        %v6079 = vsel %vm5759, %v4297, %v5919
        %v6080 = vsel %vm5760, %v5582, %v5920
        %v6081 = vsel %vm5761, %v4300, %v5921
        %v6082 = vsel %vm5762, %v5585, %v5922
        %v6083 = vsel %vm5763, %v4303, %v5923
        %v6084 = vsel %vm5764, %v5588, %v5924
        %v6085 = vsel %vm5765, %v4306, %v5925
        %v6086 = vsel %vm5766, %v5591, %v5926
        %v6087 = vsel %vm5767, %v4309, %v5927
        %v6088 = vsel %vm5768, %v5594, %v5928
        %v6089 = vsel %vm5769, %v4312, %v5929
        %v6090 = vsel %vm5770, %v5597, %v5930
        %v6091 = vsel %vm5771, %v4315, %v5931
        %v6092 = vsel %vm5772, %v5600, %v5932
        %v6093 = vsel %vm5773, %v4318, %v5933
        %v6094 = vsel %vm5774, %v5603, %v5934
        %v6095 = vsel %vm5775, %v4321, %v5935
        %v6096 = vsel %vm5776, %v5606, %v5936
        %v6097 = vsel %vm5777, %v4324, %v5937
        %v6098 = vsel %vm5778, %v5609, %v5938
        %v6099 = vsel %vm5779, %v4327, %v5939
        %v6100 = vsel %vm5780, %v5612, %v5940
        %v6101 = vsel %vm5781, %v4330, %v5941
        %v6102 = vsel %vm5782, %v5615, %v5942
        %v6103 = vsel %vm5783, %v4333, %v5943
        %v6104 = vsel %vm5784, %v5618, %v5944
        %v6105 = vsel %vm5785, %v4336, %v5945
        %v6106 = vsel %vm5786, %v5621, %v5946
        %v6107 = vsel %vm5787, %v4339, %v5947
        %v6108 = vsel %vm5788, %v5624, %v5948
        %v6109 = vsel %vm5789, %v4342, %v5949
        %v6110 = vsel %vm5790, %v5627, %v5950
        %v6111 = vsel %vm5791, %v4345, %v5951
        %v6112 = vsel %vm5792, %v5630, %v5952
        %v6113 = vsel %vm5793, %v4348, %v5953
        %v6114 = vsel %vm5794, %v5633, %v5954
        %v6115 = vld [vmem:[%s6] sm:$0xff]
        %v6116 = vld [vmem:[%s6 + $0x8] sm:$0xff]
        %v6117 = vld [vmem:[%s6 + $0x10] sm:$0xff]
        %v6118 = vld [vmem:[%s6 + $0x18] sm:$0xff]
        %v6119 = vld [vmem:[%s6 + $0x20] sm:$0xff]
        %v6120 = vld [vmem:[%s7] sm:$0xff]
        %6122 = vset.pattern.permute.xlu0 0
        %6123 = vperm.xlu0 %6122, %v6120
        %v6124 = vpop.permute.xlu0 %6123
        %6126 = vmatpush.msra.mxu0 %v5985
        %6127 = vmatpush.msra.mxu0 %v5983
        %6128 = vmatpush.msra.mxu0 %v5981
        %6129 = vmatpush.msra.mxu0 %v5979
        %6130 = vmatpush.msra.mxu0 %v5977
        %6131 = vmatpush.msra.mxu0 %v5975
        %6132 = vmatpush.msra.mxu0 %v5973
        %6133 = vmatpush.msra.mxu0 %v5971
        %6134 = vmatpush.msra.mxu0 %v5969
        %6135 = vmatpush.msra.mxu0 %v5967
        %6136 = vmatpush.msra.mxu0 %v5965
        %6137 = vmatpush.msra.mxu0 %v5963
        %6138 = vmatpush.msra.mxu0 %v5961
        %6139 = vmatpush.msra.mxu0 %v5959
        %6140 = vmatpush.msra.mxu0 %v5957
        %6141 = vmatpush.msra.mxu0 %v5955
        %6142 = vmatmul.f32.gmra.mxu0 %v6115
        %v6143 = vpop.f32.mrf.mxu0
        %v6144 = vadd.f32 %v6124, %v6143
        %6145 = vdwg.mxu0
        %6146 = vmatpush.msra.mxu0 %v6017
        %6147 = vmatpush.msra.mxu0 %v6015
        %6148 = vmatpush.msra.mxu0 %v6013
        %6149 = vmatpush.msra.mxu0 %v6011
        %6150 = vmatpush.msra.mxu0 %v6009
        %6151 = vmatpush.msra.mxu0 %v6007
        %6152 = vmatpush.msra.mxu0 %v6005
        %6153 = vmatpush.msra.mxu0 %v6003
        %6154 = vmatpush.msra.mxu0 %v6001
        %6155 = vmatpush.msra.mxu0 %v5999
        %6156 = vmatpush.msra.mxu0 %v5997
        %6157 = vmatpush.msra.mxu0 %v5995
        %6158 = vmatpush.msra.mxu0 %v5993
        %6159 = vmatpush.msra.mxu0 %v5991
        %6160 = vmatpush.msra.mxu0 %v5989
        %6161 = vmatpush.msra.mxu0 %v5987
        %6162 = vmatmul.f32.gmra.mxu0 %v6116
        %v6163 = vpop.f32.mrf.mxu0
        %v6164 = vadd.f32 %v6144, %v6163
        %6165 = vdwg.mxu0
        %6166 = vmatpush.msra.mxu0 %v6049
        %6167 = vmatpush.msra.mxu0 %v6047
        %6168 = vmatpush.msra.mxu0 %v6045
        %6169 = vmatpush.msra.mxu0 %v6043
        %6170 = vmatpush.msra.mxu0 %v6041
        %6171 = vmatpush.msra.mxu0 %v6039
        %6172 = vmatpush.msra.mxu0 %v6037
        %6173 = vmatpush.msra.mxu0 %v6035
        %6174 = vmatpush.msra.mxu0 %v6033
        %6175 = vmatpush.msra.mxu0 %v6031
        %6176 = vmatpush.msra.mxu0 %v6029
        %6177 = vmatpush.msra.mxu0 %v6027
        %6178 = vmatpush.msra.mxu0 %v6025
        %6179 = vmatpush.msra.mxu0 %v6023
        %6180 = vmatpush.msra.mxu0 %v6021
        %6181 = vmatpush.msra.mxu0 %v6019
        %6182 = vmatmul.f32.gmra.mxu0 %v6117
        %v6183 = vpop.f32.mrf.mxu0
        %v6184 = vadd.f32 %v6164, %v6183
        %6185 = vdwg.mxu0
        %6186 = vmatpush.msra.mxu0 %v6081
        %6187 = vmatpush.msra.mxu0 %v6079
        %6188 = vmatpush.msra.mxu0 %v6077
        %6189 = vmatpush.msra.mxu0 %v6075
        %6190 = vmatpush.msra.mxu0 %v6073
        %6191 = vmatpush.msra.mxu0 %v6071
        %6192 = vmatpush.msra.mxu0 %v6069
        %6193 = vmatpush.msra.mxu0 %v6067
        %6194 = vmatpush.msra.mxu0 %v6065
        %6195 = vmatpush.msra.mxu0 %v6063
        %6196 = vmatpush.msra.mxu0 %v6061
        %6197 = vmatpush.msra.mxu0 %v6059
        %6198 = vmatpush.msra.mxu0 %v6057
        %6199 = vmatpush.msra.mxu0 %v6055
        %6200 = vmatpush.msra.mxu0 %v6053
        %6201 = vmatpush.msra.mxu0 %v6051
        %6202 = vmatmul.f32.gmra.mxu0 %v6118
        %v6203 = vpop.f32.mrf.mxu0
        %v6204 = vadd.f32 %v6184, %v6203
        %6205 = vdwg.mxu0
        %6206 = vmatpush.msra.mxu0 %v6113
        %6207 = vmatpush.msra.mxu0 %v6111
        %6208 = vmatpush.msra.mxu0 %v6109
        %6209 = vmatpush.msra.mxu0 %v6107
        %6210 = vmatpush.msra.mxu0 %v6105
        %6211 = vmatpush.msra.mxu0 %v6103
        %6212 = vmatpush.msra.mxu0 %v6101
        %6213 = vmatpush.msra.mxu0 %v6099
        %6214 = vmatpush.msra.mxu0 %v6097
        %6215 = vmatpush.msra.mxu0 %v6095
        %6216 = vmatpush.msra.mxu0 %v6093
        %6217 = vmatpush.msra.mxu0 %v6091
        %6218 = vmatpush.msra.mxu0 %v6089
        %6219 = vmatpush.msra.mxu0 %v6087
        %6220 = vmatpush.msra.mxu0 %v6085
        %6221 = vmatpush.msra.mxu0 %v6083
        %6222 = vmatmul.f32.gmra.mxu0 %v6119
        %v6223 = vpop.f32.mrf.mxu0
        %v6224 = vadd.f32 %v6204, %v6223
        %6225 = vdwg.mxu0
        %6226 = vmatpush.msra.mxu0 %v5986
        %6227 = vmatpush.msra.mxu0 %v5984
        %6228 = vmatpush.msra.mxu0 %v5982
        %6229 = vmatpush.msra.mxu0 %v5980
        %6230 = vmatpush.msra.mxu0 %v5978
        %6231 = vmatpush.msra.mxu0 %v5976
        %6232 = vmatpush.msra.mxu0 %v5974
        %6233 = vmatpush.msra.mxu0 %v5972
        %6234 = vmatpush.msra.mxu0 %v5970
        %6235 = vmatpush.msra.mxu0 %v5968
        %6236 = vmatpush.msra.mxu0 %v5966
        %6237 = vmatpush.msra.mxu0 %v5964
        %6238 = vmatpush.msra.mxu0 %v5962
        %6239 = vmatpush.msra.mxu0 %v5960
        %6240 = vmatpush.msra.mxu0 %v5958
        %6241 = vmatpush.msra.mxu0 %v5956
        %6242 = vmatmul.f32.gmra.mxu0 %v6115
        %v6243 = vpop.f32.mrf.mxu0
        %v6244 = vadd.f32 %v6124, %v6243
        %6245 = vdwg.mxu0
        %6246 = vmatpush.msra.mxu0 %v6018
        %6247 = vmatpush.msra.mxu0 %v6016
        %6248 = vmatpush.msra.mxu0 %v6014
        %6249 = vmatpush.msra.mxu0 %v6012
        %6250 = vmatpush.msra.mxu0 %v6010
        %6251 = vmatpush.msra.mxu0 %v6008
        %6252 = vmatpush.msra.mxu0 %v6006
        %6253 = vmatpush.msra.mxu0 %v6004
        %6254 = vmatpush.msra.mxu0 %v6002
        %6255 = vmatpush.msra.mxu0 %v6000
        %6256 = vmatpush.msra.mxu0 %v5998
        %6257 = vmatpush.msra.mxu0 %v5996
        %6258 = vmatpush.msra.mxu0 %v5994
        %6259 = vmatpush.msra.mxu0 %v5992
        %6260 = vmatpush.msra.mxu0 %v5990
        %6261 = vmatpush.msra.mxu0 %v5988
        %6262 = vmatmul.f32.gmra.mxu0 %v6116
        %v6263 = vpop.f32.mrf.mxu0
        %v6264 = vadd.f32 %v6244, %v6263
        %6265 = vdwg.mxu0
        %6266 = vmatpush.msra.mxu0 %v6050
        %6267 = vmatpush.msra.mxu0 %v6048
        %6268 = vmatpush.msra.mxu0 %v6046
        %6269 = vmatpush.msra.mxu0 %v6044
        %6270 = vmatpush.msra.mxu0 %v6042
        %6271 = vmatpush.msra.mxu0 %v6040
        %6272 = vmatpush.msra.mxu0 %v6038
        %6273 = vmatpush.msra.mxu0 %v6036
        %6274 = vmatpush.msra.mxu0 %v6034
        %6275 = vmatpush.msra.mxu0 %v6032
        %6276 = vmatpush.msra.mxu0 %v6030
        %6277 = vmatpush.msra.mxu0 %v6028
        %6278 = vmatpush.msra.mxu0 %v6026
        %6279 = vmatpush.msra.mxu0 %v6024
        %6280 = vmatpush.msra.mxu0 %v6022
        %6281 = vmatpush.msra.mxu0 %v6020
        %6282 = vmatmul.f32.gmra.mxu0 %v6117
        %v6283 = vpop.f32.mrf.mxu0
        %v6284 = vadd.f32 %v6264, %v6283
        %6285 = vdwg.mxu0
        %6286 = vmatpush.msra.mxu0 %v6082
        %6287 = vmatpush.msra.mxu0 %v6080
        %6288 = vmatpush.msra.mxu0 %v6078
        %6289 = vmatpush.msra.mxu0 %v6076
        %6290 = vmatpush.msra.mxu0 %v6074
        %6291 = vmatpush.msra.mxu0 %v6072
        %6292 = vmatpush.msra.mxu0 %v6070
        %6293 = vmatpush.msra.mxu0 %v6068
        %6294 = vmatpush.msra.mxu0 %v6066
        %6295 = vmatpush.msra.mxu0 %v6064
        %6296 = vmatpush.msra.mxu0 %v6062
        %6297 = vmatpush.msra.mxu0 %v6060
        %6298 = vmatpush.msra.mxu0 %v6058
        %6299 = vmatpush.msra.mxu0 %v6056
        %6300 = vmatpush.msra.mxu0 %v6054
        %6301 = vmatpush.msra.mxu0 %v6052
        %6302 = vmatmul.f32.gmra.mxu0 %v6118
        %v6303 = vpop.f32.mrf.mxu0
        %v6304 = vadd.f32 %v6284, %v6303
        %6305 = vdwg.mxu0
        %6306 = vmatpush.msra.mxu0 %v6114
        %6307 = vmatpush.msra.mxu0 %v6112
        %6308 = vmatpush.msra.mxu0 %v6110
        %6309 = vmatpush.msra.mxu0 %v6108
        %6310 = vmatpush.msra.mxu0 %v6106
        %6311 = vmatpush.msra.mxu0 %v6104
        %6312 = vmatpush.msra.mxu0 %v6102
        %6313 = vmatpush.msra.mxu0 %v6100
        %6314 = vmatpush.msra.mxu0 %v6098
        %6315 = vmatpush.msra.mxu0 %v6096
        %6316 = vmatpush.msra.mxu0 %v6094
        %6317 = vmatpush.msra.mxu0 %v6092
        %6318 = vmatpush.msra.mxu0 %v6090
        %6319 = vmatpush.msra.mxu0 %v6088
        %6320 = vmatpush.msra.mxu0 %v6086
        %6321 = vmatpush.msra.mxu0 %v6084
        %6322 = vmatmul.f32.gmra.mxu0 %v6119
        %v6323 = vpop.f32.mrf.mxu0
        %v6324 = vadd.f32 %v6304, %v6323
        %6325 = vdwg.mxu0
        %v6326 = vand.u32 2147483647, %v6224
        %v6327 = vand.u32 2147483647, %v6324
        %v6328 = vmax.f32 %v6326, 0.11
        %v6329 = vmax.f32 %v6327, 0.11
        %v6330 = vld [vmem:[%s368] sm:$0xff]
        %v6333 = vrot.slane %v6324, 4
        %vm6334 = vcmask 1043456
        %v6335 = vsel %vm6334, %v6224, %v6333
        %v6337 = vsub.f32 %v6330, %v6335
        %v6338 = vrcp.pop %v6328
        %v6339 = vmul.f32 %v6328, %v6338
        %v6340 = vsub.f32 1.0, %v6339
        %v6341 = vmul.f32 %v6338, %v6340
        %v6342 = vadd.f32 %v6338, %v6341
        %vm6343 = vweird.f32 %v6328
        %vm6344 = vweird.f32 %v6338
        %vm6345 = vmor %vm6343, %vm6344
        %v6346 = vsel %vm6345, %v6338, %v6342
        %v6347 = vand.u32 2147483647, %v6328
        %vm6348 = vcmp.eq.f32.partialorder %v6347, 8.507059e+37
        %v6349 = vand.u32 %v6328, 2147483648
        %v6350 = vor.u32 1.1754944e-38, %v6349
        %v6351 = vsel %vm6348, %v6350, %v6346
        %v6352 = vmul.f32 1.0, %v6351
        %v6353 = vrcp.pop %v6329
        %v6354 = vmul.f32 %v6329, %v6353
        %v6355 = vsub.f32 1.0, %v6354
        %v6356 = vmul.f32 %v6353, %v6355
        %v6357 = vadd.f32 %v6353, %v6356
        %vm6358 = vweird.f32 %v6329
        %vm6359 = vweird.f32 %v6353
        %vm6360 = vmor %vm6358, %vm6359
        %v6361 = vsel %vm6360, %v6353, %v6357
        %v6362 = vand.u32 2147483647, %v6329
        %vm6363 = vcmp.eq.f32.partialorder %v6362, 8.507059e+37
        %v6364 = vand.u32 %v6329, 2147483648
        %v6365 = vor.u32 1.1754944e-38, %v6364
        %v6366 = vsel %vm6363, %v6365, %v6361
        %v6367 = vmul.f32 1.0, %v6366
        %v6368 = vadd.f32 %v6337, 0.5
        %v6369 = vmul.f32 %v6368, 0.5
        %6372 = vst.sshfl [vmem:[#allocation1] sm:$0xff pattern:$0x75316420] %v6352
        %6373 = vst.sshfl [vmem:[#allocation1 + $0x8] sm:$0xff pattern:$0x75316420] %v6367
        %s6374 = scalar_lea.vmem [#allocation1], 1
        %v6375 = vld [vmem:[%s6374] ss:$2 sm:$0xff]
        %v6377 = vmul.f32 %v6369, %v6375
        %v6378 = vtanh.pop %v6377
        %v6379 = vsub.f32 %v6337, 0.5
        %v6380 = vmul.f32 %v6379, 0.5
        %6381 = vst.sshfl [vmem:[#allocation1] sm:$0xff pattern:$0x75316420] %v6352
        %6382 = vst.sshfl [vmem:[#allocation1 + $0x8] sm:$0xff pattern:$0x75316420] %v6367
        %s6383 = scalar_lea.vmem [#allocation1], 1
        %v6384 = vld [vmem:[%s6383] ss:$2 sm:$0xff]
        %v6386 = vmul.f32 %v6380, %v6384
        %v6387 = vtanh.pop %v6386
        %v6388 = vsub.f32 %v6378, %v6387
        %v6389 = vmul.f32 %v6388, 0.5
        %6390 = vst [vmem:[%s374] sm:$0xff] %v6389
        %s6391 = smul.u32 2, %s19
        %p6392 = scmp.lt.s32.totalorder %s6391, 3
        %s6393 = scalar_select %p6392, %s6391, 3
        %s6394 = smul.addr %s6393, 4
        %s6395 = scalar_lea.vmem %s8, %s6394
        // Predicated region
        $region76: #{context_model_forward.1} parent=70 // pred_check
          %p6396 = pneg %p215
        $region77: #{context_model_forward.1} parent=70 // pred_check_branch
          %6398 = sbr.rel (%p6396) target = $region79
        $region78: #{context_model_forward.1} parent=70 // pred_region
          %s6399 = smul.u32 2, %s19
        $region79: #{context_model_forward.1} parent=70 // pred_fallthru
          _
      $region71: #{context_model_forward.1} parent=5 // pred_fallthru
        _
      %p6400 = scmp.le.s32.totalorder 2, %s14
      // Predicated region
      $region80: #{context_model_forward.1} parent=5 // pred_check
        %p6401 = pneg %p6400
      $region81: #{context_model_forward.1} parent=5 // pred_check_branch
        %6403 = sbr.rel (%p6401) target = $region83
      $region82: #{context_model_forward.1} parent=5 // pred_region
        %s6404 = ssub.s32 %s14, 2
        // Predicated region
        $region84: #{context_model_forward.1} parent=82 // pred_check
          %p6405 = pneg %p221
        $region85: #{context_model_forward.1} parent=82 // pred_check_branch
          %6407 = sbr.rel (%p6405) target = $region87
        $region86: #{context_model_forward.1} parent=82 // pred_region
          %s6408 = smul.u32 2, %s20
          %p6409 = scmp.lt.s32.totalorder %s6408, 3
          %s6410 = scalar_select %p6409, %s6408, 3
          %s6411 = smul.addr %s6410, 4
          %s6412 = scalar_lea.vmem %s8, %s6411
        $region87: #{context_model_forward.1} parent=82 // pred_fallthru
          _
      $region83: #{context_model_forward.1} parent=5 // pred_fallthru
        _
    $region6: #{context_model_forward.1} parent=1 // loop_footer
      %s18 = sadd.s32 1, %s14
    $region7: #{context_model_forward.1} parent=1 // loop_footer_branch
      %13 = sbr.rel target = $region3
    $region8: #{context_model_forward.1} parent=1 // loop_exit
      _

</llo_original>
